<compile_context>
chip_gen: v7x
topology: tpu7x:2x2x1
jax: 0.10.0
libtpu: 0.0.40
codegen_flags: <defaults>
</compile_context>

<pallas_src>
import functools
import math

import jax
import jax.numpy as jnp
from jax.experimental import pallas as pl
from jax.experimental.pallas import tpu as pltpu

# ---------------- config (scaled-down BERT) ----------------
VOCAB = 64
MAX_POS = 32
HIDDEN = 128
NUM_HEADS = 2
HEAD_DIM = HIDDEN // NUM_HEADS
INTERMEDIATE = 256
NUM_LAYERS = 2
LN_EPS = 1e-12
MASK_NEG = -10000.0  # BERT-style additive attention mask value

VMEM_SPEC = pl.BlockSpec(memory_space=pltpu.MemorySpace.VMEM)


# ---------------- in-kernel helpers ----------------
def _layernorm(x, g, b):
    mean = jnp.mean(x, axis=-1, keepdims=True)
    c = x - mean
    var = jnp.mean(c * c, axis=-1, keepdims=True)
    return c * jax.lax.rsqrt(var + LN_EPS) * g + b


def _gelu_tanh(y):
    # TODO(synk): HF BERT uses erf-GELU; tanh approximation differs at ~1e-3.
    c = math.sqrt(2.0 / math.pi)
    return 0.5 * y * (1.0 + jnp.tanh(c * (y + 0.044715 * y * y * y)))


def _mm(a_f32, w_bf16, b_f32):
    """bf16 MXU matmul (weights stored bf16) with f32 accumulation + f32 bias add."""
    return jnp.dot(a_f32.astype(jnp.bfloat16), w_bf16,
                   preferred_element_type=jnp.float32) + b_f32


# ---------------- single fused forward kernel ----------------
def _bert_forward_kernel(ids_ref, mask_ref, wemb_ref, pemb_ref, temb_ref,
                         embg_ref, embb_ref,
                         wqkv_ref, bqkv_ref, wo_ref, bo_ref,
                         ln1g_ref, ln1b_ref, w1_ref, b1_ref,
                         w2_ref, b2_ref, ln2g_ref, ln2b_ref,
                         pw_ref, pb_ref, hw_ref, hb_ref,
                         o_ref, *, B, S):
    BS = B * S

    # ---- embeddings: in-kernel word gather as one-hot @ table (exact in f32) ----
    ids = ids_ref[...]                                                  # [BS, 1] i32
    vocab_iota = jax.lax.broadcasted_iota(jnp.int32, (BS, VOCAB), 1)
    onehot = (vocab_iota == ids).astype(jnp.float32)                    # [BS, VOCAB]
    we = jnp.dot(onehot, wemb_ref[...], preferred_element_type=jnp.float32)  # [BS, H]
    # pos embeddings pre-tiled to [BS, H] in wrapper; token_type_ids assumed 0
    # (matches PyTorch default of zeros when token_type_ids is None).
    x = _layernorm(we + pemb_ref[...] + temb_ref[...], embg_ref[...], embb_ref[...])
    # dropout(0.1) after embeddings: identity at inference

    # additive attention-mask bias built on the fly ([B,S] -> [B,1,S]; never [B*heads,S,S])
    bias = ((1.0 - mask_ref[...]) * MASK_NEG)[:, None, :]               # [B, 1, S]
    scale = 1.0 / math.sqrt(HEAD_DIM)

    # ---- encoder layers: static unroll, activation stays in vregs/VMEM the whole time ----
    # TODO(synk): for NUM_LAYERS >> 2 turn this into a grid axis with stacked-weight
    # BlockSpecs (index_map lambda l: (l, ...), "arbitrary") so layer l+1 weights
    # double-buffer under layer l compute; add a "parallel" token grid axis (tile >=256
    # rows on v6e/v7x) sized against v7x's 64 MiB VMEM when scaling B*S.
    for l in range(NUM_LAYERS):
        # fused QKV projection: one [H, 3H] bf16 matmul, f32 accumulation
        qkv = _mm(x, wqkv_ref[l], bqkv_ref[l])                          # [BS, 3H]

        attn = bo_ref[l]                                                # [1, H], start from bias
        for h in range(NUM_HEADS):                                      # static unroll (2 heads)
            q = qkv[:, h * HEAD_DIM:(h + 1) * HEAD_DIM].reshape(B, S, HEAD_DIM)
            k = qkv[:, HIDDEN + h * HEAD_DIM:HIDDEN + (h + 1) * HEAD_DIM].reshape(B, S, HEAD_DIM)
            v = qkv[:, 2 * HIDDEN + h * HEAD_DIM:2 * HIDDEN + (h + 1) * HEAD_DIM].reshape(B, S, HEAD_DIM)

            s = jnp.einsum("bqd,bkd->bqk", q.astype(jnp.bfloat16), k.astype(jnp.bfloat16),
                           preferred_element_type=jnp.float32) * scale + bias
            m = jnp.max(s, axis=-1, keepdims=True)
            p = jnp.exp(s - m)
            p = p * pl.reciprocal(jnp.sum(p, axis=-1, keepdims=True), approx=True)
            ctx = jnp.einsum("bqk,bkd->bqd", p.astype(jnp.bfloat16), v.astype(jnp.bfloat16),
                             preferred_element_type=jnp.float32).reshape(BS, HEAD_DIM)
            # per-head output-projection block (Wo rows h*HEAD_DIM:(h+1)*HEAD_DIM):
            # avoids the lane concatenate of head contexts.
            attn = attn + jnp.dot(ctx.astype(jnp.bfloat16), wo_ref[l, h],
                                  preferred_element_type=jnp.float32)

        # residual + LayerNorm
        x1 = _layernorm(attn + x, ln1g_ref[l], ln1b_ref[l])
        # feed-forward (GELU) + residual + LayerNorm
        hgelu = _gelu_tanh(_mm(x1, w1_ref[l], b1_ref[l]))
        ff = _mm(hgelu, w2_ref[l], b2_ref[l])
        x = _layernorm(ff + x1, ln2g_ref[l], ln2b_ref[l])
        # dropouts are identity at inference

    # ---- pooler (CLS rows read straight out of the resident activation) ----
    cls = x.reshape(B, S, HIDDEN)[:, 0, :]                              # [B, H]
    pooled = jnp.tanh(_mm(cls, pw_ref[...], pb_ref[...]))
    # dropout(0.1): identity at inference.
    # Linear(H, 1) as a VPU lane reduction (avoids a 1-lane-wide MXU pass).
    o_ref[...] = jnp.sum(pooled * hw_ref[...], axis=-1, keepdims=True) + hb_ref[...]


# ---------------- parameter init (deterministic, synthetic) ----------------
def _init_params(key):
    def nrm(k, shape, dtype=jnp.float32):
        return (0.02 * jax.random.normal(k, shape, dtype=jnp.float32)).astype(dtype)

    keys = iter(jax.random.split(key, 8 + NUM_LAYERS * 8))
    params = {
        "word_emb": nrm(next(keys), (VOCAB, HIDDEN)),
        "pos_emb": nrm(next(keys), (MAX_POS, HIDDEN)),
        "type_emb": nrm(next(keys), (2, HIDDEN)),
        "emb_ln_g": jnp.ones((1, HIDDEN), jnp.float32),
        "emb_ln_b": jnp.zeros((1, HIDDEN), jnp.float32),
        "pool_w": nrm(next(keys), (HIDDEN, HIDDEN), jnp.bfloat16),   # MXU operand -> bf16
        "pool_b": jnp.zeros((1, HIDDEN), jnp.float32),
        "head_w": nrm(next(keys), (1, HIDDEN)),                      # f32 (VPU lane reduction)
        "head_b": jnp.zeros((1, 1), jnp.float32),
    }
    wqkv, bqkv, wo, bo = [], [], [], []
    ln1g, ln1b, w1, b1, w2, b2, ln2g, ln2b = [], [], [], [], [], [], [], []
    for _ in range(NUM_LAYERS):
        wq = nrm(next(keys), (HIDDEN, HIDDEN))
        wk = nrm(next(keys), (HIDDEN, HIDDEN))
        wv = nrm(next(keys), (HIDDEN, HIDDEN))
        # fused QKV weight [H, 3H] stored bf16 for the MXU (single lane-dense matmul)
        wqkv.append(jnp.concatenate([wq, wk, wv], axis=1).astype(jnp.bfloat16))
        bqkv.append(jnp.zeros((1, 3 * HIDDEN), jnp.float32))
        # output projection stored per-head: [heads, head_dim, H]
        wo_l = nrm(next(keys), (HIDDEN, HIDDEN))
        wo.append(wo_l.reshape(NUM_HEADS, HEAD_DIM, HIDDEN).astype(jnp.bfloat16))
        bo.append(jnp.zeros((1, HIDDEN), jnp.float32))
        ln1g.append(jnp.ones((1, HIDDEN), jnp.float32))
        ln1b.append(jnp.zeros((1, HIDDEN), jnp.float32))
        w1.append(nrm(next(keys), (HIDDEN, INTERMEDIATE), jnp.bfloat16))
        b1.append(jnp.zeros((1, INTERMEDIATE), jnp.float32))
        w2.append(nrm(next(keys), (INTERMEDIATE, HIDDEN), jnp.bfloat16))
        b2.append(jnp.zeros((1, HIDDEN), jnp.float32))
        ln2g.append(jnp.ones((1, HIDDEN), jnp.float32))
        ln2b.append(jnp.zeros((1, HIDDEN), jnp.float32))
    # stack per-layer weights along a leading layer axis (kept VMEM-resident in the kernel)
    params.update({
        "wqkv": jnp.stack(wqkv), "bqkv": jnp.stack(bqkv),
        "wo": jnp.stack(wo), "bo": jnp.stack(bo),
        "ln1_g": jnp.stack(ln1g), "ln1_b": jnp.stack(ln1b),
        "w1": jnp.stack(w1), "b1": jnp.stack(b1),
        "w2": jnp.stack(w2), "b2": jnp.stack(b2),
        "ln2_g": jnp.stack(ln2g), "ln2_b": jnp.stack(ln2b),
    })
    return params


# ---------------- forward pass: ONE fused pallas_call ----------------
def bert_regressor_forward(params, input_ids, attention_mask):
    B, S = input_ids.shape
    ids = input_ids.reshape(B * S, 1).astype(jnp.int32)
    mask_f32 = attention_mask.astype(jnp.float32)                 # [B, S]
    pe_full = jnp.tile(params["pos_emb"][:S], (B, 1))             # [B*S, H] (8 KiB, layout glue)
    te = params["type_emb"][0:1]                                  # [1, H]

    return pl.pallas_call(
        functools.partial(_bert_forward_kernel, B=B, S=S),
        out_shape=jax.ShapeDtypeStruct((B, 1), jnp.float32),
        in_specs=[VMEM_SPEC] * 23,
        out_specs=VMEM_SPEC,
    )(ids, mask_f32, params["word_emb"], pe_full, te,
      params["emb_ln_g"], params["emb_ln_b"],
      params["wqkv"], params["bqkv"], params["wo"], params["bo"],
      params["ln1_g"], params["ln1_b"],
      params["w1"], params["b1"], params["w2"], params["b2"],
      params["ln2_g"], params["ln2_b"],
      params["pool_w"], params["pool_b"], params["head_w"], params["head_b"])


if __name__ == "__main__":
    key = jax.random.PRNGKey(0)
    k_params, k_ids = jax.random.split(key)

    B, S = 2, 8
    params = _init_params(k_params)
    input_ids = jax.random.randint(k_ids, (B, S), 0, VOCAB, dtype=jnp.int32)
    # simple padding mask: last two tokens of sample 1 are padding
    attention_mask = jnp.array(
        [[1, 1, 1, 1, 1, 1, 1, 1],
         [1, 1, 1, 1, 1, 1, 0, 0]], dtype=jnp.int32)

    out = bert_regressor_forward(params, input_ids, attention_mask)
    out = jax.block_until_ready(out)
    assert out.shape == (B, 1) and out.dtype == jnp.float32
    print("KERNEL_OK")
</pallas_src>

<mosaic_0001>
module attributes {stable_mosaic.version = 11 : i64} {
  func.func @_bert_forward_kernel(%arg0: memref<16x1xi32, #tpu.memory_space<vmem>>, %arg1: memref<2x8xf32, #tpu.memory_space<vmem>>, %arg2: memref<64x128xf32, #tpu.memory_space<vmem>>, %arg3: memref<16x128xf32, #tpu.memory_space<vmem>>, %arg4: memref<1x128xf32, #tpu.memory_space<vmem>>, %arg5: memref<1x128xf32, #tpu.memory_space<vmem>>, %arg6: memref<1x128xf32, #tpu.memory_space<vmem>>, %arg7: memref<2x128x384xbf16, #tpu.memory_space<vmem>>, %arg8: memref<2x1x384xf32, #tpu.memory_space<vmem>>, %arg9: memref<2x2x64x128xbf16, #tpu.memory_space<vmem>>, %arg10: memref<2x1x128xf32, #tpu.memory_space<vmem>>, %arg11: memref<2x1x128xf32, #tpu.memory_space<vmem>>, %arg12: memref<2x1x128xf32, #tpu.memory_space<vmem>>, %arg13: memref<2x128x256xbf16, #tpu.memory_space<vmem>>, %arg14: memref<2x1x256xf32, #tpu.memory_space<vmem>>, %arg15: memref<2x256x128xbf16, #tpu.memory_space<vmem>>, %arg16: memref<2x1x128xf32, #tpu.memory_space<vmem>>, %arg17: memref<2x1x128xf32, #tpu.memory_space<vmem>>, %arg18: memref<2x1x128xf32, #tpu.memory_space<vmem>>, %arg19: memref<128x128xbf16, #tpu.memory_space<vmem>>, %arg20: memref<1x128xf32, #tpu.memory_space<vmem>>, %arg21: memref<1x128xf32, #tpu.memory_space<vmem>>, %arg22: memref<1x1xf32, #tpu.memory_space<vmem>>, %arg23: memref<2x1xf32, #tpu.memory_space<vmem>>) attributes {dimension_semantics = [], scalar_prefetch = 0 : i64, scratch_operands = 0 : i64, tpu.core_type = #tpu.core_type<tc>} {
    %c0 = arith.constant 0 : index
    %c0_0 = arith.constant 0 : index
    %0 = vector.load %arg0[%c0, %c0_0] : memref<16x1xi32, #tpu.memory_space<vmem>>, vector<16x1xi32>
    %1 = tpu.iota {dimensions = array<i32: 1>} : vector<16x64xi32>
    %2 = vector.broadcast %0 : vector<16x1xi32> to vector<16x64xi32>
    %3 = arith.cmpi eq, %1, %2 : vector<16x64xi32>
    %4 = arith.extui %3 : vector<16x64xi1> to vector<16x64xi32>
    %5 = arith.sitofp %4 : vector<16x64xi32> to vector<16x64xf32>
    %c0_1 = arith.constant 0 : index
    %c0_2 = arith.constant 0 : index
    %6 = vector.load %arg2[%c0_1, %c0_2] : memref<64x128xf32, #tpu.memory_space<vmem>>, vector<64x128xf32>
    %cst = arith.constant dense<0.000000e+00> : vector<16x128xf32>
    %7 = tpu.matmul %5, %6, %cst {dimension_numbers = #tpu.dot_dimension_numbers<[1], [0], [0], [1], [0, 0, 1, 1], [], []>} : vector<16x64xf32>, vector<64x128xf32>, vector<16x128xf32> -> vector<16x128xf32>
    %c0_3 = arith.constant 0 : index
    %c0_4 = arith.constant 0 : index
    %8 = vector.load %arg3[%c0_3, %c0_4] : memref<16x128xf32, #tpu.memory_space<vmem>>, vector<16x128xf32>
    %9 = arith.addf %7, %8 : vector<16x128xf32>
    %c0_5 = arith.constant 0 : index
    %c0_6 = arith.constant 0 : index
    %10 = vector.load %arg4[%c0_5, %c0_6] : memref<1x128xf32, #tpu.memory_space<vmem>>, vector<1x128xf32>
    %11 = vector.broadcast %10 : vector<1x128xf32> to vector<16x128xf32>
    %12 = arith.addf %9, %11 : vector<16x128xf32>
    %c0_7 = arith.constant 0 : index
    %c0_8 = arith.constant 0 : index
    %13 = vector.load %arg5[%c0_7, %c0_8] : memref<1x128xf32, #tpu.memory_space<vmem>>, vector<1x128xf32>
    %c0_9 = arith.constant 0 : index
    %c0_10 = arith.constant 0 : index
    %14 = vector.load %arg6[%c0_9, %c0_10] : memref<1x128xf32, #tpu.memory_space<vmem>>, vector<1x128xf32>
    %cst_11 = arith.constant dense<0.000000e+00> : vector<16xf32>
    %15 = vector.multi_reduction <add>, %12, %cst_11 [1] : vector<16x128xf32> to vector<16xf32>
    %16 = vector.shape_cast %15 : vector<16xf32> to vector<16x1xf32>
    %cst_12 = arith.constant 1.280000e+02 : f32
    %17 = vector.broadcast %cst_12 : f32 to vector<16x1xf32>
    %18 = arith.divf %16, %17 : vector<16x1xf32>
    %19 = vector.broadcast %18 : vector<16x1xf32> to vector<16x128xf32>
    %20 = arith.subf %12, %19 : vector<16x128xf32>
    %21 = arith.mulf %20, %20 : vector<16x128xf32>
    %cst_13 = arith.constant dense<0.000000e+00> : vector<16xf32>
    %22 = vector.multi_reduction <add>, %21, %cst_13 [1] : vector<16x128xf32> to vector<16xf32>
    %23 = vector.shape_cast %22 : vector<16xf32> to vector<16x1xf32>
    %cst_14 = arith.constant 1.280000e+02 : f32
    %24 = vector.broadcast %cst_14 : f32 to vector<16x1xf32>
    %25 = arith.divf %23, %24 : vector<16x1xf32>
    %cst_15 = arith.constant 9.99999996E-13 : f32
    %26 = vector.broadcast %cst_15 : f32 to vector<16x1xf32>
    %27 = arith.addf %25, %26 : vector<16x1xf32>
    %28 = math.rsqrt %27 : vector<16x1xf32>
    %29 = vector.broadcast %28 : vector<16x1xf32> to vector<16x128xf32>
    %30 = arith.mulf %20, %29 : vector<16x128xf32>
    %31 = vector.broadcast %13 : vector<1x128xf32> to vector<16x128xf32>
    %32 = arith.mulf %30, %31 : vector<16x128xf32>
    %33 = vector.broadcast %14 : vector<1x128xf32> to vector<16x128xf32>
    %34 = arith.addf %32, %33 : vector<16x128xf32>
    %c0_16 = arith.constant 0 : index
    %c0_17 = arith.constant 0 : index
    %35 = vector.load %arg1[%c0_16, %c0_17] : memref<2x8xf32, #tpu.memory_space<vmem>>, vector<2x8xf32>
    %cst_18 = arith.constant 1.000000e+00 : f32
    %36 = vector.broadcast %cst_18 : f32 to vector<2x8xf32>
    %37 = arith.subf %36, %35 : vector<2x8xf32>
    %cst_19 = arith.constant -1.000000e+04 : f32
    %38 = vector.broadcast %cst_19 : f32 to vector<2x8xf32>
    %39 = arith.mulf %37, %38 : vector<2x8xf32>
    %40 = vector.shape_cast %39 : vector<2x8xf32> to vector<2x1x8xf32>
    %c0_20 = arith.constant 0 : index
    %c0_21 = arith.constant 0 : index
    %c0_22 = arith.constant 0 : index
    %41 = vector.load %arg7[%c0_20, %c0_21, %c0_22] : memref<2x128x384xbf16, #tpu.memory_space<vmem>>, vector<1x128x384xbf16>
    %42 = vector.shape_cast %41 : vector<1x128x384xbf16> to vector<128x384xbf16>
    %c0_23 = arith.constant 0 : index
    %c0_24 = arith.constant 0 : index
    %c0_25 = arith.constant 0 : index
    %43 = vector.load %arg8[%c0_23, %c0_24, %c0_25] : memref<2x1x384xf32, #tpu.memory_space<vmem>>, vector<1x1x384xf32>
    %44 = vector.shape_cast %43 : vector<1x1x384xf32> to vector<1x384xf32>
    %45 = arith.truncf %34 : vector<16x128xf32> to vector<16x128xbf16>
    %cst_26 = arith.constant dense<0.000000e+00> : vector<16x384xf32>
    %46 = tpu.matmul %45, %42, %cst_26 {dimension_numbers = #tpu.dot_dimension_numbers<[1], [0], [0], [1], [0, 0, 1, 1], [], []>} : vector<16x128xbf16>, vector<128x384xbf16>, vector<16x384xf32> -> vector<16x384xf32>
    %47 = vector.broadcast %44 : vector<1x384xf32> to vector<16x384xf32>
    %48 = arith.addf %46, %47 : vector<16x384xf32>
    %c0_27 = arith.constant 0 : index
    %c0_28 = arith.constant 0 : index
    %c0_29 = arith.constant 0 : index
    %49 = vector.load %arg10[%c0_27, %c0_28, %c0_29] : memref<2x1x128xf32, #tpu.memory_space<vmem>>, vector<1x1x128xf32>
    %50 = vector.shape_cast %49 : vector<1x1x128xf32> to vector<1x128xf32>
    %51 = vector.extract_strided_slice %48 {offsets = [0, 0], sizes = [16, 64], strides = [1, 1]} : vector<16x384xf32> to vector<16x64xf32>
    %52 = vector.shape_cast %51 : vector<16x64xf32> to vector<2x8x64xf32>
    %53 = vector.extract_strided_slice %48 {offsets = [0, 128], sizes = [16, 64], strides = [1, 1]} : vector<16x384xf32> to vector<16x64xf32>
    %54 = vector.shape_cast %53 : vector<16x64xf32> to vector<2x8x64xf32>
    %55 = vector.extract_strided_slice %48 {offsets = [0, 256], sizes = [16, 64], strides = [1, 1]} : vector<16x384xf32> to vector<16x64xf32>
    %56 = vector.shape_cast %55 : vector<16x64xf32> to vector<2x8x64xf32>
    %57 = arith.truncf %52 : vector<2x8x64xf32> to vector<2x8x64xbf16>
    %58 = arith.truncf %54 : vector<2x8x64xf32> to vector<2x8x64xbf16>
    "tpu.trace_start"() <{level = 10 : i32, message = "bqd,bkd->bqk"}> : () -> ()
    %cst_30 = arith.constant dense<0.000000e+00> : vector<2x8x8xf32>
    %59 = tpu.matmul %57, %58, %cst_30 {dimension_numbers = #tpu.dot_dimension_numbers<[2], [2], [1], [1], [0, 0, 0, 1, 1, 1], [0], [0]>} : vector<2x8x64xbf16>, vector<2x8x64xbf16>, vector<2x8x8xf32> -> vector<2x8x8xf32>
    "tpu.trace_stop"() : () -> ()
    %cst_31 = arith.constant 1.250000e-01 : f32
    %60 = vector.broadcast %cst_31 : f32 to vector<2x8x8xf32>
    %61 = arith.mulf %59, %60 : vector<2x8x8xf32>
    %62 = vector.broadcast %40 : vector<2x1x8xf32> to vector<2x8x8xf32>
    %63 = arith.addf %61, %62 : vector<2x8x8xf32>
    %cst_32 = arith.constant dense<0xFF800000> : vector<2x8xf32>
    %64 = vector.multi_reduction <maximumf>, %63, %cst_32 [2] : vector<2x8x8xf32> to vector<2x8xf32>
    %65 = vector.shape_cast %64 : vector<2x8xf32> to vector<2x8x1xf32>
    %66 = vector.broadcast %65 : vector<2x8x1xf32> to vector<2x8x8xf32>
    %67 = arith.subf %63, %66 : vector<2x8x8xf32>
    %68 = math.exp %67 : vector<2x8x8xf32>
    %cst_33 = arith.constant dense<0.000000e+00> : vector<2x8xf32>
    %69 = vector.multi_reduction <add>, %68, %cst_33 [2] : vector<2x8x8xf32> to vector<2x8xf32>
    %70 = vector.shape_cast %69 : vector<2x8xf32> to vector<2x8x1xf32>
    %71 = tpu.reciprocal %70 {approx = true} : vector<2x8x1xf32> -> vector<2x8x1xf32>
    %72 = vector.broadcast %71 : vector<2x8x1xf32> to vector<2x8x8xf32>
    %73 = arith.mulf %68, %72 : vector<2x8x8xf32>
    %74 = arith.truncf %73 : vector<2x8x8xf32> to vector<2x8x8xbf16>
    %75 = arith.truncf %56 : vector<2x8x64xf32> to vector<2x8x64xbf16>
    "tpu.trace_start"() <{level = 10 : i32, message = "bqk,bkd->bqd"}> : () -> ()
    %cst_34 = arith.constant dense<0.000000e+00> : vector<2x8x64xf32>
    %76 = tpu.matmul %74, %75, %cst_34 {dimension_numbers = #tpu.dot_dimension_numbers<[2], [1], [1], [2], [0, 0, 0, 1, 1, 2], [0], [0]>} : vector<2x8x8xbf16>, vector<2x8x64xbf16>, vector<2x8x64xf32> -> vector<2x8x64xf32>
    "tpu.trace_stop"() : () -> ()
    %77 = vector.shape_cast %76 : vector<2x8x64xf32> to vector<16x64xf32>
    %78 = arith.truncf %77 : vector<16x64xf32> to vector<16x64xbf16>
    %c0_35 = arith.constant 0 : index
    %c0_36 = arith.constant 0 : index
    %c0_37 = arith.constant 0 : index
    %c0_38 = arith.constant 0 : index
    %79 = vector.load %arg9[%c0_35, %c0_36, %c0_37, %c0_38] : memref<2x2x64x128xbf16, #tpu.memory_space<vmem>>, vector<1x1x64x128xbf16>
    %80 = vector.shape_cast %79 : vector<1x1x64x128xbf16> to vector<64x128xbf16>
    %cst_39 = arith.constant dense<0.000000e+00> : vector<16x128xf32>
    %81 = tpu.matmul %78, %80, %cst_39 {dimension_numbers = #tpu.dot_dimension_numbers<[1], [0], [0], [1], [0, 0, 1, 1], [], []>} : vector<16x64xbf16>, vector<64x128xbf16>, vector<16x128xf32> -> vector<16x128xf32>
    %82 = vector.broadcast %50 : vector<1x128xf32> to vector<16x128xf32>
    %83 = arith.addf %82, %81 : vector<16x128xf32>
    %84 = vector.extract_strided_slice %48 {offsets = [0, 64], sizes = [16, 64], strides = [1, 1]} : vector<16x384xf32> to vector<16x64xf32>
    %85 = vector.shape_cast %84 : vector<16x64xf32> to vector<2x8x64xf32>
    %86 = vector.extract_strided_slice %48 {offsets = [0, 192], sizes = [16, 64], strides = [1, 1]} : vector<16x384xf32> to vector<16x64xf32>
    %87 = vector.shape_cast %86 : vector<16x64xf32> to vector<2x8x64xf32>
    %88 = vector.extract_strided_slice %48 {offsets = [0, 320], sizes = [16, 64], strides = [1, 1]} : vector<16x384xf32> to vector<16x64xf32>
    %89 = vector.shape_cast %88 : vector<16x64xf32> to vector<2x8x64xf32>
    %90 = arith.truncf %85 : vector<2x8x64xf32> to vector<2x8x64xbf16>
    %91 = arith.truncf %87 : vector<2x8x64xf32> to vector<2x8x64xbf16>
    "tpu.trace_start"() <{level = 10 : i32, message = "bqd,bkd->bqk"}> : () -> ()
    %cst_40 = arith.constant dense<0.000000e+00> : vector<2x8x8xf32>
    %92 = tpu.matmul %90, %91, %cst_40 {dimension_numbers = #tpu.dot_dimension_numbers<[2], [2], [1], [1], [0, 0, 0, 1, 1, 1], [0], [0]>} : vector<2x8x64xbf16>, vector<2x8x64xbf16>, vector<2x8x8xf32> -> vector<2x8x8xf32>
    "tpu.trace_stop"() : () -> ()
    %cst_41 = arith.constant 1.250000e-01 : f32
    %93 = vector.broadcast %cst_41 : f32 to vector<2x8x8xf32>
    %94 = arith.mulf %92, %93 : vector<2x8x8xf32>
    %95 = vector.broadcast %40 : vector<2x1x8xf32> to vector<2x8x8xf32>
    %96 = arith.addf %94, %95 : vector<2x8x8xf32>
    %cst_42 = arith.constant dense<0xFF800000> : vector<2x8xf32>
    %97 = vector.multi_reduction <maximumf>, %96, %cst_42 [2] : vector<2x8x8xf32> to vector<2x8xf32>
    %98 = vector.shape_cast %97 : vector<2x8xf32> to vector<2x8x1xf32>
    %99 = vector.broadcast %98 : vector<2x8x1xf32> to vector<2x8x8xf32>
    %100 = arith.subf %96, %99 : vector<2x8x8xf32>
    %101 = math.exp %100 : vector<2x8x8xf32>
    %cst_43 = arith.constant dense<0.000000e+00> : vector<2x8xf32>
    %102 = vector.multi_reduction <add>, %101, %cst_43 [2] : vector<2x8x8xf32> to vector<2x8xf32>
    %103 = vector.shape_cast %102 : vector<2x8xf32> to vector<2x8x1xf32>
    %104 = tpu.reciprocal %103 {approx = true} : vector<2x8x1xf32> -> vector<2x8x1xf32>
    %105 = vector.broadcast %104 : vector<2x8x1xf32> to vector<2x8x8xf32>
    %106 = arith.mulf %101, %105 : vector<2x8x8xf32>
    %107 = arith.truncf %106 : vector<2x8x8xf32> to vector<2x8x8xbf16>
    %108 = arith.truncf %89 : vector<2x8x64xf32> to vector<2x8x64xbf16>
    "tpu.trace_start"() <{level = 10 : i32, message = "bqk,bkd->bqd"}> : () -> ()
    %cst_44 = arith.constant dense<0.000000e+00> : vector<2x8x64xf32>
    %109 = tpu.matmul %107, %108, %cst_44 {dimension_numbers = #tpu.dot_dimension_numbers<[2], [1], [1], [2], [0, 0, 0, 1, 1, 2], [0], [0]>} : vector<2x8x8xbf16>, vector<2x8x64xbf16>, vector<2x8x64xf32> -> vector<2x8x64xf32>
    "tpu.trace_stop"() : () -> ()
    %110 = vector.shape_cast %109 : vector<2x8x64xf32> to vector<16x64xf32>
    %111 = arith.truncf %110 : vector<16x64xf32> to vector<16x64xbf16>
    %c0_45 = arith.constant 0 : index
    %c1 = arith.constant 1 : index
    %c0_46 = arith.constant 0 : index
    %c0_47 = arith.constant 0 : index
    %112 = vector.load %arg9[%c0_45, %c1, %c0_46, %c0_47] : memref<2x2x64x128xbf16, #tpu.memory_space<vmem>>, vector<1x1x64x128xbf16>
    %113 = vector.shape_cast %112 : vector<1x1x64x128xbf16> to vector<64x128xbf16>
    %cst_48 = arith.constant dense<0.000000e+00> : vector<16x128xf32>
    %114 = tpu.matmul %111, %113, %cst_48 {dimension_numbers = #tpu.dot_dimension_numbers<[1], [0], [0], [1], [0, 0, 1, 1], [], []>} : vector<16x64xbf16>, vector<64x128xbf16>, vector<16x128xf32> -> vector<16x128xf32>
    %115 = arith.addf %83, %114 : vector<16x128xf32>
    %116 = arith.addf %115, %34 : vector<16x128xf32>
    %c0_49 = arith.constant 0 : index
    %c0_50 = arith.constant 0 : index
    %c0_51 = arith.constant 0 : index
    %117 = vector.load %arg11[%c0_49, %c0_50, %c0_51] : memref<2x1x128xf32, #tpu.memory_space<vmem>>, vector<1x1x128xf32>
    %118 = vector.shape_cast %117 : vector<1x1x128xf32> to vector<1x128xf32>
    %c0_52 = arith.constant 0 : index
    %c0_53 = arith.constant 0 : index
    %c0_54 = arith.constant 0 : index
    %119 = vector.load %arg12[%c0_52, %c0_53, %c0_54] : memref<2x1x128xf32, #tpu.memory_space<vmem>>, vector<1x1x128xf32>
    %120 = vector.shape_cast %119 : vector<1x1x128xf32> to vector<1x128xf32>
    %cst_55 = arith.constant dense<0.000000e+00> : vector<16xf32>
    %121 = vector.multi_reduction <add>, %116, %cst_55 [1] : vector<16x128xf32> to vector<16xf32>
    %122 = vector.shape_cast %121 : vector<16xf32> to vector<16x1xf32>
    %cst_56 = arith.constant 1.280000e+02 : f32
    %123 = vector.broadcast %cst_56 : f32 to vector<16x1xf32>
    %124 = arith.divf %122, %123 : vector<16x1xf32>
    %125 = vector.broadcast %124 : vector<16x1xf32> to vector<16x128xf32>
    %126 = arith.subf %116, %125 : vector<16x128xf32>
    %127 = arith.mulf %126, %126 : vector<16x128xf32>
    %cst_57 = arith.constant dense<0.000000e+00> : vector<16xf32>
    %128 = vector.multi_reduction <add>, %127, %cst_57 [1] : vector<16x128xf32> to vector<16xf32>
    %129 = vector.shape_cast %128 : vector<16xf32> to vector<16x1xf32>
    %cst_58 = arith.constant 1.280000e+02 : f32
    %130 = vector.broadcast %cst_58 : f32 to vector<16x1xf32>
    %131 = arith.divf %129, %130 : vector<16x1xf32>
    %cst_59 = arith.constant 9.99999996E-13 : f32
    %132 = vector.broadcast %cst_59 : f32 to vector<16x1xf32>
    %133 = arith.addf %131, %132 : vector<16x1xf32>
    %134 = math.rsqrt %133 : vector<16x1xf32>
    %135 = vector.broadcast %134 : vector<16x1xf32> to vector<16x128xf32>
    %136 = arith.mulf %126, %135 : vector<16x128xf32>
    %137 = vector.broadcast %118 : vector<1x128xf32> to vector<16x128xf32>
    %138 = arith.mulf %136, %137 : vector<16x128xf32>
    %139 = vector.broadcast %120 : vector<1x128xf32> to vector<16x128xf32>
    %140 = arith.addf %138, %139 : vector<16x128xf32>
    %c0_60 = arith.constant 0 : index
    %c0_61 = arith.constant 0 : index
    %c0_62 = arith.constant 0 : index
    %141 = vector.load %arg13[%c0_60, %c0_61, %c0_62] : memref<2x128x256xbf16, #tpu.memory_space<vmem>>, vector<1x128x256xbf16>
    %142 = vector.shape_cast %141 : vector<1x128x256xbf16> to vector<128x256xbf16>
    %c0_63 = arith.constant 0 : index
    %c0_64 = arith.constant 0 : index
    %c0_65 = arith.constant 0 : index
    %143 = vector.load %arg14[%c0_63, %c0_64, %c0_65] : memref<2x1x256xf32, #tpu.memory_space<vmem>>, vector<1x1x256xf32>
    %144 = vector.shape_cast %143 : vector<1x1x256xf32> to vector<1x256xf32>
    %145 = arith.truncf %140 : vector<16x128xf32> to vector<16x128xbf16>
    %cst_66 = arith.constant dense<0.000000e+00> : vector<16x256xf32>
    %146 = tpu.matmul %145, %142, %cst_66 {dimension_numbers = #tpu.dot_dimension_numbers<[1], [0], [0], [1], [0, 0, 1, 1], [], []>} : vector<16x128xbf16>, vector<128x256xbf16>, vector<16x256xf32> -> vector<16x256xf32>
    %147 = vector.broadcast %144 : vector<1x256xf32> to vector<16x256xf32>
    %148 = arith.addf %146, %147 : vector<16x256xf32>
    %cst_67 = arith.constant 5.000000e-01 : f32
    %149 = vector.broadcast %cst_67 : f32 to vector<16x256xf32>
    %150 = arith.mulf %149, %148 : vector<16x256xf32>
    %cst_68 = arith.constant 4.471500e-02 : f32
    %151 = vector.broadcast %cst_68 : f32 to vector<16x256xf32>
    %152 = arith.mulf %151, %148 : vector<16x256xf32>
    %153 = arith.mulf %152, %148 : vector<16x256xf32>
    %154 = arith.mulf %153, %148 : vector<16x256xf32>
    %155 = arith.addf %148, %154 : vector<16x256xf32>
    %cst_69 = arith.constant 0.797884583 : f32
    %156 = vector.broadcast %cst_69 : f32 to vector<16x256xf32>
    %157 = arith.mulf %156, %155 : vector<16x256xf32>
    %158 = math.tanh %157 : vector<16x256xf32>
    %cst_70 = arith.constant 1.000000e+00 : f32
    %159 = vector.broadcast %cst_70 : f32 to vector<16x256xf32>
    %160 = arith.addf %159, %158 : vector<16x256xf32>
    %161 = arith.mulf %150, %160 : vector<16x256xf32>
    %c0_71 = arith.constant 0 : index
    %c0_72 = arith.constant 0 : index
    %c0_73 = arith.constant 0 : index
    %162 = vector.load %arg15[%c0_71, %c0_72, %c0_73] : memref<2x256x128xbf16, #tpu.memory_space<vmem>>, vector<1x256x128xbf16>
    %163 = vector.shape_cast %162 : vector<1x256x128xbf16> to vector<256x128xbf16>
    %c0_74 = arith.constant 0 : index
    %c0_75 = arith.constant 0 : index
    %c0_76 = arith.constant 0 : index
    %164 = vector.load %arg16[%c0_74, %c0_75, %c0_76] : memref<2x1x128xf32, #tpu.memory_space<vmem>>, vector<1x1x128xf32>
    %165 = vector.shape_cast %164 : vector<1x1x128xf32> to vector<1x128xf32>
    %166 = arith.truncf %161 : vector<16x256xf32> to vector<16x256xbf16>
    %cst_77 = arith.constant dense<0.000000e+00> : vector<16x128xf32>
    %167 = tpu.matmul %166, %163, %cst_77 {dimension_numbers = #tpu.dot_dimension_numbers<[1], [0], [0], [1], [0, 0, 1, 1], [], []>} : vector<16x256xbf16>, vector<256x128xbf16>, vector<16x128xf32> -> vector<16x128xf32>
    %168 = vector.broadcast %165 : vector<1x128xf32> to vector<16x128xf32>
    %169 = arith.addf %167, %168 : vector<16x128xf32>
    %170 = arith.addf %169, %140 : vector<16x128xf32>
    %c0_78 = arith.constant 0 : index
    %c0_79 = arith.constant 0 : index
    %c0_80 = arith.constant 0 : index
    %171 = vector.load %arg17[%c0_78, %c0_79, %c0_80] : memref<2x1x128xf32, #tpu.memory_space<vmem>>, vector<1x1x128xf32>
    %172 = vector.shape_cast %171 : vector<1x1x128xf32> to vector<1x128xf32>
    %c0_81 = arith.constant 0 : index
    %c0_82 = arith.constant 0 : index
    %c0_83 = arith.constant 0 : index
    %173 = vector.load %arg18[%c0_81, %c0_82, %c0_83] : memref<2x1x128xf32, #tpu.memory_space<vmem>>, vector<1x1x128xf32>
    %174 = vector.shape_cast %173 : vector<1x1x128xf32> to vector<1x128xf32>
    %cst_84 = arith.constant dense<0.000000e+00> : vector<16xf32>
    %175 = vector.multi_reduction <add>, %170, %cst_84 [1] : vector<16x128xf32> to vector<16xf32>
    %176 = vector.shape_cast %175 : vector<16xf32> to vector<16x1xf32>
    %cst_85 = arith.constant 1.280000e+02 : f32
    %177 = vector.broadcast %cst_85 : f32 to vector<16x1xf32>
    %178 = arith.divf %176, %177 : vector<16x1xf32>
    %179 = vector.broadcast %178 : vector<16x1xf32> to vector<16x128xf32>
    %180 = arith.subf %170, %179 : vector<16x128xf32>
    %181 = arith.mulf %180, %180 : vector<16x128xf32>
    %cst_86 = arith.constant dense<0.000000e+00> : vector<16xf32>
    %182 = vector.multi_reduction <add>, %181, %cst_86 [1] : vector<16x128xf32> to vector<16xf32>
    %183 = vector.shape_cast %182 : vector<16xf32> to vector<16x1xf32>
    %cst_87 = arith.constant 1.280000e+02 : f32
    %184 = vector.broadcast %cst_87 : f32 to vector<16x1xf32>
    %185 = arith.divf %183, %184 : vector<16x1xf32>
    %cst_88 = arith.constant 9.99999996E-13 : f32
    %186 = vector.broadcast %cst_88 : f32 to vector<16x1xf32>
    %187 = arith.addf %185, %186 : vector<16x1xf32>
    %188 = math.rsqrt %187 : vector<16x1xf32>
    %189 = vector.broadcast %188 : vector<16x1xf32> to vector<16x128xf32>
    %190 = arith.mulf %180, %189 : vector<16x128xf32>
    %191 = vector.broadcast %172 : vector<1x128xf32> to vector<16x128xf32>
    %192 = arith.mulf %190, %191 : vector<16x128xf32>
    %193 = vector.broadcast %174 : vector<1x128xf32> to vector<16x128xf32>
    %194 = arith.addf %192, %193 : vector<16x128xf32>
    %c1_89 = arith.constant 1 : index
    %c0_90 = arith.constant 0 : index
    %c0_91 = arith.constant 0 : index
    %195 = vector.load %arg7[%c1_89, %c0_90, %c0_91] : memref<2x128x384xbf16, #tpu.memory_space<vmem>>, vector<1x128x384xbf16>
    %196 = vector.shape_cast %195 : vector<1x128x384xbf16> to vector<128x384xbf16>
    %c1_92 = arith.constant 1 : index
    %c0_93 = arith.constant 0 : index
    %c0_94 = arith.constant 0 : index
    %197 = vector.load %arg8[%c1_92, %c0_93, %c0_94] : memref<2x1x384xf32, #tpu.memory_space<vmem>>, vector<1x1x384xf32>
    %198 = vector.shape_cast %197 : vector<1x1x384xf32> to vector<1x384xf32>
    %199 = arith.truncf %194 : vector<16x128xf32> to vector<16x128xbf16>
    %cst_95 = arith.constant dense<0.000000e+00> : vector<16x384xf32>
    %200 = tpu.matmul %199, %196, %cst_95 {dimension_numbers = #tpu.dot_dimension_numbers<[1], [0], [0], [1], [0, 0, 1, 1], [], []>} : vector<16x128xbf16>, vector<128x384xbf16>, vector<16x384xf32> -> vector<16x384xf32>
    %201 = vector.broadcast %198 : vector<1x384xf32> to vector<16x384xf32>
    %202 = arith.addf %200, %201 : vector<16x384xf32>
    %c1_96 = arith.constant 1 : index
    %c0_97 = arith.constant 0 : index
    %c0_98 = arith.constant 0 : index
    %203 = vector.load %arg10[%c1_96, %c0_97, %c0_98] : memref<2x1x128xf32, #tpu.memory_space<vmem>>, vector<1x1x128xf32>
    %204 = vector.shape_cast %203 : vector<1x1x128xf32> to vector<1x128xf32>
    %205 = vector.extract_strided_slice %202 {offsets = [0, 0], sizes = [16, 64], strides = [1, 1]} : vector<16x384xf32> to vector<16x64xf32>
    %206 = vector.shape_cast %205 : vector<16x64xf32> to vector<2x8x64xf32>
    %207 = vector.extract_strided_slice %202 {offsets = [0, 128], sizes = [16, 64], strides = [1, 1]} : vector<16x384xf32> to vector<16x64xf32>
    %208 = vector.shape_cast %207 : vector<16x64xf32> to vector<2x8x64xf32>
    %209 = vector.extract_strided_slice %202 {offsets = [0, 256], sizes = [16, 64], strides = [1, 1]} : vector<16x384xf32> to vector<16x64xf32>
    %210 = vector.shape_cast %209 : vector<16x64xf32> to vector<2x8x64xf32>
    %211 = arith.truncf %206 : vector<2x8x64xf32> to vector<2x8x64xbf16>
    %212 = arith.truncf %208 : vector<2x8x64xf32> to vector<2x8x64xbf16>
    "tpu.trace_start"() <{level = 10 : i32, message = "bqd,bkd->bqk"}> : () -> ()
    %cst_99 = arith.constant dense<0.000000e+00> : vector<2x8x8xf32>
    %213 = tpu.matmul %211, %212, %cst_99 {dimension_numbers = #tpu.dot_dimension_numbers<[2], [2], [1], [1], [0, 0, 0, 1, 1, 1], [0], [0]>} : vector<2x8x64xbf16>, vector<2x8x64xbf16>, vector<2x8x8xf32> -> vector<2x8x8xf32>
    "tpu.trace_stop"() : () -> ()
    %cst_100 = arith.constant 1.250000e-01 : f32
    %214 = vector.broadcast %cst_100 : f32 to vector<2x8x8xf32>
    %215 = arith.mulf %213, %214 : vector<2x8x8xf32>
    %216 = vector.broadcast %40 : vector<2x1x8xf32> to vector<2x8x8xf32>
    %217 = arith.addf %215, %216 : vector<2x8x8xf32>
    %cst_101 = arith.constant dense<0xFF800000> : vector<2x8xf32>
    %218 = vector.multi_reduction <maximumf>, %217, %cst_101 [2] : vector<2x8x8xf32> to vector<2x8xf32>
    %219 = vector.shape_cast %218 : vector<2x8xf32> to vector<2x8x1xf32>
    %220 = vector.broadcast %219 : vector<2x8x1xf32> to vector<2x8x8xf32>
    %221 = arith.subf %217, %220 : vector<2x8x8xf32>
    %222 = math.exp %221 : vector<2x8x8xf32>
    %cst_102 = arith.constant dense<0.000000e+00> : vector<2x8xf32>
    %223 = vector.multi_reduction <add>, %222, %cst_102 [2] : vector<2x8x8xf32> to vector<2x8xf32>
    %224 = vector.shape_cast %223 : vector<2x8xf32> to vector<2x8x1xf32>
    %225 = tpu.reciprocal %224 {approx = true} : vector<2x8x1xf32> -> vector<2x8x1xf32>
    %226 = vector.broadcast %225 : vector<2x8x1xf32> to vector<2x8x8xf32>
    %227 = arith.mulf %222, %226 : vector<2x8x8xf32>
    %228 = arith.truncf %227 : vector<2x8x8xf32> to vector<2x8x8xbf16>
    %229 = arith.truncf %210 : vector<2x8x64xf32> to vector<2x8x64xbf16>
    "tpu.trace_start"() <{level = 10 : i32, message = "bqk,bkd->bqd"}> : () -> ()
    %cst_103 = arith.constant dense<0.000000e+00> : vector<2x8x64xf32>
    %230 = tpu.matmul %228, %229, %cst_103 {dimension_numbers = #tpu.dot_dimension_numbers<[2], [1], [1], [2], [0, 0, 0, 1, 1, 2], [0], [0]>} : vector<2x8x8xbf16>, vector<2x8x64xbf16>, vector<2x8x64xf32> -> vector<2x8x64xf32>
    "tpu.trace_stop"() : () -> ()
    %231 = vector.shape_cast %230 : vector<2x8x64xf32> to vector<16x64xf32>
    %232 = arith.truncf %231 : vector<16x64xf32> to vector<16x64xbf16>
    %c1_104 = arith.constant 1 : index
    %c0_105 = arith.constant 0 : index
    %c0_106 = arith.constant 0 : index
    %c0_107 = arith.constant 0 : index
    %233 = vector.load %arg9[%c1_104, %c0_105, %c0_106, %c0_107] : memref<2x2x64x128xbf16, #tpu.memory_space<vmem>>, vector<1x1x64x128xbf16>
    %234 = vector.shape_cast %233 : vector<1x1x64x128xbf16> to vector<64x128xbf16>
    %cst_108 = arith.constant dense<0.000000e+00> : vector<16x128xf32>
    %235 = tpu.matmul %232, %234, %cst_108 {dimension_numbers = #tpu.dot_dimension_numbers<[1], [0], [0], [1], [0, 0, 1, 1], [], []>} : vector<16x64xbf16>, vector<64x128xbf16>, vector<16x128xf32> -> vector<16x128xf32>
    %236 = vector.broadcast %204 : vector<1x128xf32> to vector<16x128xf32>
    %237 = arith.addf %236, %235 : vector<16x128xf32>
    %238 = vector.extract_strided_slice %202 {offsets = [0, 64], sizes = [16, 64], strides = [1, 1]} : vector<16x384xf32> to vector<16x64xf32>
    %239 = vector.shape_cast %238 : vector<16x64xf32> to vector<2x8x64xf32>
    %240 = vector.extract_strided_slice %202 {offsets = [0, 192], sizes = [16, 64], strides = [1, 1]} : vector<16x384xf32> to vector<16x64xf32>
    %241 = vector.shape_cast %240 : vector<16x64xf32> to vector<2x8x64xf32>
    %242 = vector.extract_strided_slice %202 {offsets = [0, 320], sizes = [16, 64], strides = [1, 1]} : vector<16x384xf32> to vector<16x64xf32>
    %243 = vector.shape_cast %242 : vector<16x64xf32> to vector<2x8x64xf32>
    %244 = arith.truncf %239 : vector<2x8x64xf32> to vector<2x8x64xbf16>
    %245 = arith.truncf %241 : vector<2x8x64xf32> to vector<2x8x64xbf16>
    "tpu.trace_start"() <{level = 10 : i32, message = "bqd,bkd->bqk"}> : () -> ()
    %cst_109 = arith.constant dense<0.000000e+00> : vector<2x8x8xf32>
    %246 = tpu.matmul %244, %245, %cst_109 {dimension_numbers = #tpu.dot_dimension_numbers<[2], [2], [1], [1], [0, 0, 0, 1, 1, 1], [0], [0]>} : vector<2x8x64xbf16>, vector<2x8x64xbf16>, vector<2x8x8xf32> -> vector<2x8x8xf32>
    "tpu.trace_stop"() : () -> ()
    %cst_110 = arith.constant 1.250000e-01 : f32
    %247 = vector.broadcast %cst_110 : f32 to vector<2x8x8xf32>
    %248 = arith.mulf %246, %247 : vector<2x8x8xf32>
    %249 = vector.broadcast %40 : vector<2x1x8xf32> to vector<2x8x8xf32>
    %250 = arith.addf %248, %249 : vector<2x8x8xf32>
    %cst_111 = arith.constant dense<0xFF800000> : vector<2x8xf32>
    %251 = vector.multi_reduction <maximumf>, %250, %cst_111 [2] : vector<2x8x8xf32> to vector<2x8xf32>
    %252 = vector.shape_cast %251 : vector<2x8xf32> to vector<2x8x1xf32>
    %253 = vector.broadcast %252 : vector<2x8x1xf32> to vector<2x8x8xf32>
    %254 = arith.subf %250, %253 : vector<2x8x8xf32>
    %255 = math.exp %254 : vector<2x8x8xf32>
    %cst_112 = arith.constant dense<0.000000e+00> : vector<2x8xf32>
    %256 = vector.multi_reduction <add>, %255, %cst_112 [2] : vector<2x8x8xf32> to vector<2x8xf32>
    %257 = vector.shape_cast %256 : vector<2x8xf32> to vector<2x8x1xf32>
    %258 = tpu.reciprocal %257 {approx = true} : vector<2x8x1xf32> -> vector<2x8x1xf32>
    %259 = vector.broadcast %258 : vector<2x8x1xf32> to vector<2x8x8xf32>
    %260 = arith.mulf %255, %259 : vector<2x8x8xf32>
    %261 = arith.truncf %260 : vector<2x8x8xf32> to vector<2x8x8xbf16>
    %262 = arith.truncf %243 : vector<2x8x64xf32> to vector<2x8x64xbf16>
    "tpu.trace_start"() <{level = 10 : i32, message = "bqk,bkd->bqd"}> : () -> ()
    %cst_113 = arith.constant dense<0.000000e+00> : vector<2x8x64xf32>
    %263 = tpu.matmul %261, %262, %cst_113 {dimension_numbers = #tpu.dot_dimension_numbers<[2], [1], [1], [2], [0, 0, 0, 1, 1, 2], [0], [0]>} : vector<2x8x8xbf16>, vector<2x8x64xbf16>, vector<2x8x64xf32> -> vector<2x8x64xf32>
    "tpu.trace_stop"() : () -> ()
    %264 = vector.shape_cast %263 : vector<2x8x64xf32> to vector<16x64xf32>
    %265 = arith.truncf %264 : vector<16x64xf32> to vector<16x64xbf16>
    %c1_114 = arith.constant 1 : index
    %c1_115 = arith.constant 1 : index
    %c0_116 = arith.constant 0 : index
    %c0_117 = arith.constant 0 : index
    %266 = vector.load %arg9[%c1_114, %c1_115, %c0_116, %c0_117] : memref<2x2x64x128xbf16, #tpu.memory_space<vmem>>, vector<1x1x64x128xbf16>
    %267 = vector.shape_cast %266 : vector<1x1x64x128xbf16> to vector<64x128xbf16>
    %cst_118 = arith.constant dense<0.000000e+00> : vector<16x128xf32>
    %268 = tpu.matmul %265, %267, %cst_118 {dimension_numbers = #tpu.dot_dimension_numbers<[1], [0], [0], [1], [0, 0, 1, 1], [], []>} : vector<16x64xbf16>, vector<64x128xbf16>, vector<16x128xf32> -> vector<16x128xf32>
    %269 = arith.addf %237, %268 : vector<16x128xf32>
    %270 = arith.addf %269, %194 : vector<16x128xf32>
    %c1_119 = arith.constant 1 : index
    %c0_120 = arith.constant 0 : index
    %c0_121 = arith.constant 0 : index
    %271 = vector.load %arg11[%c1_119, %c0_120, %c0_121] : memref<2x1x128xf32, #tpu.memory_space<vmem>>, vector<1x1x128xf32>
    %272 = vector.shape_cast %271 : vector<1x1x128xf32> to vector<1x128xf32>
    %c1_122 = arith.constant 1 : index
    %c0_123 = arith.constant 0 : index
    %c0_124 = arith.constant 0 : index
    %273 = vector.load %arg12[%c1_122, %c0_123, %c0_124] : memref<2x1x128xf32, #tpu.memory_space<vmem>>, vector<1x1x128xf32>
    %274 = vector.shape_cast %273 : vector<1x1x128xf32> to vector<1x128xf32>
    %cst_125 = arith.constant dense<0.000000e+00> : vector<16xf32>
    %275 = vector.multi_reduction <add>, %270, %cst_125 [1] : vector<16x128xf32> to vector<16xf32>
    %276 = vector.shape_cast %275 : vector<16xf32> to vector<16x1xf32>
    %cst_126 = arith.constant 1.280000e+02 : f32
    %277 = vector.broadcast %cst_126 : f32 to vector<16x1xf32>
    %278 = arith.divf %276, %277 : vector<16x1xf32>
    %279 = vector.broadcast %278 : vector<16x1xf32> to vector<16x128xf32>
    %280 = arith.subf %270, %279 : vector<16x128xf32>
    %281 = arith.mulf %280, %280 : vector<16x128xf32>
    %cst_127 = arith.constant dense<0.000000e+00> : vector<16xf32>
    %282 = vector.multi_reduction <add>, %281, %cst_127 [1] : vector<16x128xf32> to vector<16xf32>
    %283 = vector.shape_cast %282 : vector<16xf32> to vector<16x1xf32>
    %cst_128 = arith.constant 1.280000e+02 : f32
    %284 = vector.broadcast %cst_128 : f32 to vector<16x1xf32>
    %285 = arith.divf %283, %284 : vector<16x1xf32>
    %cst_129 = arith.constant 9.99999996E-13 : f32
    %286 = vector.broadcast %cst_129 : f32 to vector<16x1xf32>
    %287 = arith.addf %285, %286 : vector<16x1xf32>
    %288 = math.rsqrt %287 : vector<16x1xf32>
    %289 = vector.broadcast %288 : vector<16x1xf32> to vector<16x128xf32>
    %290 = arith.mulf %280, %289 : vector<16x128xf32>
    %291 = vector.broadcast %272 : vector<1x128xf32> to vector<16x128xf32>
    %292 = arith.mulf %290, %291 : vector<16x128xf32>
    %293 = vector.broadcast %274 : vector<1x128xf32> to vector<16x128xf32>
    %294 = arith.addf %292, %293 : vector<16x128xf32>
    %c1_130 = arith.constant 1 : index
    %c0_131 = arith.constant 0 : index
    %c0_132 = arith.constant 0 : index
    %295 = vector.load %arg13[%c1_130, %c0_131, %c0_132] : memref<2x128x256xbf16, #tpu.memory_space<vmem>>, vector<1x128x256xbf16>
    %296 = vector.shape_cast %295 : vector<1x128x256xbf16> to vector<128x256xbf16>
    %c1_133 = arith.constant 1 : index
    %c0_134 = arith.constant 0 : index
    %c0_135 = arith.constant 0 : index
    %297 = vector.load %arg14[%c1_133, %c0_134, %c0_135] : memref<2x1x256xf32, #tpu.memory_space<vmem>>, vector<1x1x256xf32>
    %298 = vector.shape_cast %297 : vector<1x1x256xf32> to vector<1x256xf32>
    %299 = arith.truncf %294 : vector<16x128xf32> to vector<16x128xbf16>
    %cst_136 = arith.constant dense<0.000000e+00> : vector<16x256xf32>
    %300 = tpu.matmul %299, %296, %cst_136 {dimension_numbers = #tpu.dot_dimension_numbers<[1], [0], [0], [1], [0, 0, 1, 1], [], []>} : vector<16x128xbf16>, vector<128x256xbf16>, vector<16x256xf32> -> vector<16x256xf32>
    %301 = vector.broadcast %298 : vector<1x256xf32> to vector<16x256xf32>
    %302 = arith.addf %300, %301 : vector<16x256xf32>
    %cst_137 = arith.constant 5.000000e-01 : f32
    %303 = vector.broadcast %cst_137 : f32 to vector<16x256xf32>
    %304 = arith.mulf %303, %302 : vector<16x256xf32>
    %cst_138 = arith.constant 4.471500e-02 : f32
    %305 = vector.broadcast %cst_138 : f32 to vector<16x256xf32>
    %306 = arith.mulf %305, %302 : vector<16x256xf32>
    %307 = arith.mulf %306, %302 : vector<16x256xf32>
    %308 = arith.mulf %307, %302 : vector<16x256xf32>
    %309 = arith.addf %302, %308 : vector<16x256xf32>
    %cst_139 = arith.constant 0.797884583 : f32
    %310 = vector.broadcast %cst_139 : f32 to vector<16x256xf32>
    %311 = arith.mulf %310, %309 : vector<16x256xf32>
    %312 = math.tanh %311 : vector<16x256xf32>
    %cst_140 = arith.constant 1.000000e+00 : f32
    %313 = vector.broadcast %cst_140 : f32 to vector<16x256xf32>
    %314 = arith.addf %313, %312 : vector<16x256xf32>
    %315 = arith.mulf %304, %314 : vector<16x256xf32>
    %c1_141 = arith.constant 1 : index
    %c0_142 = arith.constant 0 : index
    %c0_143 = arith.constant 0 : index
    %316 = vector.load %arg15[%c1_141, %c0_142, %c0_143] : memref<2x256x128xbf16, #tpu.memory_space<vmem>>, vector<1x256x128xbf16>
    %317 = vector.shape_cast %316 : vector<1x256x128xbf16> to vector<256x128xbf16>
    %c1_144 = arith.constant 1 : index
    %c0_145 = arith.constant 0 : index
    %c0_146 = arith.constant 0 : index
    %318 = vector.load %arg16[%c1_144, %c0_145, %c0_146] : memref<2x1x128xf32, #tpu.memory_space<vmem>>, vector<1x1x128xf32>
    %319 = vector.shape_cast %318 : vector<1x1x128xf32> to vector<1x128xf32>
    %320 = arith.truncf %315 : vector<16x256xf32> to vector<16x256xbf16>
    %cst_147 = arith.constant dense<0.000000e+00> : vector<16x128xf32>
    %321 = tpu.matmul %320, %317, %cst_147 {dimension_numbers = #tpu.dot_dimension_numbers<[1], [0], [0], [1], [0, 0, 1, 1], [], []>} : vector<16x256xbf16>, vector<256x128xbf16>, vector<16x128xf32> -> vector<16x128xf32>
    %322 = vector.broadcast %319 : vector<1x128xf32> to vector<16x128xf32>
    %323 = arith.addf %321, %322 : vector<16x128xf32>
    %324 = arith.addf %323, %294 : vector<16x128xf32>
    %c1_148 = arith.constant 1 : index
    %c0_149 = arith.constant 0 : index
    %c0_150 = arith.constant 0 : index
    %325 = vector.load %arg17[%c1_148, %c0_149, %c0_150] : memref<2x1x128xf32, #tpu.memory_space<vmem>>, vector<1x1x128xf32>
    %326 = vector.shape_cast %325 : vector<1x1x128xf32> to vector<1x128xf32>
    %c1_151 = arith.constant 1 : index
    %c0_152 = arith.constant 0 : index
    %c0_153 = arith.constant 0 : index
    %327 = vector.load %arg18[%c1_151, %c0_152, %c0_153] : memref<2x1x128xf32, #tpu.memory_space<vmem>>, vector<1x1x128xf32>
    %328 = vector.shape_cast %327 : vector<1x1x128xf32> to vector<1x128xf32>
    %cst_154 = arith.constant dense<0.000000e+00> : vector<16xf32>
    %329 = vector.multi_reduction <add>, %324, %cst_154 [1] : vector<16x128xf32> to vector<16xf32>
    %330 = vector.shape_cast %329 : vector<16xf32> to vector<16x1xf32>
    %cst_155 = arith.constant 1.280000e+02 : f32
    %331 = vector.broadcast %cst_155 : f32 to vector<16x1xf32>
    %332 = arith.divf %330, %331 : vector<16x1xf32>
    %333 = vector.broadcast %332 : vector<16x1xf32> to vector<16x128xf32>
    %334 = arith.subf %324, %333 : vector<16x128xf32>
    %335 = arith.mulf %334, %334 : vector<16x128xf32>
    %cst_156 = arith.constant dense<0.000000e+00> : vector<16xf32>
    %336 = vector.multi_reduction <add>, %335, %cst_156 [1] : vector<16x128xf32> to vector<16xf32>
    %337 = vector.shape_cast %336 : vector<16xf32> to vector<16x1xf32>
    %cst_157 = arith.constant 1.280000e+02 : f32
    %338 = vector.broadcast %cst_157 : f32 to vector<16x1xf32>
    %339 = arith.divf %337, %338 : vector<16x1xf32>
    %cst_158 = arith.constant 9.99999996E-13 : f32
    %340 = vector.broadcast %cst_158 : f32 to vector<16x1xf32>
    %341 = arith.addf %339, %340 : vector<16x1xf32>
    %342 = math.rsqrt %341 : vector<16x1xf32>
    %343 = vector.broadcast %342 : vector<16x1xf32> to vector<16x128xf32>
    %344 = arith.mulf %334, %343 : vector<16x128xf32>
    %345 = vector.broadcast %326 : vector<1x128xf32> to vector<16x128xf32>
    %346 = arith.mulf %344, %345 : vector<16x128xf32>
    %347 = vector.broadcast %328 : vector<1x128xf32> to vector<16x128xf32>
    %348 = arith.addf %346, %347 : vector<16x128xf32>
    %349 = vector.shape_cast %348 : vector<16x128xf32> to vector<2x8x128xf32>
    %350 = vector.extract_strided_slice %349 {offsets = [0, 0, 0], sizes = [2, 1, 128], strides = [1, 1, 1]} : vector<2x8x128xf32> to vector<2x1x128xf32>
    %351 = vector.shape_cast %350 : vector<2x1x128xf32> to vector<2x128xf32>
    %c0_159 = arith.constant 0 : index
    %c0_160 = arith.constant 0 : index
    %352 = vector.load %arg19[%c0_159, %c0_160] : memref<128x128xbf16, #tpu.memory_space<vmem>>, vector<128x128xbf16>
    %c0_161 = arith.constant 0 : index
    %c0_162 = arith.constant 0 : index
    %353 = vector.load %arg20[%c0_161, %c0_162] : memref<1x128xf32, #tpu.memory_space<vmem>>, vector<1x128xf32>
    %354 = arith.truncf %351 : vector<2x128xf32> to vector<2x128xbf16>
    %cst_163 = arith.constant dense<0.000000e+00> : vector<2x128xf32>
    %355 = tpu.matmul %354, %352, %cst_163 {dimension_numbers = #tpu.dot_dimension_numbers<[1], [0], [0], [1], [0, 0, 1, 1], [], []>} : vector<2x128xbf16>, vector<128x128xbf16>, vector<2x128xf32> -> vector<2x128xf32>
    %356 = vector.broadcast %353 : vector<1x128xf32> to vector<2x128xf32>
    %357 = arith.addf %355, %356 : vector<2x128xf32>
    %358 = math.tanh %357 : vector<2x128xf32>
    %c0_164 = arith.constant 0 : index
    %c0_165 = arith.constant 0 : index
    %359 = vector.load %arg21[%c0_164, %c0_165] : memref<1x128xf32, #tpu.memory_space<vmem>>, vector<1x128xf32>
    %360 = vector.broadcast %359 : vector<1x128xf32> to vector<2x128xf32>
    %361 = arith.mulf %358, %360 : vector<2x128xf32>
    %cst_166 = arith.constant dense<0.000000e+00> : vector<2xf32>
    %362 = vector.multi_reduction <add>, %361, %cst_166 [1] : vector<2x128xf32> to vector<2xf32>
    %363 = vector.shape_cast %362 : vector<2xf32> to vector<2x1xf32>
    %c0_167 = arith.constant 0 : index
    %c0_168 = arith.constant 0 : index
    %364 = vector.load %arg22[%c0_167, %c0_168] : memref<1x1xf32, #tpu.memory_space<vmem>>, vector<1x1xf32>
    %365 = vector.broadcast %364 : vector<1x1xf32> to vector<2x1xf32>
    %366 = arith.addf %363, %365 : vector<2x1xf32>
    %c0_169 = arith.constant 0 : index
    %c0_170 = arith.constant 0 : index
    %367 = vector.load %arg23[%c0_169, %c0_170] : memref<2x1xf32, #tpu.memory_space<vmem>>, vector<2x1xf32>
    tpu.vector_store %arg23[%c0_169, %c0_170], %366 {strides = array<i32>} : memref<2x1xf32, #tpu.memory_space<vmem>>, vector<2x1xf32>,
    return
  }
}

</mosaic_0001>

<llo_original>
// kernel: tpu_custom_call.1
$region0: #{tpu_custom_call.1}
  #allocation0 [shape = 'u32[]', space=smem, size = 0x4, offset = 0x4, fixed_abs, tag = 'smem constant byte address 0x4 - core index']
  #allocation1 [shape = 'u32[144,128]{1,0:T(1,128)}', space=vmem, size = 0x12000, scoped, tag = 'internal scratch']
  #allocation2 [shape = 'f32[1,1]{1,0:T(1,128)S(1)}', space=vmem, size = 0x200, scoped, tag = 'scoped memory for tpu_custom_call.1']
  %s0 = inlined_call_operand.vmem [shape: s32[16,1], index: 0, kind: input, shape index: {}]
  %s1 = inlined_call_operand.vmem [shape: f32[2,8], index: 1, kind: input, shape index: {}]
  %s2 = inlined_call_operand.hbm [shape: f32[64,128], index: 2, kind: input, shape index: {}]
  %s3 = inlined_call_operand.vmem [shape: f32[16,128], index: 3, kind: input, shape index: {}]
  %s4 = inlined_call_operand.hbm [shape: f32[1,128], index: 4, kind: input, shape index: {}]
  %s5 = inlined_call_operand.hbm [shape: f32[1,128], index: 5, kind: input, shape index: {}]
  %s6 = inlined_call_operand.hbm [shape: f32[1,128], index: 6, kind: input, shape index: {}]
  %s7 = inlined_call_operand.hbm [shape: bf16[2,128,384], index: 7, kind: input, shape index: {}]
  %s8 = inlined_call_operand.vmem [shape: f32[2,1,384], index: 8, kind: input, shape index: {}]
  %s9 = inlined_call_operand.hbm [shape: bf16[2,2,64,128], index: 9, kind: input, shape index: {}]
  %s10 = inlined_call_operand.hbm [shape: f32[2,1,128], index: 10, kind: input, shape index: {}]
  %s11 = inlined_call_operand.hbm [shape: f32[2,1,128], index: 11, kind: input, shape index: {}]
  %s12 = inlined_call_operand.hbm [shape: f32[2,1,128], index: 12, kind: input, shape index: {}]
  %s13 = inlined_call_operand.hbm [shape: bf16[2,128,256], index: 13, kind: input, shape index: {}]
  %s14 = inlined_call_operand.vmem [shape: f32[2,1,256], index: 14, kind: input, shape index: {}]
  %s15 = inlined_call_operand.hbm [shape: bf16[2,256,128], index: 15, kind: input, shape index: {}]
  %s16 = inlined_call_operand.hbm [shape: f32[2,1,128], index: 16, kind: input, shape index: {}]
  %s17 = inlined_call_operand.hbm [shape: f32[2,1,128], index: 17, kind: input, shape index: {}]
  %s18 = inlined_call_operand.hbm [shape: f32[2,1,128], index: 18, kind: input, shape index: {}]
  %s19 = inlined_call_operand.vmem [shape: bf16[128,128], index: 19, kind: input, shape index: {}]
  %s20 = inlined_call_operand.vmem [shape: f32[1,128], index: 20, kind: input, shape index: {}]
  %s21 = inlined_call_operand.vmem [shape: f32[1,128], index: 21, kind: input, shape index: {}]
  %s22 = inlined_call_operand.<no memory space> [shape: f32[1,1], index: 22, kind: input, shape index: {}]
  %s23 = inlined_call_operand.vmem [shape: f32[2,1], index: 23, kind: output, shape index: {}]
  %s24 = sld [smem:[#allocation0]]
  $region158: #{tpu_custom_call.1} parent=0
    _
  %s26 = ssub.s32 1, %s24
  %s27 = scalar_select 0, %s26, %s24
  %v28 = vstv %s22
  %29 = vst [vmem:[#allocation2] sm:$0x1] %v28
  $region1: #{tpu_custom_call.1} parent=0
    #allocation3 [shape = 'u8[32768]{0}', space=vmem, size = 0x8000, scoped, tag = 'input window, operand 2, single buffered']
    #allocation4 [shape = 's32[1]{0}', space=sflag, size = 0x4, scoped, tag = 'scoped memory for tpu_custom_call.1']
    #allocation5 [shape = 'u8[512]{0}', space=vmem, size = 0x400, scoped, tag = 'input window, operand 4, single buffered']
    #allocation6 [shape = 's32[1]{0}', space=sflag, size = 0x4, scoped, tag = 'scoped memory for tpu_custom_call.1']
    #allocation7 [shape = 'u8[512]{0}', space=vmem, size = 0x400, scoped, tag = 'input window, operand 5, single buffered']
    #allocation8 [shape = 'u8[512]{0}', space=vmem, size = 0x400, scoped, tag = 'input window, operand 6, single buffered']
    #allocation9 [shape = 's32[1]{0}', space=sflag, size = 0x4, scoped, tag = 'scoped memory for tpu_custom_call.1']
    #allocation10 [shape = 'u8[196608]{0}', space=vmem, size = 0x30000, scoped, tag = 'input window, operand 7, single buffered']
    #allocation11 [shape = 'u8[65536]{0}', space=vmem, size = 0x10000, scoped, tag = 'input window, operand 9, single buffered']
    #allocation12 [shape = 's32[1]{0}', space=sflag, size = 0x4, scoped, tag = 'scoped memory for tpu_custom_call.1']
    #allocation13 [shape = 'u8[1024]{0}', space=vmem, size = 0x400, scoped, tag = 'input window, operand 10, single buffered']
    #allocation14 [shape = 'u8[1024]{0}', space=vmem, size = 0x400, scoped, tag = 'input window, operand 11, single buffered']
    #allocation15 [shape = 's32[1]{0}', space=sflag, size = 0x4, scoped, tag = 'scoped memory for tpu_custom_call.1']
    #allocation16 [shape = 'u8[1024]{0}', space=vmem, size = 0x400, scoped, tag = 'input window, operand 12, single buffered']
    #allocation17 [shape = 'u8[131072]{0}', space=vmem, size = 0x20000, scoped, tag = 'input window, operand 13, single buffered']
    #allocation18 [shape = 's32[1]{0}', space=sflag, size = 0x4, scoped, tag = 'scoped memory for tpu_custom_call.1']
    #allocation19 [shape = 'u8[131072]{0}', space=vmem, size = 0x20000, scoped, tag = 'input window, operand 15, single buffered']
    #allocation20 [shape = 'u8[1024]{0}', space=vmem, size = 0x400, scoped, tag = 'input window, operand 16, single buffered']
    #allocation21 [shape = 's32[1]{0}', space=sflag, size = 0x4, scoped, tag = 'scoped memory for tpu_custom_call.1']
    #allocation22 [shape = 'u8[1024]{0}', space=vmem, size = 0x400, scoped, tag = 'input window, operand 17, single buffered']
    #allocation23 [shape = 'u8[1024]{0}', space=vmem, size = 0x400, scoped, tag = 'input window, operand 18, single buffered']
    #allocation24 [shape = 's32[1]{0}', space=sflag, size = 0x4, scoped, tag = 'scoped memory for tpu_custom_call.1']
    %30 = vsyncpa [#allocation4], 0
    %31 = vsyncpa [#allocation6], 0
    %32 = vsyncpa [#allocation9], 0
    %33 = vsyncpa [#allocation12], 0
    %34 = vsyncpa [#allocation15], 0
    %35 = vsyncpa [#allocation18], 0
    %36 = vsyncpa [#allocation21], 0
    %37 = vsyncpa [#allocation24], 0
    // Predicated region
    $region2: #{tpu_custom_call.1} parent=1 // pred_check
      _
    $region3: #{tpu_custom_call.1} parent=1 // pred_check_branch
      %39 = sbr.rel (0) target = $region5
    $region4: #{tpu_custom_call.1} parent=1 // pred_region
      _
    $region5: #{tpu_custom_call.1} parent=1 // pred_fallthru
      _
    // Predicated region
    $region6: #{tpu_custom_call.1} parent=1 // pred_check
      _
    $region7: #{tpu_custom_call.1} parent=1 // pred_check_branch
      %41 = sbr.rel (0) target = $region9
    $region8: #{tpu_custom_call.1} parent=1 // pred_region
      _
    $region9: #{tpu_custom_call.1} parent=1 // pred_fallthru
      _
    // Predicated region
    $region10: #{tpu_custom_call.1} parent=1 // pred_check
      _
    $region11: #{tpu_custom_call.1} parent=1 // pred_check_branch
      %43 = sbr.rel (0) target = $region13
    $region12: #{tpu_custom_call.1} parent=1 // pred_region
      %s45 = ssub.s32 1024, 1024
      %46 = vsyncadd [#allocation4], %s45
      %s47 = sshll.u32 [#allocation3], 4
      %s48 = int_to_ptr.vmem [resolvable:$true] %s47
      %53 = dma.hbm_to_vmem [thread:$0]  %s2, 1024, %s48, [#allocation4], 128, 128, 8
    $region13: #{tpu_custom_call.1} parent=1 // pred_fallthru
      _
    // Predicated region
    $region14: #{tpu_custom_call.1} parent=1 // pred_check
      _
    $region15: #{tpu_custom_call.1} parent=1 // pred_check_branch
      %55 = sbr.rel (0) target = $region17
    $region16: #{tpu_custom_call.1} parent=1 // pred_region
      _
    $region17: #{tpu_custom_call.1} parent=1 // pred_fallthru
      _
    // Predicated region
    $region18: #{tpu_custom_call.1} parent=1 // pred_check
      _
    $region19: #{tpu_custom_call.1} parent=1 // pred_check_branch
      %57 = sbr.rel (0) target = $region21
    $region20: #{tpu_custom_call.1} parent=1 // pred_region
      %s59 = ssub.s32 16, 16
      %60 = vsyncadd [#allocation6], %s59
      %s62 = sshll.u32 [#allocation5], 4
      %s63 = int_to_ptr.vmem [resolvable:$true] %s62
      %65 = dma.hbm_to_vmem [thread:$0]  %s4, 16, %s63, [#allocation6]
    $region21: #{tpu_custom_call.1} parent=1 // pred_fallthru
      _
    // Predicated region
    $region22: #{tpu_custom_call.1} parent=1 // pred_check
      _
    $region23: #{tpu_custom_call.1} parent=1 // pred_check_branch
      %67 = sbr.rel (0) target = $region25
    $region24: #{tpu_custom_call.1} parent=1 // pred_region
      %s69 = ssub.s32 16, 16
      %70 = vsyncadd [#allocation6], %s69
      %s72 = sshll.u32 [#allocation7], 4
      %s73 = int_to_ptr.vmem [resolvable:$true] %s72
      %75 = dma.hbm_to_vmem [thread:$0]  %s5, 16, %s73, [#allocation6]
    $region25: #{tpu_custom_call.1} parent=1 // pred_fallthru
      _
    // Predicated region
    $region26: #{tpu_custom_call.1} parent=1 // pred_check
      _
    $region27: #{tpu_custom_call.1} parent=1 // pred_check_branch
      %77 = sbr.rel (0) target = $region29
    $region28: #{tpu_custom_call.1} parent=1 // pred_region
      %s79 = ssub.s32 16, 16
      %80 = vsyncadd [#allocation9], %s79
      %s82 = sshll.u32 [#allocation8], 4
      %s83 = int_to_ptr.vmem [resolvable:$true] %s82
      %85 = dma.hbm_to_vmem [thread:$0]  %s6, 16, %s83, [#allocation9]
    $region29: #{tpu_custom_call.1} parent=1 // pred_fallthru
      _
    // Predicated region
    $region30: #{tpu_custom_call.1} parent=1 // pred_check
      _
    $region31: #{tpu_custom_call.1} parent=1 // pred_check_branch
      %87 = sbr.rel (0) target = $region33
    $region32: #{tpu_custom_call.1} parent=1 // pred_region
      %s89 = ssub.s32 6144, 6144
      %90 = vsyncadd [#allocation9], %s89
      %s91 = sshll.u32 [#allocation10], 4
      %s92 = int_to_ptr.vmem [resolvable:$true] %s91
      %97 = dma.hbm_to_vmem [thread:$0]  %s7, 6144, %s92, [#allocation9], 192, 192, 12
    $region33: #{tpu_custom_call.1} parent=1 // pred_fallthru
      _
    // Predicated region
    $region34: #{tpu_custom_call.1} parent=1 // pred_check
      _
    $region35: #{tpu_custom_call.1} parent=1 // pred_check_branch
      %99 = sbr.rel (0) target = $region37
    $region36: #{tpu_custom_call.1} parent=1 // pred_region
      _
    $region37: #{tpu_custom_call.1} parent=1 // pred_fallthru
      _
    // Predicated region
    $region38: #{tpu_custom_call.1} parent=1 // pred_check
      _
    $region39: #{tpu_custom_call.1} parent=1 // pred_check_branch
      %101 = sbr.rel (0) target = $region41
    $region40: #{tpu_custom_call.1} parent=1 // pred_region
      %s103 = ssub.s32 2048, 2048
      %104 = vsyncadd [#allocation12], %s103
      %s105 = sshll.u32 [#allocation11], 4
      %s106 = int_to_ptr.vmem [resolvable:$true] %s105
      %111 = dma.hbm_to_vmem [thread:$0]  %s9, 2048, %s106, [#allocation12], 64, 64, 4
    $region41: #{tpu_custom_call.1} parent=1 // pred_fallthru
      _
    // Predicated region
    $region42: #{tpu_custom_call.1} parent=1 // pred_check
      _
    $region43: #{tpu_custom_call.1} parent=1 // pred_check_branch
      %113 = sbr.rel (0) target = $region45
    $region44: #{tpu_custom_call.1} parent=1 // pred_region
      %s115 = ssub.s32 32, 32
      %116 = vsyncadd [#allocation12], %s115
      %s117 = sshll.u32 [#allocation13], 4
      %s118 = int_to_ptr.vmem [resolvable:$true] %s117
      %123 = dma.hbm_to_vmem [thread:$0]  %s10, 32, %s118, [#allocation12], 16, 16, 1
    $region45: #{tpu_custom_call.1} parent=1 // pred_fallthru
      _
    // Predicated region
    $region46: #{tpu_custom_call.1} parent=1 // pred_check
      _
    $region47: #{tpu_custom_call.1} parent=1 // pred_check_branch
      %125 = sbr.rel (0) target = $region49
    $region48: #{tpu_custom_call.1} parent=1 // pred_region
      %s127 = ssub.s32 32, 32
      %128 = vsyncadd [#allocation15], %s127
      %s129 = sshll.u32 [#allocation14], 4
      %s130 = int_to_ptr.vmem [resolvable:$true] %s129
      %135 = dma.hbm_to_vmem [thread:$0]  %s11, 32, %s130, [#allocation15], 16, 16, 1
    $region49: #{tpu_custom_call.1} parent=1 // pred_fallthru
      _
    // Predicated region
    $region50: #{tpu_custom_call.1} parent=1 // pred_check
      _
    $region51: #{tpu_custom_call.1} parent=1 // pred_check_branch
      %137 = sbr.rel (0) target = $region53
    $region52: #{tpu_custom_call.1} parent=1 // pred_region
      %s139 = ssub.s32 32, 32
      %140 = vsyncadd [#allocation15], %s139
      %s141 = sshll.u32 [#allocation16], 4
      %s142 = int_to_ptr.vmem [resolvable:$true] %s141
      %147 = dma.hbm_to_vmem [thread:$0]  %s12, 32, %s142, [#allocation15], 16, 16, 1
    $region53: #{tpu_custom_call.1} parent=1 // pred_fallthru
      _
    // Predicated region
    $region54: #{tpu_custom_call.1} parent=1 // pred_check
      _
    $region55: #{tpu_custom_call.1} parent=1 // pred_check_branch
      %149 = sbr.rel (0) target = $region57
    $region56: #{tpu_custom_call.1} parent=1 // pred_region
      %s151 = ssub.s32 4096, 4096
      %152 = vsyncadd [#allocation18], %s151
      %s153 = sshll.u32 [#allocation17], 4
      %s154 = int_to_ptr.vmem [resolvable:$true] %s153
      %159 = dma.hbm_to_vmem [thread:$0]  %s13, 4096, %s154, [#allocation18], 128, 128, 8
    $region57: #{tpu_custom_call.1} parent=1 // pred_fallthru
      _
    // Predicated region
    $region58: #{tpu_custom_call.1} parent=1 // pred_check
      _
    $region59: #{tpu_custom_call.1} parent=1 // pred_check_branch
      %161 = sbr.rel (0) target = $region61
    $region60: #{tpu_custom_call.1} parent=1 // pred_region
      _
    $region61: #{tpu_custom_call.1} parent=1 // pred_fallthru
      _
    // Predicated region
    $region62: #{tpu_custom_call.1} parent=1 // pred_check
      _
    $region63: #{tpu_custom_call.1} parent=1 // pred_check_branch
      %163 = sbr.rel (0) target = $region65
    $region64: #{tpu_custom_call.1} parent=1 // pred_region
      %s165 = ssub.s32 4096, 4096
      %166 = vsyncadd [#allocation18], %s165
      %s167 = sshll.u32 [#allocation19], 4
      %s168 = int_to_ptr.vmem [resolvable:$true] %s167
      %173 = dma.hbm_to_vmem [thread:$0]  %s15, 4096, %s168, [#allocation18], 64, 64, 4
    $region65: #{tpu_custom_call.1} parent=1 // pred_fallthru
      _
    // Predicated region
    $region66: #{tpu_custom_call.1} parent=1 // pred_check
      _
    $region67: #{tpu_custom_call.1} parent=1 // pred_check_branch
      %175 = sbr.rel (0) target = $region69
    $region68: #{tpu_custom_call.1} parent=1 // pred_region
      %s177 = ssub.s32 32, 32
      %178 = vsyncadd [#allocation21], %s177
      %s179 = sshll.u32 [#allocation20], 4
      %s180 = int_to_ptr.vmem [resolvable:$true] %s179
      %185 = dma.hbm_to_vmem [thread:$0]  %s16, 32, %s180, [#allocation21], 16, 16, 1
    $region69: #{tpu_custom_call.1} parent=1 // pred_fallthru
      _
    // Predicated region
    $region70: #{tpu_custom_call.1} parent=1 // pred_check
      _
    $region71: #{tpu_custom_call.1} parent=1 // pred_check_branch
      %187 = sbr.rel (0) target = $region73
    $region72: #{tpu_custom_call.1} parent=1 // pred_region
      %s189 = ssub.s32 32, 32
      %190 = vsyncadd [#allocation21], %s189
      %s191 = sshll.u32 [#allocation22], 4
      %s192 = int_to_ptr.vmem [resolvable:$true] %s191
      %197 = dma.hbm_to_vmem [thread:$0]  %s17, 32, %s192, [#allocation21], 16, 16, 1
    $region73: #{tpu_custom_call.1} parent=1 // pred_fallthru
      _
    // Predicated region
    $region74: #{tpu_custom_call.1} parent=1 // pred_check
      _
    $region75: #{tpu_custom_call.1} parent=1 // pred_check_branch
      %199 = sbr.rel (0) target = $region77
    $region76: #{tpu_custom_call.1} parent=1 // pred_region
      %s201 = ssub.s32 32, 32
      %202 = vsyncadd [#allocation24], %s201
      %s203 = sshll.u32 [#allocation23], 4
      %s204 = int_to_ptr.vmem [resolvable:$true] %s203
      %209 = dma.hbm_to_vmem [thread:$0]  %s18, 32, %s204, [#allocation24], 16, 16, 1
    $region77: #{tpu_custom_call.1} parent=1 // pred_fallthru
      _
    // Predicated region
    $region78: #{tpu_custom_call.1} parent=1 // pred_check
      _
    $region79: #{tpu_custom_call.1} parent=1 // pred_check_branch
      %211 = sbr.rel (0) target = $region81
    $region80: #{tpu_custom_call.1} parent=1 // pred_region
      _
    $region81: #{tpu_custom_call.1} parent=1 // pred_fallthru
      _
    // Predicated region
    $region82: #{tpu_custom_call.1} parent=1 // pred_check
      _
    $region83: #{tpu_custom_call.1} parent=1 // pred_check_branch
      %213 = sbr.rel (0) target = $region85
    $region84: #{tpu_custom_call.1} parent=1 // pred_region
      _
    $region85: #{tpu_custom_call.1} parent=1 // pred_fallthru
      _
    // Predicated region
    $region86: #{tpu_custom_call.1} parent=1 // pred_check
      _
    $region87: #{tpu_custom_call.1} parent=1 // pred_check_branch
      %215 = sbr.rel (0) target = $region89
    $region88: #{tpu_custom_call.1} parent=1 // pred_region
      _
    $region89: #{tpu_custom_call.1} parent=1 // pred_fallthru
      _
    // Predicated region
    $region90: #{tpu_custom_call.1} parent=1 // pred_check
      _
    $region91: #{tpu_custom_call.1} parent=1 // pred_check_branch
      %217 = sbr.rel (0) target = $region93
    $region92: #{tpu_custom_call.1} parent=1 // pred_region
      _
    $region93: #{tpu_custom_call.1} parent=1 // pred_fallthru
      _
    // Predicated region
    $region94: #{tpu_custom_call.1} parent=1 // pred_check
      _
    $region95: #{tpu_custom_call.1} parent=1 // pred_check_branch
      %219 = sbr.rel (0) target = $region97
    $region96: #{tpu_custom_call.1} parent=1 // pred_region
      %220 = dma.done [#allocation4], 1024
    $region97: #{tpu_custom_call.1} parent=1 // pred_fallthru
      _
    // Predicated region
    $region98: #{tpu_custom_call.1} parent=1 // pred_check
      _
    $region99: #{tpu_custom_call.1} parent=1 // pred_check_branch
      %222 = sbr.rel (0) target = $region101
    $region100: #{tpu_custom_call.1} parent=1 // pred_region
      %223 = dma.done [#allocation6], 16
    $region101: #{tpu_custom_call.1} parent=1 // pred_fallthru
      _
    // Predicated region
    $region102: #{tpu_custom_call.1} parent=1 // pred_check
      _
    $region103: #{tpu_custom_call.1} parent=1 // pred_check_branch
      %225 = sbr.rel (0) target = $region105
    $region104: #{tpu_custom_call.1} parent=1 // pred_region
      %226 = dma.done [#allocation6], 16
    $region105: #{tpu_custom_call.1} parent=1 // pred_fallthru
      _
    // Predicated region
    $region106: #{tpu_custom_call.1} parent=1 // pred_check
      _
    $region107: #{tpu_custom_call.1} parent=1 // pred_check_branch
      %228 = sbr.rel (0) target = $region109
    $region108: #{tpu_custom_call.1} parent=1 // pred_region
      %229 = dma.done [#allocation9], 16
    $region109: #{tpu_custom_call.1} parent=1 // pred_fallthru
      _
    // Predicated region
    $region110: #{tpu_custom_call.1} parent=1 // pred_check
      _
    $region111: #{tpu_custom_call.1} parent=1 // pred_check_branch
      %231 = sbr.rel (0) target = $region113
    $region112: #{tpu_custom_call.1} parent=1 // pred_region
      %232 = dma.done [#allocation9], 6144
    $region113: #{tpu_custom_call.1} parent=1 // pred_fallthru
      _
    // Predicated region
    $region114: #{tpu_custom_call.1} parent=1 // pred_check
      _
    $region115: #{tpu_custom_call.1} parent=1 // pred_check_branch
      %234 = sbr.rel (0) target = $region117
    $region116: #{tpu_custom_call.1} parent=1 // pred_region
      %235 = dma.done [#allocation12], 2048
    $region117: #{tpu_custom_call.1} parent=1 // pred_fallthru
      _
    // Predicated region
    $region118: #{tpu_custom_call.1} parent=1 // pred_check
      _
    $region119: #{tpu_custom_call.1} parent=1 // pred_check_branch
      %237 = sbr.rel (0) target = $region121
    $region120: #{tpu_custom_call.1} parent=1 // pred_region
      %238 = dma.done [#allocation12], 32
    $region121: #{tpu_custom_call.1} parent=1 // pred_fallthru
      _
    // Predicated region
    $region122: #{tpu_custom_call.1} parent=1 // pred_check
      _
    $region123: #{tpu_custom_call.1} parent=1 // pred_check_branch
      %240 = sbr.rel (0) target = $region125
    $region124: #{tpu_custom_call.1} parent=1 // pred_region
      %241 = dma.done [#allocation15], 32
    $region125: #{tpu_custom_call.1} parent=1 // pred_fallthru
      _
    // Predicated region
    $region126: #{tpu_custom_call.1} parent=1 // pred_check
      _
    $region127: #{tpu_custom_call.1} parent=1 // pred_check_branch
      %243 = sbr.rel (0) target = $region129
    $region128: #{tpu_custom_call.1} parent=1 // pred_region
      %244 = dma.done [#allocation15], 32
    $region129: #{tpu_custom_call.1} parent=1 // pred_fallthru
      _
    // Predicated region
    $region130: #{tpu_custom_call.1} parent=1 // pred_check
      _
    $region131: #{tpu_custom_call.1} parent=1 // pred_check_branch
      %246 = sbr.rel (0) target = $region133
    $region132: #{tpu_custom_call.1} parent=1 // pred_region
      %247 = dma.done [#allocation18], 4096
    $region133: #{tpu_custom_call.1} parent=1 // pred_fallthru
      _
    // Predicated region
    $region134: #{tpu_custom_call.1} parent=1 // pred_check
      _
    $region135: #{tpu_custom_call.1} parent=1 // pred_check_branch
      %249 = sbr.rel (0) target = $region137
    $region136: #{tpu_custom_call.1} parent=1 // pred_region
      %250 = dma.done [#allocation18], 4096
    $region137: #{tpu_custom_call.1} parent=1 // pred_fallthru
      _
    // Predicated region
    $region138: #{tpu_custom_call.1} parent=1 // pred_check
      _
    $region139: #{tpu_custom_call.1} parent=1 // pred_check_branch
      %252 = sbr.rel (0) target = $region141
    $region140: #{tpu_custom_call.1} parent=1 // pred_region
      %253 = dma.done [#allocation21], 32
    $region141: #{tpu_custom_call.1} parent=1 // pred_fallthru
      _
    // Predicated region
    $region142: #{tpu_custom_call.1} parent=1 // pred_check
      _
    $region143: #{tpu_custom_call.1} parent=1 // pred_check_branch
      %255 = sbr.rel (0) target = $region145
    $region144: #{tpu_custom_call.1} parent=1 // pred_region
      %256 = dma.done [#allocation21], 32
    $region145: #{tpu_custom_call.1} parent=1 // pred_fallthru
      _
    // Predicated region
    $region146: #{tpu_custom_call.1} parent=1 // pred_check
      _
    $region147: #{tpu_custom_call.1} parent=1 // pred_check_branch
      %258 = sbr.rel (0) target = $region149
    $region148: #{tpu_custom_call.1} parent=1 // pred_region
      %259 = dma.done [#allocation24], 32
    $region149: #{tpu_custom_call.1} parent=1 // pred_fallthru
      _
    %v261 = vld [vmem:[%s0] sm:$0xff]
    %v262 = vld [vmem:[%s0 + $0x8] sm:$0xff]
    %v263 = vlaneseq
    %v264 = vand.u32 %v263, 127
    %265 = vset.pattern.permute.xlu0 0
    %266 = vperm.xlu0 %265, %v261
    %v267 = vpop.permute.xlu0 %266
    %268 = vset.pattern.permute.xlu0 0
    %269 = vperm.xlu0 %268, %v262
    %v270 = vpop.permute.xlu0 %269
    %vm271 = vcmp.eq.s32.totalorder %v264, %v267
    %vm272 = vcmp.eq.s32.totalorder %v264, %v270
    %v273 = vsel %vm271, 1, 0
    %v274 = vsel %vm272, 1, 0
    %v275 = vcvt.s32.f32 %v273
    %v276 = vcvt.s32.f32 %v274
    %v277 = vld [vmem:[#allocation3] sm:$0xff]
    %v278 = vld [vmem:[#allocation3 + $0x8] sm:$0xff]
    %v279 = vld [vmem:[#allocation3 + $0x10] sm:$0xff]
    %v280 = vld [vmem:[#allocation3 + $0x18] sm:$0xff]
    %v281 = vld [vmem:[#allocation3 + $0x20] sm:$0xff]
    %v282 = vld [vmem:[#allocation3 + $0x28] sm:$0xff]
    %v283 = vld [vmem:[#allocation3 + $0x30] sm:$0xff]
    %v284 = vld [vmem:[#allocation3 + $0x38] sm:$0xff]
    %v285 = vld [vmem:[%s3] sm:$0xff]
    %v286 = vld [vmem:[%s3 + $0x8] sm:$0xff]
    %vm287 = vcmask 523264
    %v289 = vsel %vm287, %v275, 0
    %v292 = vsel %vm287, %v276, 0
    %294 = vmatprep.subr.mxu0 0.0
    %295 = vmatpush1.msra.mxu0 %v277
    %296 = vmatprep.subr.mxu0 0.0
    %297 = vmatpush1.msra.mxu0 %v278
    %298 = vmatprep.subr.mxu0 0.0
    %299 = vmatpush1.msra.mxu0 %v279
    %300 = vmatprep.subr.mxu0 0.0
    %301 = vmatpush1.msra.mxu0 %v280
    %302 = vmatprep.subr.mxu0 0.0
    %303 = vmatpush1.msra.mxu0 %v281
    %304 = vmatprep.subr.mxu0 0.0
    %305 = vmatpush1.msra.mxu0 %v282
    %306 = vmatprep.subr.mxu0 0.0
    %307 = vmatpush1.msra.mxu0 %v283
    %308 = vmatprep.subr.mxu0 0.0
    %309 = vmatpush1.msra.mxu0 %v284
    %310 = vmatprep.subr.mxu0 0.0
    %311 = vmatpush1.msra.mxu0 0.0
    %312 = vmatprep.subr.mxu0 0.0
    %313 = vmatpush1.msra.mxu0 0.0
    %314 = vmatprep.subr.mxu0 0.0
    %315 = vmatpush1.msra.mxu0 0.0
    %316 = vmatprep.subr.mxu0 0.0
    %317 = vmatpush1.msra.mxu0 0.0
    %318 = vmatprep.subr.mxu0 0.0
    %319 = vmatpush1.msra.mxu0 0.0
    %320 = vmatprep.subr.mxu0 0.0
    %321 = vmatpush1.msra.mxu0 0.0
    %322 = vmatprep.subr.mxu0 0.0
    %323 = vmatpush1.msra.mxu0 0.0
    %324 = vmatprep.subr.mxu0 0.0
    %325 = vmatpush1.msra.mxu0 0.0
    %326 = vmatprep.subr.mxu0 0.0
    %327 = vmatpush1.msra.mxu0 0.0
    %328 = vmatprep.subr.mxu0 0.0
    %329 = vmatpush1.msra.mxu0 0.0
    %330 = vmatprep.subr.mxu0 0.0
    %331 = vmatpush1.msra.mxu0 0.0
    %332 = vmatprep.subr.mxu0 0.0
    %333 = vmatpush1.msra.mxu0 0.0
    %334 = vmatprep.subr.mxu0 0.0
    %335 = vmatpush1.msra.mxu0 0.0
    %336 = vmatprep.subr.mxu0 0.0
    %337 = vmatpush1.msra.mxu0 0.0
    %338 = vmatprep.subr.mxu0 0.0
    %339 = vmatpush1.msra.mxu0 0.0
    %340 = vmatprep.subr.mxu0 0.0
    %341 = vmatpush1.msra.mxu0 0.0
    %342 = vmatprep.subr.mxu0 0.0
    %343 = vmatpush1.msra.mxu0 0.0
    %344 = vmatprep.subr.mxu0 0.0
    %345 = vmatpush1.msra.mxu0 0.0
    %346 = vmatprep.subr.mxu0 0.0
    %347 = vmatpush1.msra.mxu0 0.0
    %348 = vmatprep.subr.mxu0 0.0
    %349 = vmatpush1.msra.mxu0 0.0
    %350 = vmatprep.subr.mxu0 0.0
    %351 = vmatpush1.msra.mxu0 0.0
    %352 = vmatprep.subr.mxu0 0.0
    %353 = vmatpush1.msra.mxu0 0.0
    %354 = vmatprep.subr.mxu0 0.0
    %355 = vmatpush1.msra.mxu0 0.0
    %356 = vmatprep.subr.mxu0 0.0
    %357 = vmatpush1.msra.mxu0 0.0
    %358 = vmatprep.mubr.f32.mxu0 0.0
    %359 = vmatmul.mubr.f32.gmra.mrb[0].mxu0 %v289
    %v360 = vpop.f32.mrb[0].mxu0
    %v361 = vadd.f32 %v285, %v360
    %v362 = vpop.f32.mrb[0].mxu0
    %363 = vmatprep.mubr.f32.mxu0 0.0
    %364 = vmatmul.mubr.f32.gmra.mrb[0].mxu0 %v292
    %v365 = vpop.f32.mrb[0].mxu0
    %v366 = vadd.f32 %v286, %v365
    %v367 = vpop.f32.mrb[0].mxu0
    %368 = vdwg.mxu0
    %v369 = vld [vmem:[#allocation5] sm:$0x1]
    %v371 = vlaneseq
    %v372 = vshrl.u32 %v371, 7
    %v373 = vsub.s32 0, %v372
    %v374 = vrot.slane %v369, %v373
    %v376 = vadd.f32 %v361, %v374
    %v377 = vadd.f32 %v366, %v374
    %v378 = vld [vmem:[#allocation7] sm:$0x1]
    %v379 = vld [vmem:[#allocation8] sm:$0x1]
    %380 = vadd.xlane.f32.xlu0 %v376
    %v381 = vpop.xlane.xlu0 %380
    %382 = vadd.xlane.f32.xlu0 %v377
    %v383 = vpop.xlane.xlu0 %382
    %v384 = vrcp.pop 128.0
    %v385 = vmul.f32 %v381, %v384
    %v386 = vmul.f32 %v383, %v384
    %v387 = vsub.f32 %v376, %v385
    %v388 = vsub.f32 %v377, %v386
    %v389 = vmul.f32 %v387, %v387
    %v390 = vmul.f32 %v388, %v388
    %391 = vadd.xlane.f32.xlu0 %v389
    %v392 = vpop.xlane.xlu0 %391
    %393 = vadd.xlane.f32.xlu0 %v390
    %v394 = vpop.xlane.xlu0 %393
    %v395 = vmul.f32 %v392, %v384
    %v396 = vmul.f32 %v394, %v384
    %v397 = vadd.f32 %v395, 1e-12
    %v398 = vadd.f32 %v396, 1e-12
    %v399 = vrsqrt.pop %v397
    %v400 = vrsqrt.pop %v398
    %v401 = vmul.f32 %v387, %v399
    %v402 = vmul.f32 %v388, %v400
    %v404 = vlaneseq
    %v405 = vshrl.u32 %v404, 7
    %v406 = vsub.s32 0, %v405
    %v407 = vrot.slane %v378, %v406
    %v409 = vmul.f32 %v401, %v407
    %v410 = vmul.f32 %v402, %v407
    %v412 = vlaneseq
    %v413 = vshrl.u32 %v412, 7
    %v414 = vsub.s32 0, %v413
    %v415 = vrot.slane %v379, %v414
    %v417 = vadd.f32 %v409, %v415
    %v418 = vadd.f32 %v410, %v415
    %v419 = vld [vmem:[%s1] sm:$0x3]
    %v420 = vsub.f32 1.0, %v419
    %v421 = vmul.f32 %v420, -10000.0
    %v424 = vunpack.c.l.s4 1966171168
    %v425 = vunpack.c.0.s8 %v424
    %v426 = vlaneseq
    %v427 = vshrl.u32 %v426, 7
    %v428 = vsub.s32 %v425, %v427
    %v429 = vrot.slane %v421, %v428
    %v430 = vcombine.high %v429, %v429
    %v432 = vunpack.c.l.s4 1966171168
    %v433 = vunpack.c.0.s8 %v432
    %v434 = vlaneseq
    %v435 = vshrl.u32 %v434, 7
    %v436 = vsub.s32 %v433, %v435
    %v437 = vrot.slane %v429, %v436
    %v439 = vunpack.c.l.s4 1966171168
    %v440 = vunpack.c.0.s8 %v439
    %v441 = vlaneseq
    %v442 = vshrl.u32 %v441, 7
    %v443 = vsub.s32 %v440, %v442
    %v444 = vrot.slane %v430, %v443
    %v445 = vld [vmem:[#allocation10] sm:$0xff]
    %v446 = vld [vmem:[#allocation10 + $0x8] sm:$0xf]
    %v447 = vld [vmem:[#allocation10 + $0xc] sm:$0xff]
    %v448 = vld [vmem:[#allocation10 + $0x14] sm:$0xf]
    %v449 = vld [vmem:[#allocation10 + $0x18] sm:$0xff]
    %v450 = vld [vmem:[#allocation10 + $0x20] sm:$0xf]
    %v451 = vld [vmem:[#allocation10 + $0x24] sm:$0xff]
    %v452 = vld [vmem:[#allocation10 + $0x2c] sm:$0xf]
    %v453 = vld [vmem:[#allocation10 + $0x30] sm:$0xff]
    %v454 = vld [vmem:[#allocation10 + $0x38] sm:$0xf]
    %v455 = vld [vmem:[#allocation10 + $0x3c] sm:$0xff]
    %v456 = vld [vmem:[#allocation10 + $0x44] sm:$0xf]
    %v457 = vld [vmem:[#allocation10 + $0x48] sm:$0xff]
    %v458 = vld [vmem:[#allocation10 + $0x50] sm:$0xf]
    %v459 = vld [vmem:[#allocation10 + $0x54] sm:$0xff]
    %v460 = vld [vmem:[#allocation10 + $0x5c] sm:$0xf]
    %v461 = vld [vmem:[#allocation10 + $0x60] sm:$0xff]
    %v462 = vld [vmem:[#allocation10 + $0x68] sm:$0xf]
    %v463 = vld [vmem:[#allocation10 + $0x6c] sm:$0xff]
    %v464 = vld [vmem:[#allocation10 + $0x74] sm:$0xf]
    %v465 = vld [vmem:[#allocation10 + $0x78] sm:$0xff]
    %v466 = vld [vmem:[#allocation10 + $0x80] sm:$0xf]
    %v467 = vld [vmem:[#allocation10 + $0x84] sm:$0xff]
    %v468 = vld [vmem:[#allocation10 + $0x8c] sm:$0xf]
    %v469 = vld [vmem:[#allocation10 + $0x90] sm:$0xff]
    %v470 = vld [vmem:[#allocation10 + $0x98] sm:$0xf]
    %v471 = vld [vmem:[#allocation10 + $0x9c] sm:$0xff]
    %v472 = vld [vmem:[#allocation10 + $0xa4] sm:$0xf]
    %v473 = vld [vmem:[#allocation10 + $0xa8] sm:$0xff]
    %v474 = vld [vmem:[#allocation10 + $0xb0] sm:$0xf]
    %v475 = vld [vmem:[#allocation10 + $0xb4] sm:$0xff]
    %v476 = vld [vmem:[#allocation10 + $0xbc] sm:$0xf]
    %v477 = vld [vmem:[%s8] sm:$0x7]
    %v478 = vpack.c.bf16 %v418, %v417
    %v480 = vlaneseq
    %v481 = vshrl.u32 %v480, 7
    %v482 = vsub.s32 0, %v481
    %v483 = vrot.slane %v477, %v482
    %v484 = vlaneseq
    %v485 = vshrl.u32 %v484, 7
    %v486 = vsub.s32 1, %v485
    %v487 = vrot.slane %v477, %v486
    %v488 = vlaneseq
    %v489 = vshrl.u32 %v488, 7
    %v490 = vsub.s32 2, %v489
    %v491 = vrot.slane %v477, %v490
    %v527 = vunpack.c.l.b16 %v445
    %v528 = vunpack.c.h.b16 %v445
    %v529 = vunpack.c.l.b16 %v446
    %v530 = vunpack.c.l.b16 %v447
    %v531 = vunpack.c.h.b16 %v447
    %v532 = vunpack.c.l.b16 %v448
    %v533 = vunpack.c.l.b16 %v449
    %v534 = vunpack.c.h.b16 %v449
    %v535 = vunpack.c.l.b16 %v450
    %v536 = vunpack.c.l.b16 %v451
    %v537 = vunpack.c.h.b16 %v451
    %v538 = vunpack.c.l.b16 %v452
    %v539 = vunpack.c.l.b16 %v453
    %v540 = vunpack.c.h.b16 %v453
    %v541 = vunpack.c.l.b16 %v454
    %v542 = vunpack.c.l.b16 %v455
    %v543 = vunpack.c.h.b16 %v455
    %v544 = vunpack.c.l.b16 %v456
    %v545 = vunpack.c.l.b16 %v457
    %v546 = vunpack.c.h.b16 %v457
    %v547 = vunpack.c.l.b16 %v458
    %v548 = vunpack.c.l.b16 %v459
    %v549 = vunpack.c.h.b16 %v459
    %v550 = vunpack.c.l.b16 %v460
    %v551 = vunpack.c.l.b16 %v461
    %v552 = vunpack.c.h.b16 %v461
    %v553 = vunpack.c.l.b16 %v462
    %v554 = vunpack.c.l.b16 %v463
    %v555 = vunpack.c.h.b16 %v463
    %v556 = vunpack.c.l.b16 %v464
    %v557 = vunpack.c.l.b16 %v465
    %v558 = vunpack.c.h.b16 %v465
    %v559 = vunpack.c.l.b16 %v466
    %v560 = vunpack.c.l.b16 %v467
    %v561 = vunpack.c.h.b16 %v467
    %v562 = vunpack.c.l.b16 %v468
    %v563 = vunpack.c.l.b16 %v469
    %v564 = vunpack.c.h.b16 %v469
    %v565 = vunpack.c.l.b16 %v470
    %v566 = vunpack.c.l.b16 %v471
    %v567 = vunpack.c.h.b16 %v471
    %v568 = vunpack.c.l.b16 %v472
    %v569 = vunpack.c.l.b16 %v473
    %v570 = vunpack.c.h.b16 %v473
    %v571 = vunpack.c.l.b16 %v474
    %v572 = vunpack.c.l.b16 %v475
    %v573 = vunpack.c.h.b16 %v475
    %v574 = vunpack.c.l.b16 %v476
    %v575 = vpack.c.b16 %v530, %v527
    %v576 = vpack.c.b16 %v531, %v528
    %v577 = vpack.c.b16 %v532, %v529
    %v578 = vpack.c.b16 %v536, %v533
    %v579 = vpack.c.b16 %v537, %v534
    %v580 = vpack.c.b16 %v538, %v535
    %v581 = vpack.c.b16 %v542, %v539
    %v582 = vpack.c.b16 %v543, %v540
    %v583 = vpack.c.b16 %v544, %v541
    %v584 = vpack.c.b16 %v548, %v545
    %v585 = vpack.c.b16 %v549, %v546
    %v586 = vpack.c.b16 %v550, %v547
    %v587 = vpack.c.b16 %v554, %v551
    %v588 = vpack.c.b16 %v555, %v552
    %v589 = vpack.c.b16 %v556, %v553
    %v590 = vpack.c.b16 %v560, %v557
    %v591 = vpack.c.b16 %v561, %v558
    %v592 = vpack.c.b16 %v562, %v559
    %v593 = vpack.c.b16 %v566, %v563
    %v594 = vpack.c.b16 %v567, %v564
    %v595 = vpack.c.b16 %v568, %v565
    %v596 = vpack.c.b16 %v572, %v569
    %v597 = vpack.c.b16 %v573, %v570
    %v598 = vpack.c.b16 %v574, %v571
    %623 = vmatprep.subr.bf16.mxu0 %v576
    %624 = vmatpush1.bf16.msra.mxu0 %v575
    %625 = vmatprep.subr.bf16.mxu0 %v579
    %626 = vmatpush1.bf16.msra.mxu0 %v578
    %627 = vmatprep.subr.bf16.mxu0 %v582
    %628 = vmatpush1.bf16.msra.mxu0 %v581
    %629 = vmatprep.subr.bf16.mxu0 %v585
    %630 = vmatpush1.bf16.msra.mxu0 %v584
    %631 = vmatprep.subr.bf16.mxu0 %v588
    %632 = vmatpush1.bf16.msra.mxu0 %v587
    %633 = vmatprep.subr.bf16.mxu0 %v591
    %634 = vmatpush1.bf16.msra.mxu0 %v590
    %635 = vmatprep.subr.bf16.mxu0 %v594
    %636 = vmatpush1.bf16.msra.mxu0 %v593
    %637 = vmatprep.subr.bf16.mxu0 %v597
    %638 = vmatpush1.bf16.msra.mxu0 %v596
    %639 = vmatprep.subr.bf16.mxu0 0
    %640 = vmatpush1.bf16.msra.mxu0 0
    %641 = vmatprep.subr.bf16.mxu0 0
    %642 = vmatpush1.bf16.msra.mxu0 0
    %643 = vmatprep.subr.bf16.mxu0 0
    %644 = vmatpush1.bf16.msra.mxu0 0
    %645 = vmatprep.subr.bf16.mxu0 0
    %646 = vmatpush1.bf16.msra.mxu0 0
    %647 = vmatprep.subr.bf16.mxu0 0
    %648 = vmatpush1.bf16.msra.mxu0 0
    %649 = vmatprep.subr.bf16.mxu0 0
    %650 = vmatpush1.bf16.msra.mxu0 0
    %651 = vmatprep.subr.bf16.mxu0 0
    %652 = vmatpush1.bf16.msra.mxu0 0
    %653 = vmatprep.subr.bf16.mxu0 0
    %654 = vmatpush1.bf16.msra.mxu0 0
    %655 = vmatprep.mubr.bf16.mxu0 0
    %656 = vmatmul.mubr.bf16.gmra.mrb[0].mxu0 %v478
    %v657 = vpop.f32.mrb[0].mxu0
    %v658 = vadd.f32 %v483, %v657
    %v659 = vpop.f32.mrb[0].mxu0
    %v660 = vadd.f32 %v487, %v659
    %v661 = vpop.f32.mrb[0].mxu0
    %v662 = vadd.f32 %v483, %v661
    %v663 = vpop.f32.mrb[0].mxu0
    %v664 = vadd.f32 %v487, %v663
    %665 = vdwg.mxu0
    %666 = vmatprep.subr.bf16.mxu0 0
    %667 = vmatpush1.bf16.msra.mxu0 %v577
    %668 = vmatprep.subr.bf16.mxu0 0
    %669 = vmatpush1.bf16.msra.mxu0 %v580
    %670 = vmatprep.subr.bf16.mxu0 0
    %671 = vmatpush1.bf16.msra.mxu0 %v583
    %672 = vmatprep.subr.bf16.mxu0 0
    %673 = vmatpush1.bf16.msra.mxu0 %v586
    %674 = vmatprep.subr.bf16.mxu0 0
    %675 = vmatpush1.bf16.msra.mxu0 %v589
    %676 = vmatprep.subr.bf16.mxu0 0
    %677 = vmatpush1.bf16.msra.mxu0 %v592
    %678 = vmatprep.subr.bf16.mxu0 0
    %679 = vmatpush1.bf16.msra.mxu0 %v595
    %680 = vmatprep.subr.bf16.mxu0 0
    %681 = vmatpush1.bf16.msra.mxu0 %v598
    %682 = vmatprep.subr.bf16.mxu0 0
    %683 = vmatpush1.bf16.msra.mxu0 0
    %684 = vmatprep.subr.bf16.mxu0 0
    %685 = vmatpush1.bf16.msra.mxu0 0
    %686 = vmatprep.subr.bf16.mxu0 0
    %687 = vmatpush1.bf16.msra.mxu0 0
    %688 = vmatprep.subr.bf16.mxu0 0
    %689 = vmatpush1.bf16.msra.mxu0 0
    %690 = vmatprep.subr.bf16.mxu0 0
    %691 = vmatpush1.bf16.msra.mxu0 0
    %692 = vmatprep.subr.bf16.mxu0 0
    %693 = vmatpush1.bf16.msra.mxu0 0
    %694 = vmatprep.subr.bf16.mxu0 0
    %695 = vmatpush1.bf16.msra.mxu0 0
    %696 = vmatprep.subr.bf16.mxu0 0
    %697 = vmatpush1.bf16.msra.mxu0 0
    %698 = vmatprep.mubr.bf16.mxu0 0
    %699 = vmatmul.mubr.bf16.gmra.mrb[0].mxu0 %v478
    %v700 = vpop.f32.mrb[0].mxu0
    %v701 = vadd.f32 %v491, %v700
    %v702 = vpop.f32.mrb[0].mxu0
    %v703 = vpop.f32.mrb[0].mxu0
    %v704 = vadd.f32 %v491, %v703
    %v705 = vpop.f32.mrb[0].mxu0
    %706 = vdwg.mxu0
    %v707 = vld [vmem:[#allocation13] sm:$0x1]
    %v708 = vpack.c.bf16 %v658, %v658
    %v709 = vpack.c.bf16 %v662, %v662
    %v710 = vpack.c.bf16 %v660, %v660
    %v711 = vpack.c.bf16 %v664, %v664
    %v713 = vsel %vm287, %v708, 0
    %v716 = vsel %vm287, %v710, 0
    %718 = vmatprep.subr.bf16.mxu0 0
    %719 = vmatpush1.bf16.xpose.msra.mxu0 %v716
    %720 = vmatprep.subr.bf16.mxu0 0
    %721 = vmatpush1.bf16.xpose.msra.mxu0 0
    %722 = vmatprep.subr.bf16.mxu0 0
    %723 = vmatpush1.bf16.xpose.msra.mxu0 0
    %724 = vmatprep.subr.bf16.mxu0 0
    %725 = vmatpush1.bf16.xpose.msra.mxu0 0
    %726 = vmatprep.subr.bf16.mxu0 0
    %727 = vmatpush1.bf16.xpose.msra.mxu0 0
    %728 = vmatprep.subr.bf16.mxu0 0
    %729 = vmatpush1.bf16.xpose.msra.mxu0 0
    %730 = vmatprep.subr.bf16.mxu0 0
    %731 = vmatpush1.bf16.xpose.msra.mxu0 0
    %732 = vmatprep.subr.bf16.mxu0 0
    %733 = vmatpush1.bf16.xpose.msra.mxu0 0
    %734 = vmatprep.subr.bf16.mxu0 0
    %735 = vmatpush1.bf16.xpose.msra.mxu0 0
    %736 = vmatprep.subr.bf16.mxu0 0
    %737 = vmatpush1.bf16.xpose.msra.mxu0 0
    %738 = vmatprep.subr.bf16.mxu0 0
    %739 = vmatpush1.bf16.xpose.msra.mxu0 0
    %740 = vmatprep.subr.bf16.mxu0 0
    %741 = vmatpush1.bf16.xpose.msra.mxu0 0
    %742 = vmatprep.subr.bf16.mxu0 0
    %743 = vmatpush1.bf16.xpose.msra.mxu0 0
    %744 = vmatprep.subr.bf16.mxu0 0
    %745 = vmatpush1.bf16.xpose.msra.mxu0 0
    %746 = vmatprep.subr.bf16.mxu0 0
    %747 = vmatpush1.bf16.xpose.msra.mxu0 0
    %748 = vmatprep.subr.bf16.mxu0 0
    %749 = vmatpush1.bf16.xpose.msra.mxu0 0
    %750 = vmatprep.mubr.bf16.mxu0 0
    %751 = vmatmul.mubr.bf16.gmra.mrb[0].mxu0 %v713
    %v752 = vpop.f32.mrb[0].mxu0
    %v753 = vadd.f32 0.0, %v752
    %v754 = vpop.f32.mrb[0].mxu0
    %v755 = vpop.f32.mrb[0].mxu0
    %v756 = vpop.f32.mrb[0].mxu0
    %757 = vdwg.mxu0
    %v759 = vsel %vm287, %v709, 0
    %v762 = vsel %vm287, %v711, 0
    %764 = vmatprep.subr.bf16.mxu0 0
    %765 = vmatpush1.bf16.xpose.msra.mxu0 %v762
    %766 = vmatprep.subr.bf16.mxu0 0
    %767 = vmatpush1.bf16.xpose.msra.mxu0 0
    %768 = vmatprep.subr.bf16.mxu0 0
    %769 = vmatpush1.bf16.xpose.msra.mxu0 0
    %770 = vmatprep.subr.bf16.mxu0 0
    %771 = vmatpush1.bf16.xpose.msra.mxu0 0
    %772 = vmatprep.subr.bf16.mxu0 0
    %773 = vmatpush1.bf16.xpose.msra.mxu0 0
    %774 = vmatprep.subr.bf16.mxu0 0
    %775 = vmatpush1.bf16.xpose.msra.mxu0 0
    %776 = vmatprep.subr.bf16.mxu0 0
    %777 = vmatpush1.bf16.xpose.msra.mxu0 0
    %778 = vmatprep.subr.bf16.mxu0 0
    %779 = vmatpush1.bf16.xpose.msra.mxu0 0
    %780 = vmatprep.subr.bf16.mxu0 0
    %781 = vmatpush1.bf16.xpose.msra.mxu0 0
    %782 = vmatprep.subr.bf16.mxu0 0
    %783 = vmatpush1.bf16.xpose.msra.mxu0 0
    %784 = vmatprep.subr.bf16.mxu0 0
    %785 = vmatpush1.bf16.xpose.msra.mxu0 0
    %786 = vmatprep.subr.bf16.mxu0 0
    %787 = vmatpush1.bf16.xpose.msra.mxu0 0
    %788 = vmatprep.subr.bf16.mxu0 0
    %789 = vmatpush1.bf16.xpose.msra.mxu0 0
    %790 = vmatprep.subr.bf16.mxu0 0
    %791 = vmatpush1.bf16.xpose.msra.mxu0 0
    %792 = vmatprep.subr.bf16.mxu0 0
    %793 = vmatpush1.bf16.xpose.msra.mxu0 0
    %794 = vmatprep.subr.bf16.mxu0 0
    %795 = vmatpush1.bf16.xpose.msra.mxu0 0
    %796 = vmatprep.mubr.bf16.mxu0 0
    %797 = vmatmul.mubr.bf16.gmra.mrb[0].mxu0 %v759
    %v798 = vpop.f32.mrb[0].mxu0
    %v799 = vadd.f32 0.0, %v798
    %v800 = vpop.f32.mrb[0].mxu0
    %v801 = vpop.f32.mrb[0].mxu0
    %v802 = vpop.f32.mrb[0].mxu0
    %803 = vdwg.mxu0
    %v804 = vmul.f32 %v753, 0.125
    %v805 = vmul.f32 %v799, 0.125
    %v806 = vlaneseq
    %v807 = vshrl.u32 %v806, 7
    %v808 = vsub.s32 0, %v807
    %v809 = vrot.slane %v437, %v808
    %v810 = vlaneseq
    %v811 = vshrl.u32 %v810, 7
    %v812 = vsub.s32 0, %v811
    %v813 = vrot.slane %v444, %v812
    %v816 = vadd.f32 %v804, %v809
    %v817 = vadd.f32 %v805, %v813
    %vm818 = vcmask 64512
    %v819 = vsel %vm818, %v816, -inf
    %820 = vmax.xlane.f32.xlu0 %v819
    %v821 = vpop.xlane.xlu0 %820
    %v822 = vsel %vm818, %v817, -inf
    %823 = vmax.xlane.f32.xlu0 %v822
    %v824 = vpop.xlane.xlu0 %823
    %v825 = vsub.f32 %v816, %v821
    %v826 = vsub.f32 %v817, %v824
    %v827 = vmul.f32 %v825, 1.442695
    %v828 = vpow.pop %v827
    %v829 = vmul.f32 %v826, 1.442695
    %v830 = vpow.pop %v829
    %v831 = vsel %vm818, %v828, 0.0
    %832 = vadd.xlane.f32.xlu0 %v831
    %v833 = vpop.xlane.xlu0 %832
    %v834 = vsel %vm818, %v830, 0.0
    %835 = vadd.xlane.f32.xlu0 %v834
    %v836 = vpop.xlane.xlu0 %835
    %v837 = vrcp.pop %v833
    %v838 = vrcp.pop %v836
    %v839 = vmul.f32 %v828, %v837
    %v840 = vmul.f32 %v830, %v838
    %v841 = vpack.c.bf16 %v839, %v839
    %v842 = vpack.c.bf16 %v840, %v840
    %v843 = vpack.c.bf16 %v701, %v701
    %v844 = vpack.c.bf16 %v704, %v704
    %v846 = vsel %vm818, %v841, 0
    %vm848 = vcmask 1043456
    %v850 = vsel %vm848, %v843, 0
    %852 = vmatprep.subr.bf16.mxu0 0
    %853 = vmatpush1.bf16.msra.mxu0 %v850
    %854 = vmatprep.subr.bf16.mxu0 0
    %855 = vmatpush1.bf16.msra.mxu0 0
    %856 = vmatprep.subr.bf16.mxu0 0
    %857 = vmatpush1.bf16.msra.mxu0 0
    %858 = vmatprep.subr.bf16.mxu0 0
    %859 = vmatpush1.bf16.msra.mxu0 0
    %860 = vmatprep.subr.bf16.mxu0 0
    %861 = vmatpush1.bf16.msra.mxu0 0
    %862 = vmatprep.subr.bf16.mxu0 0
    %863 = vmatpush1.bf16.msra.mxu0 0
    %864 = vmatprep.subr.bf16.mxu0 0
    %865 = vmatpush1.bf16.msra.mxu0 0
    %866 = vmatprep.subr.bf16.mxu0 0
    %867 = vmatpush1.bf16.msra.mxu0 0
    %868 = vmatprep.subr.bf16.mxu0 0
    %869 = vmatpush1.bf16.msra.mxu0 0
    %870 = vmatprep.subr.bf16.mxu0 0
    %871 = vmatpush1.bf16.msra.mxu0 0
    %872 = vmatprep.subr.bf16.mxu0 0
    %873 = vmatpush1.bf16.msra.mxu0 0
    %874 = vmatprep.subr.bf16.mxu0 0
    %875 = vmatpush1.bf16.msra.mxu0 0
    %876 = vmatprep.subr.bf16.mxu0 0
    %877 = vmatpush1.bf16.msra.mxu0 0
    %878 = vmatprep.subr.bf16.mxu0 0
    %879 = vmatpush1.bf16.msra.mxu0 0
    %880 = vmatprep.subr.bf16.mxu0 0
    %881 = vmatpush1.bf16.msra.mxu0 0
    %882 = vmatprep.subr.bf16.mxu0 0
    %883 = vmatpush1.bf16.msra.mxu0 0
    %884 = vmatprep.mubr.bf16.mxu0 0
    %885 = vmatmul.mubr.bf16.gmra.mrb[0].mxu0 %v846
    %v886 = vpop.f32.mrb[0].mxu0
    %v887 = vadd.f32 0.0, %v886
    %v888 = vpop.f32.mrb[0].mxu0
    %v889 = vpop.f32.mrb[0].mxu0
    %v890 = vpop.f32.mrb[0].mxu0
    %891 = vdwg.mxu0
    %v893 = vsel %vm818, %v842, 0
    %v896 = vsel %vm848, %v844, 0
    %898 = vmatprep.subr.bf16.mxu0 0
    %899 = vmatpush1.bf16.msra.mxu0 %v896
    %900 = vmatprep.subr.bf16.mxu0 0
    %901 = vmatpush1.bf16.msra.mxu0 0
    %902 = vmatprep.subr.bf16.mxu0 0
    %903 = vmatpush1.bf16.msra.mxu0 0
    %904 = vmatprep.subr.bf16.mxu0 0
    %905 = vmatpush1.bf16.msra.mxu0 0
    %906 = vmatprep.subr.bf16.mxu0 0
    %907 = vmatpush1.bf16.msra.mxu0 0
    %908 = vmatprep.subr.bf16.mxu0 0
    %909 = vmatpush1.bf16.msra.mxu0 0
    %910 = vmatprep.subr.bf16.mxu0 0
    %911 = vmatpush1.bf16.msra.mxu0 0
    %912 = vmatprep.subr.bf16.mxu0 0
    %913 = vmatpush1.bf16.msra.mxu0 0
    %914 = vmatprep.subr.bf16.mxu0 0
    %915 = vmatpush1.bf16.msra.mxu0 0
    %916 = vmatprep.subr.bf16.mxu0 0
    %917 = vmatpush1.bf16.msra.mxu0 0
    %918 = vmatprep.subr.bf16.mxu0 0
    %919 = vmatpush1.bf16.msra.mxu0 0
    %920 = vmatprep.subr.bf16.mxu0 0
    %921 = vmatpush1.bf16.msra.mxu0 0
    %922 = vmatprep.subr.bf16.mxu0 0
    %923 = vmatpush1.bf16.msra.mxu0 0
    %924 = vmatprep.subr.bf16.mxu0 0
    %925 = vmatpush1.bf16.msra.mxu0 0
    %926 = vmatprep.subr.bf16.mxu0 0
    %927 = vmatpush1.bf16.msra.mxu0 0
    %928 = vmatprep.subr.bf16.mxu0 0
    %929 = vmatpush1.bf16.msra.mxu0 0
    %930 = vmatprep.mubr.bf16.mxu0 0
    %931 = vmatmul.mubr.bf16.gmra.mrb[0].mxu0 %v893
    %v932 = vpop.f32.mrb[0].mxu0
    %v933 = vadd.f32 0.0, %v932
    %v934 = vpop.f32.mrb[0].mxu0
    %v935 = vpop.f32.mrb[0].mxu0
    %v936 = vpop.f32.mrb[0].mxu0
    %937 = vdwg.mxu0
    %v938 = vpack.c.bf16 %v933, %v887
    %v939 = vld [vmem:[#allocation11] sm:$0xf]
    %v940 = vld [vmem:[#allocation11 + $0x4] sm:$0xf]
    %v941 = vld [vmem:[#allocation11 + $0x8] sm:$0xf]
    %v942 = vld [vmem:[#allocation11 + $0xc] sm:$0xf]
    %v943 = vld [vmem:[#allocation11 + $0x10] sm:$0xf]
    %v944 = vld [vmem:[#allocation11 + $0x14] sm:$0xf]
    %v945 = vld [vmem:[#allocation11 + $0x18] sm:$0xf]
    %v946 = vld [vmem:[#allocation11 + $0x1c] sm:$0xf]
    %v955 = vunpack.c.l.b16 %v939
    %v956 = vunpack.c.l.b16 %v940
    %v957 = vunpack.c.l.b16 %v941
    %v958 = vunpack.c.l.b16 %v942
    %v959 = vunpack.c.l.b16 %v943
    %v960 = vunpack.c.l.b16 %v944
    %v961 = vunpack.c.l.b16 %v945
    %v962 = vunpack.c.l.b16 %v946
    %v963 = vpack.c.b16 %v956, %v955
    %v964 = vpack.c.b16 %v958, %v957
    %v965 = vpack.c.b16 %v960, %v959
    %v966 = vpack.c.b16 %v962, %v961
    %v972 = vsel %vm287, %v938, 0
    %974 = vmatprep.subr.bf16.mxu0 0
    %975 = vmatpush1.bf16.msra.mxu0 %v963
    %976 = vmatprep.subr.bf16.mxu0 0
    %977 = vmatpush1.bf16.msra.mxu0 %v964
    %978 = vmatprep.subr.bf16.mxu0 0
    %979 = vmatpush1.bf16.msra.mxu0 %v965
    %980 = vmatprep.subr.bf16.mxu0 0
    %981 = vmatpush1.bf16.msra.mxu0 %v966
    %982 = vmatprep.subr.bf16.mxu0 0
    %983 = vmatpush1.bf16.msra.mxu0 0
    %984 = vmatprep.subr.bf16.mxu0 0
    %985 = vmatpush1.bf16.msra.mxu0 0
    %986 = vmatprep.subr.bf16.mxu0 0
    %987 = vmatpush1.bf16.msra.mxu0 0
    %988 = vmatprep.subr.bf16.mxu0 0
    %989 = vmatpush1.bf16.msra.mxu0 0
    %990 = vmatprep.subr.bf16.mxu0 0
    %991 = vmatpush1.bf16.msra.mxu0 0
    %992 = vmatprep.subr.bf16.mxu0 0
    %993 = vmatpush1.bf16.msra.mxu0 0
    %994 = vmatprep.subr.bf16.mxu0 0
    %995 = vmatpush1.bf16.msra.mxu0 0
    %996 = vmatprep.subr.bf16.mxu0 0
    %997 = vmatpush1.bf16.msra.mxu0 0
    %998 = vmatprep.subr.bf16.mxu0 0
    %999 = vmatpush1.bf16.msra.mxu0 0
    %1000 = vmatprep.subr.bf16.mxu0 0
    %1001 = vmatpush1.bf16.msra.mxu0 0
    %1002 = vmatprep.subr.bf16.mxu0 0
    %1003 = vmatpush1.bf16.msra.mxu0 0
    %1004 = vmatprep.subr.bf16.mxu0 0
    %1005 = vmatpush1.bf16.msra.mxu0 0
    %1006 = vmatprep.mubr.bf16.mxu0 0
    %1007 = vmatmul.mubr.bf16.gmra.mrb[0].mxu0 %v972
    %v1008 = vpop.f32.mrb[0].mxu0
    %v1009 = vadd.f32 0.0, %v1008
    %v1010 = vpop.f32.mrb[0].mxu0
    %v1011 = vpop.f32.mrb[0].mxu0
    %v1012 = vadd.f32 0.0, %v1011
    %v1013 = vpop.f32.mrb[0].mxu0
    %1014 = vdwg.mxu0
    %v1016 = vlaneseq
    %v1017 = vshrl.u32 %v1016, 7
    %v1018 = vsub.s32 0, %v1017
    %v1019 = vrot.slane %v707, %v1018
    %v1021 = vadd.f32 %v1019, %v1009
    %v1022 = vadd.f32 %v1019, %v1012
    %1024 = vrot.lane.b32.xlu0 %v708, 64
    %v1025 = vpop.permute.xlu0 %1024
    %1027 = vrot.lane.b32.xlu0 %v710, 64
    %v1028 = vpop.permute.xlu0 %1027
    %v1030 = vsel %vm287, %v1025, 0
    %v1033 = vsel %vm287, %v1028, 0
    %1035 = vmatprep.subr.bf16.mxu0 0
    %1036 = vmatpush1.bf16.xpose.msra.mxu0 %v1033
    %1037 = vmatprep.subr.bf16.mxu0 0
    %1038 = vmatpush1.bf16.xpose.msra.mxu0 0
    %1039 = vmatprep.subr.bf16.mxu0 0
    %1040 = vmatpush1.bf16.xpose.msra.mxu0 0
    %1041 = vmatprep.subr.bf16.mxu0 0
    %1042 = vmatpush1.bf16.xpose.msra.mxu0 0
    %1043 = vmatprep.subr.bf16.mxu0 0
    %1044 = vmatpush1.bf16.xpose.msra.mxu0 0
    %1045 = vmatprep.subr.bf16.mxu0 0
    %1046 = vmatpush1.bf16.xpose.msra.mxu0 0
    %1047 = vmatprep.subr.bf16.mxu0 0
    %1048 = vmatpush1.bf16.xpose.msra.mxu0 0
    %1049 = vmatprep.subr.bf16.mxu0 0
    %1050 = vmatpush1.bf16.xpose.msra.mxu0 0
    %1051 = vmatprep.subr.bf16.mxu0 0
    %1052 = vmatpush1.bf16.xpose.msra.mxu0 0
    %1053 = vmatprep.subr.bf16.mxu0 0
    %1054 = vmatpush1.bf16.xpose.msra.mxu0 0
    %1055 = vmatprep.subr.bf16.mxu0 0
    %1056 = vmatpush1.bf16.xpose.msra.mxu0 0
    %1057 = vmatprep.subr.bf16.mxu0 0
    %1058 = vmatpush1.bf16.xpose.msra.mxu0 0
    %1059 = vmatprep.subr.bf16.mxu0 0
    %1060 = vmatpush1.bf16.xpose.msra.mxu0 0
    %1061 = vmatprep.subr.bf16.mxu0 0
    %1062 = vmatpush1.bf16.xpose.msra.mxu0 0
    %1063 = vmatprep.subr.bf16.mxu0 0
    %1064 = vmatpush1.bf16.xpose.msra.mxu0 0
    %1065 = vmatprep.subr.bf16.mxu0 0
    %1066 = vmatpush1.bf16.xpose.msra.mxu0 0
    %1067 = vmatprep.mubr.bf16.mxu0 0
    %1068 = vmatmul.mubr.bf16.gmra.mrb[0].mxu0 %v1030
    %v1069 = vpop.f32.mrb[0].mxu0
    %v1070 = vadd.f32 0.0, %v1069
    %v1071 = vpop.f32.mrb[0].mxu0
    %v1072 = vpop.f32.mrb[0].mxu0
    %v1073 = vpop.f32.mrb[0].mxu0
    %1074 = vdwg.mxu0
    %1076 = vrot.lane.b32.xlu0 %v709, 64
    %v1077 = vpop.permute.xlu0 %1076
    %1079 = vrot.lane.b32.xlu0 %v711, 64
    %v1080 = vpop.permute.xlu0 %1079
    %v1082 = vsel %vm287, %v1077, 0
    %v1085 = vsel %vm287, %v1080, 0
    %1087 = vmatprep.subr.bf16.mxu0 0
    %1088 = vmatpush1.bf16.xpose.msra.mxu0 %v1085
    %1089 = vmatprep.subr.bf16.mxu0 0
    %1090 = vmatpush1.bf16.xpose.msra.mxu0 0
    %1091 = vmatprep.subr.bf16.mxu0 0
    %1092 = vmatpush1.bf16.xpose.msra.mxu0 0
    %1093 = vmatprep.subr.bf16.mxu0 0
    %1094 = vmatpush1.bf16.xpose.msra.mxu0 0
    %1095 = vmatprep.subr.bf16.mxu0 0
    %1096 = vmatpush1.bf16.xpose.msra.mxu0 0
    %1097 = vmatprep.subr.bf16.mxu0 0
    %1098 = vmatpush1.bf16.xpose.msra.mxu0 0
    %1099 = vmatprep.subr.bf16.mxu0 0
    %1100 = vmatpush1.bf16.xpose.msra.mxu0 0
    %1101 = vmatprep.subr.bf16.mxu0 0
    %1102 = vmatpush1.bf16.xpose.msra.mxu0 0
    %1103 = vmatprep.subr.bf16.mxu0 0
    %1104 = vmatpush1.bf16.xpose.msra.mxu0 0
    %1105 = vmatprep.subr.bf16.mxu0 0
    %1106 = vmatpush1.bf16.xpose.msra.mxu0 0
    %1107 = vmatprep.subr.bf16.mxu0 0
    %1108 = vmatpush1.bf16.xpose.msra.mxu0 0
    %1109 = vmatprep.subr.bf16.mxu0 0
    %1110 = vmatpush1.bf16.xpose.msra.mxu0 0
    %1111 = vmatprep.subr.bf16.mxu0 0
    %1112 = vmatpush1.bf16.xpose.msra.mxu0 0
    %1113 = vmatprep.subr.bf16.mxu0 0
    %1114 = vmatpush1.bf16.xpose.msra.mxu0 0
    %1115 = vmatprep.subr.bf16.mxu0 0
    %1116 = vmatpush1.bf16.xpose.msra.mxu0 0
    %1117 = vmatprep.subr.bf16.mxu0 0
    %1118 = vmatpush1.bf16.xpose.msra.mxu0 0
    %1119 = vmatprep.mubr.bf16.mxu0 0
    %1120 = vmatmul.mubr.bf16.gmra.mrb[0].mxu0 %v1082
    %v1121 = vpop.f32.mrb[0].mxu0
    %v1122 = vadd.f32 0.0, %v1121
    %v1123 = vpop.f32.mrb[0].mxu0
    %v1124 = vpop.f32.mrb[0].mxu0
    %v1125 = vpop.f32.mrb[0].mxu0
    %1126 = vdwg.mxu0
    %v1127 = vmul.f32 %v1070, 0.125
    %v1128 = vmul.f32 %v1122, 0.125
    %v1129 = vadd.f32 %v1127, %v809
    %v1130 = vadd.f32 %v1128, %v813
    %v1131 = vsel %vm818, %v1129, -inf
    %1132 = vmax.xlane.f32.xlu0 %v1131
    %v1133 = vpop.xlane.xlu0 %1132
    %v1134 = vsel %vm818, %v1130, -inf
    %1135 = vmax.xlane.f32.xlu0 %v1134
    %v1136 = vpop.xlane.xlu0 %1135
    %v1137 = vsub.f32 %v1129, %v1133
    %v1138 = vsub.f32 %v1130, %v1136
    %v1139 = vmul.f32 %v1137, 1.442695
    %v1140 = vpow.pop %v1139
    %v1141 = vmul.f32 %v1138, 1.442695
    %v1142 = vpow.pop %v1141
    %v1143 = vsel %vm818, %v1140, 0.0
    %1144 = vadd.xlane.f32.xlu0 %v1143
    %v1145 = vpop.xlane.xlu0 %1144
    %v1146 = vsel %vm818, %v1142, 0.0
    %1147 = vadd.xlane.f32.xlu0 %v1146
    %v1148 = vpop.xlane.xlu0 %1147
    %v1149 = vrcp.pop %v1145
    %v1150 = vrcp.pop %v1148
    %v1151 = vmul.f32 %v1140, %v1149
    %v1152 = vmul.f32 %v1142, %v1150
    %v1153 = vpack.c.bf16 %v1151, %v1151
    %v1154 = vpack.c.bf16 %v1152, %v1152
    %1156 = vrot.lane.b32.xlu0 %v843, 64
    %v1157 = vpop.permute.xlu0 %1156
    %v1159 = vsel %vm818, %v1153, 0
    %v1162 = vsel %vm848, %v1157, 0
    %1164 = vmatprep.subr.bf16.mxu0 0
    %1165 = vmatpush1.bf16.msra.mxu0 %v1162
    %1166 = vmatprep.subr.bf16.mxu0 0
    %1167 = vmatpush1.bf16.msra.mxu0 0
    %1168 = vmatprep.subr.bf16.mxu0 0
    %1169 = vmatpush1.bf16.msra.mxu0 0
    %1170 = vmatprep.subr.bf16.mxu0 0
    %1171 = vmatpush1.bf16.msra.mxu0 0
    %1172 = vmatprep.subr.bf16.mxu0 0
    %1173 = vmatpush1.bf16.msra.mxu0 0
    %1174 = vmatprep.subr.bf16.mxu0 0
    %1175 = vmatpush1.bf16.msra.mxu0 0
    %1176 = vmatprep.subr.bf16.mxu0 0
    %1177 = vmatpush1.bf16.msra.mxu0 0
    %1178 = vmatprep.subr.bf16.mxu0 0
    %1179 = vmatpush1.bf16.msra.mxu0 0
    %1180 = vmatprep.subr.bf16.mxu0 0
    %1181 = vmatpush1.bf16.msra.mxu0 0
    %1182 = vmatprep.subr.bf16.mxu0 0
    %1183 = vmatpush1.bf16.msra.mxu0 0
    %1184 = vmatprep.subr.bf16.mxu0 0
    %1185 = vmatpush1.bf16.msra.mxu0 0
    %1186 = vmatprep.subr.bf16.mxu0 0
    %1187 = vmatpush1.bf16.msra.mxu0 0
    %1188 = vmatprep.subr.bf16.mxu0 0
    %1189 = vmatpush1.bf16.msra.mxu0 0
    %1190 = vmatprep.subr.bf16.mxu0 0
    %1191 = vmatpush1.bf16.msra.mxu0 0
    %1192 = vmatprep.subr.bf16.mxu0 0
    %1193 = vmatpush1.bf16.msra.mxu0 0
    %1194 = vmatprep.subr.bf16.mxu0 0
    %1195 = vmatpush1.bf16.msra.mxu0 0
    %1196 = vmatprep.mubr.bf16.mxu0 0
    %1197 = vmatmul.mubr.bf16.gmra.mrb[0].mxu0 %v1159
    %v1198 = vpop.f32.mrb[0].mxu0
    %v1199 = vadd.f32 0.0, %v1198
    %v1200 = vpop.f32.mrb[0].mxu0
    %v1201 = vpop.f32.mrb[0].mxu0
    %v1202 = vpop.f32.mrb[0].mxu0
    %1203 = vdwg.mxu0
    %1205 = vrot.lane.b32.xlu0 %v844, 64
    %v1206 = vpop.permute.xlu0 %1205
    %v1208 = vsel %vm818, %v1154, 0
    %v1211 = vsel %vm848, %v1206, 0
    %1213 = vmatprep.subr.bf16.mxu0 0
    %1214 = vmatpush1.bf16.msra.mxu0 %v1211
    %1215 = vmatprep.subr.bf16.mxu0 0
    %1216 = vmatpush1.bf16.msra.mxu0 0
    %1217 = vmatprep.subr.bf16.mxu0 0
    %1218 = vmatpush1.bf16.msra.mxu0 0
    %1219 = vmatprep.subr.bf16.mxu0 0
    %1220 = vmatpush1.bf16.msra.mxu0 0
    %1221 = vmatprep.subr.bf16.mxu0 0
    %1222 = vmatpush1.bf16.msra.mxu0 0
    %1223 = vmatprep.subr.bf16.mxu0 0
    %1224 = vmatpush1.bf16.msra.mxu0 0
    %1225 = vmatprep.subr.bf16.mxu0 0
    %1226 = vmatpush1.bf16.msra.mxu0 0
    %1227 = vmatprep.subr.bf16.mxu0 0
    %1228 = vmatpush1.bf16.msra.mxu0 0
    %1229 = vmatprep.subr.bf16.mxu0 0
    %1230 = vmatpush1.bf16.msra.mxu0 0
    %1231 = vmatprep.subr.bf16.mxu0 0
    %1232 = vmatpush1.bf16.msra.mxu0 0
    %1233 = vmatprep.subr.bf16.mxu0 0
    %1234 = vmatpush1.bf16.msra.mxu0 0
    %1235 = vmatprep.subr.bf16.mxu0 0
    %1236 = vmatpush1.bf16.msra.mxu0 0
    %1237 = vmatprep.subr.bf16.mxu0 0
    %1238 = vmatpush1.bf16.msra.mxu0 0
    %1239 = vmatprep.subr.bf16.mxu0 0
    %1240 = vmatpush1.bf16.msra.mxu0 0
    %1241 = vmatprep.subr.bf16.mxu0 0
    %1242 = vmatpush1.bf16.msra.mxu0 0
    %1243 = vmatprep.subr.bf16.mxu0 0
    %1244 = vmatpush1.bf16.msra.mxu0 0
    %1245 = vmatprep.mubr.bf16.mxu0 0
    %1246 = vmatmul.mubr.bf16.gmra.mrb[0].mxu0 %v1208
    %v1247 = vpop.f32.mrb[0].mxu0
    %v1248 = vadd.f32 0.0, %v1247
    %v1249 = vpop.f32.mrb[0].mxu0
    %v1250 = vpop.f32.mrb[0].mxu0
    %v1251 = vpop.f32.mrb[0].mxu0
    %1252 = vdwg.mxu0
    %v1253 = vpack.c.bf16 %v1248, %v1199
    %s1254 = scalar_lea.vmem [#allocation11], 32
    %v1255 = vld [vmem:[%s1254] sm:$0xf]
    %v1256 = vld [vmem:[%s1254 + $0x4] sm:$0xf]
    %v1257 = vld [vmem:[%s1254 + $0x8] sm:$0xf]
    %v1258 = vld [vmem:[%s1254 + $0xc] sm:$0xf]
    %v1259 = vld [vmem:[%s1254 + $0x10] sm:$0xf]
    %v1260 = vld [vmem:[%s1254 + $0x14] sm:$0xf]
    %v1261 = vld [vmem:[%s1254 + $0x18] sm:$0xf]
    %v1262 = vld [vmem:[%s1254 + $0x1c] sm:$0xf]
    %v1271 = vunpack.c.l.b16 %v1255
    %v1272 = vunpack.c.l.b16 %v1256
    %v1273 = vunpack.c.l.b16 %v1257
    %v1274 = vunpack.c.l.b16 %v1258
    %v1275 = vunpack.c.l.b16 %v1259
    %v1276 = vunpack.c.l.b16 %v1260
    %v1277 = vunpack.c.l.b16 %v1261
    %v1278 = vunpack.c.l.b16 %v1262
    %v1279 = vpack.c.b16 %v1272, %v1271
    %v1280 = vpack.c.b16 %v1274, %v1273
    %v1281 = vpack.c.b16 %v1276, %v1275
    %v1282 = vpack.c.b16 %v1278, %v1277
    %v1288 = vsel %vm287, %v1253, 0
    %1290 = vmatprep.subr.bf16.mxu0 0
    %1291 = vmatpush1.bf16.msra.mxu0 %v1279
    %1292 = vmatprep.subr.bf16.mxu0 0
    %1293 = vmatpush1.bf16.msra.mxu0 %v1280
    %1294 = vmatprep.subr.bf16.mxu0 0
    %1295 = vmatpush1.bf16.msra.mxu0 %v1281
    %1296 = vmatprep.subr.bf16.mxu0 0
    %1297 = vmatpush1.bf16.msra.mxu0 %v1282
    %1298 = vmatprep.subr.bf16.mxu0 0
    %1299 = vmatpush1.bf16.msra.mxu0 0
    %1300 = vmatprep.subr.bf16.mxu0 0
    %1301 = vmatpush1.bf16.msra.mxu0 0
    %1302 = vmatprep.subr.bf16.mxu0 0
    %1303 = vmatpush1.bf16.msra.mxu0 0
    %1304 = vmatprep.subr.bf16.mxu0 0
    %1305 = vmatpush1.bf16.msra.mxu0 0
    %1306 = vmatprep.subr.bf16.mxu0 0
    %1307 = vmatpush1.bf16.msra.mxu0 0
    %1308 = vmatprep.subr.bf16.mxu0 0
    %1309 = vmatpush1.bf16.msra.mxu0 0
    %1310 = vmatprep.subr.bf16.mxu0 0
    %1311 = vmatpush1.bf16.msra.mxu0 0
    %1312 = vmatprep.subr.bf16.mxu0 0
    %1313 = vmatpush1.bf16.msra.mxu0 0
    %1314 = vmatprep.subr.bf16.mxu0 0
    %1315 = vmatpush1.bf16.msra.mxu0 0
    %1316 = vmatprep.subr.bf16.mxu0 0
    %1317 = vmatpush1.bf16.msra.mxu0 0
    %1318 = vmatprep.subr.bf16.mxu0 0
    %1319 = vmatpush1.bf16.msra.mxu0 0
    %1320 = vmatprep.subr.bf16.mxu0 0
    %1321 = vmatpush1.bf16.msra.mxu0 0
    %1322 = vmatprep.mubr.bf16.mxu0 0
    %1323 = vmatmul.mubr.bf16.gmra.mrb[0].mxu0 %v1288
    %v1324 = vpop.f32.mrb[0].mxu0
    %v1325 = vadd.f32 0.0, %v1324
    %v1326 = vpop.f32.mrb[0].mxu0
    %v1327 = vpop.f32.mrb[0].mxu0
    %v1328 = vadd.f32 0.0, %v1327
    %v1329 = vpop.f32.mrb[0].mxu0
    %1330 = vdwg.mxu0
    %v1331 = vadd.f32 %v1021, %v1325
    %v1332 = vadd.f32 %v1022, %v1328
    %v1333 = vadd.f32 %v1331, %v417
    %v1334 = vadd.f32 %v1332, %v418
    %v1335 = vld [vmem:[#allocation14] sm:$0x1]
    %v1336 = vld [vmem:[#allocation16] sm:$0x1]
    %1337 = vadd.xlane.f32.xlu0 %v1333
    %v1338 = vpop.xlane.xlu0 %1337
    %1339 = vadd.xlane.f32.xlu0 %v1334
    %v1340 = vpop.xlane.xlu0 %1339
    %v1341 = vmul.f32 %v1338, %v384
    %v1342 = vmul.f32 %v1340, %v384
    %v1343 = vsub.f32 %v1333, %v1341
    %v1344 = vsub.f32 %v1334, %v1342
    %v1345 = vmul.f32 %v1343, %v1343
    %v1346 = vmul.f32 %v1344, %v1344
    %1347 = vadd.xlane.f32.xlu0 %v1345
    %v1348 = vpop.xlane.xlu0 %1347
    %1349 = vadd.xlane.f32.xlu0 %v1346
    %v1350 = vpop.xlane.xlu0 %1349
    %v1351 = vmul.f32 %v1348, %v384
    %v1352 = vmul.f32 %v1350, %v384
    %v1353 = vadd.f32 %v1351, 1e-12
    %v1354 = vadd.f32 %v1352, 1e-12
    %v1355 = vrsqrt.pop %v1353
    %v1356 = vrsqrt.pop %v1354
    %v1357 = vmul.f32 %v1343, %v1355
    %v1358 = vmul.f32 %v1344, %v1356
    %v1360 = vlaneseq
    %v1361 = vshrl.u32 %v1360, 7
    %v1362 = vsub.s32 0, %v1361
    %v1363 = vrot.slane %v1335, %v1362
    %v1365 = vmul.f32 %v1357, %v1363
    %v1366 = vmul.f32 %v1358, %v1363
    %v1368 = vlaneseq
    %v1369 = vshrl.u32 %v1368, 7
    %v1370 = vsub.s32 0, %v1369
    %v1371 = vrot.slane %v1336, %v1370
    %v1373 = vadd.f32 %v1365, %v1371
    %v1374 = vadd.f32 %v1366, %v1371
    %v1375 = vld [vmem:[#allocation17] sm:$0xff]
    %v1376 = vld [vmem:[#allocation17 + $0x8] sm:$0xff]
    %v1377 = vld [vmem:[#allocation17 + $0x10] sm:$0xff]
    %v1378 = vld [vmem:[#allocation17 + $0x18] sm:$0xff]
    %v1379 = vld [vmem:[#allocation17 + $0x20] sm:$0xff]
    %v1380 = vld [vmem:[#allocation17 + $0x28] sm:$0xff]
    %v1381 = vld [vmem:[#allocation17 + $0x30] sm:$0xff]
    %v1382 = vld [vmem:[#allocation17 + $0x38] sm:$0xff]
    %v1383 = vld [vmem:[#allocation17 + $0x40] sm:$0xff]
    %v1384 = vld [vmem:[#allocation17 + $0x48] sm:$0xff]
    %v1385 = vld [vmem:[#allocation17 + $0x50] sm:$0xff]
    %v1386 = vld [vmem:[#allocation17 + $0x58] sm:$0xff]
    %v1387 = vld [vmem:[#allocation17 + $0x60] sm:$0xff]
    %v1388 = vld [vmem:[#allocation17 + $0x68] sm:$0xff]
    %v1389 = vld [vmem:[#allocation17 + $0x70] sm:$0xff]
    %v1390 = vld [vmem:[#allocation17 + $0x78] sm:$0xff]
    %v1391 = vld [vmem:[%s14] sm:$0x3]
    %v1392 = vpack.c.bf16 %v1374, %v1373
    %v1394 = vlaneseq
    %v1395 = vshrl.u32 %v1394, 7
    %v1396 = vsub.s32 0, %v1395
    %v1397 = vrot.slane %v1391, %v1396
    %v1398 = vlaneseq
    %v1399 = vshrl.u32 %v1398, 7
    %v1400 = vsub.s32 1, %v1399
    %v1401 = vrot.slane %v1391, %v1400
    %v1420 = vunpack.c.l.b16 %v1375
    %v1421 = vunpack.c.h.b16 %v1375
    %v1422 = vunpack.c.l.b16 %v1376
    %v1423 = vunpack.c.h.b16 %v1376
    %v1424 = vunpack.c.l.b16 %v1377
    %v1425 = vunpack.c.h.b16 %v1377
    %v1426 = vunpack.c.l.b16 %v1378
    %v1427 = vunpack.c.h.b16 %v1378
    %v1428 = vunpack.c.l.b16 %v1379
    %v1429 = vunpack.c.h.b16 %v1379
    %v1430 = vunpack.c.l.b16 %v1380
    %v1431 = vunpack.c.h.b16 %v1380
    %v1432 = vunpack.c.l.b16 %v1381
    %v1433 = vunpack.c.h.b16 %v1381
    %v1434 = vunpack.c.l.b16 %v1382
    %v1435 = vunpack.c.h.b16 %v1382
    %v1436 = vunpack.c.l.b16 %v1383
    %v1437 = vunpack.c.h.b16 %v1383
    %v1438 = vunpack.c.l.b16 %v1384
    %v1439 = vunpack.c.h.b16 %v1384
    %v1440 = vunpack.c.l.b16 %v1385
    %v1441 = vunpack.c.h.b16 %v1385
    %v1442 = vunpack.c.l.b16 %v1386
    %v1443 = vunpack.c.h.b16 %v1386
    %v1444 = vunpack.c.l.b16 %v1387
    %v1445 = vunpack.c.h.b16 %v1387
    %v1446 = vunpack.c.l.b16 %v1388
    %v1447 = vunpack.c.h.b16 %v1388
    %v1448 = vunpack.c.l.b16 %v1389
    %v1449 = vunpack.c.h.b16 %v1389
    %v1450 = vunpack.c.l.b16 %v1390
    %v1451 = vunpack.c.h.b16 %v1390
    %v1452 = vpack.c.b16 %v1422, %v1420
    %v1453 = vpack.c.b16 %v1423, %v1421
    %v1454 = vpack.c.b16 %v1426, %v1424
    %v1455 = vpack.c.b16 %v1427, %v1425
    %v1456 = vpack.c.b16 %v1430, %v1428
    %v1457 = vpack.c.b16 %v1431, %v1429
    %v1458 = vpack.c.b16 %v1434, %v1432
    %v1459 = vpack.c.b16 %v1435, %v1433
    %v1460 = vpack.c.b16 %v1438, %v1436
    %v1461 = vpack.c.b16 %v1439, %v1437
    %v1462 = vpack.c.b16 %v1442, %v1440
    %v1463 = vpack.c.b16 %v1443, %v1441
    %v1464 = vpack.c.b16 %v1446, %v1444
    %v1465 = vpack.c.b16 %v1447, %v1445
    %v1466 = vpack.c.b16 %v1450, %v1448
    %v1467 = vpack.c.b16 %v1451, %v1449
    %1484 = vmatprep.subr.bf16.mxu0 %v1453
    %1485 = vmatpush1.bf16.msra.mxu0 %v1452
    %1486 = vmatprep.subr.bf16.mxu0 %v1455
    %1487 = vmatpush1.bf16.msra.mxu0 %v1454
    %1488 = vmatprep.subr.bf16.mxu0 %v1457
    %1489 = vmatpush1.bf16.msra.mxu0 %v1456
    %1490 = vmatprep.subr.bf16.mxu0 %v1459
    %1491 = vmatpush1.bf16.msra.mxu0 %v1458
    %1492 = vmatprep.subr.bf16.mxu0 %v1461
    %1493 = vmatpush1.bf16.msra.mxu0 %v1460
    %1494 = vmatprep.subr.bf16.mxu0 %v1463
    %1495 = vmatpush1.bf16.msra.mxu0 %v1462
    %1496 = vmatprep.subr.bf16.mxu0 %v1465
    %1497 = vmatpush1.bf16.msra.mxu0 %v1464
    %1498 = vmatprep.subr.bf16.mxu0 %v1467
    %1499 = vmatpush1.bf16.msra.mxu0 %v1466
    %1500 = vmatprep.subr.bf16.mxu0 0
    %1501 = vmatpush1.bf16.msra.mxu0 0
    %1502 = vmatprep.subr.bf16.mxu0 0
    %1503 = vmatpush1.bf16.msra.mxu0 0
    %1504 = vmatprep.subr.bf16.mxu0 0
    %1505 = vmatpush1.bf16.msra.mxu0 0
    %1506 = vmatprep.subr.bf16.mxu0 0
    %1507 = vmatpush1.bf16.msra.mxu0 0
    %1508 = vmatprep.subr.bf16.mxu0 0
    %1509 = vmatpush1.bf16.msra.mxu0 0
    %1510 = vmatprep.subr.bf16.mxu0 0
    %1511 = vmatpush1.bf16.msra.mxu0 0
    %1512 = vmatprep.subr.bf16.mxu0 0
    %1513 = vmatpush1.bf16.msra.mxu0 0
    %1514 = vmatprep.subr.bf16.mxu0 0
    %1515 = vmatpush1.bf16.msra.mxu0 0
    %1516 = vmatprep.mubr.bf16.mxu0 0
    %1517 = vmatmul.mubr.bf16.gmra.mrb[0].mxu0 %v1392
    %v1518 = vpop.f32.mrb[0].mxu0
    %v1519 = vadd.f32 %v1397, %v1518
    %v1520 = vpop.f32.mrb[0].mxu0
    %v1521 = vadd.f32 %v1401, %v1520
    %v1522 = vpop.f32.mrb[0].mxu0
    %v1523 = vadd.f32 %v1397, %v1522
    %v1524 = vpop.f32.mrb[0].mxu0
    %v1525 = vadd.f32 %v1401, %v1524
    %1526 = vdwg.mxu0
    %v1527 = vmul.f32 %v1519, 0.5
    %v1528 = vmul.f32 %v1521, 0.5
    %v1529 = vmul.f32 %v1523, 0.5
    %v1530 = vmul.f32 %v1525, 0.5
    %v1531 = vmul.f32 %v1519, 0.044715
    %v1532 = vmul.f32 %v1521, 0.044715
    %v1533 = vmul.f32 %v1523, 0.044715
    %v1534 = vmul.f32 %v1525, 0.044715
    %v1535 = vmul.f32 %v1531, %v1519
    %v1536 = vmul.f32 %v1532, %v1521
    %v1537 = vmul.f32 %v1533, %v1523
    %v1538 = vmul.f32 %v1534, %v1525
    %v1539 = vmul.f32 %v1535, %v1519
    %v1540 = vmul.f32 %v1536, %v1521
    %v1541 = vmul.f32 %v1537, %v1523
    %v1542 = vmul.f32 %v1538, %v1525
    %v1543 = vadd.f32 %v1519, %v1539
    %v1544 = vadd.f32 %v1521, %v1540
    %v1545 = vadd.f32 %v1523, %v1541
    %v1546 = vadd.f32 %v1525, %v1542
    %v1547 = vmul.f32 %v1543, 0.7978846
    %v1548 = vmul.f32 %v1544, 0.7978846
    %v1549 = vmul.f32 %v1545, 0.7978846
    %v1550 = vmul.f32 %v1546, 0.7978846
    %v1551 = vtanh.pop %v1547
    %v1552 = vtanh.pop %v1548
    %v1553 = vtanh.pop %v1549
    %v1554 = vtanh.pop %v1550
    %v1555 = vadd.f32 %v1551, 1.0
    %v1556 = vadd.f32 %v1552, 1.0
    %v1557 = vadd.f32 %v1553, 1.0
    %v1558 = vadd.f32 %v1554, 1.0
    %v1559 = vmul.f32 %v1527, %v1555
    %v1560 = vmul.f32 %v1528, %v1556
    %v1561 = vmul.f32 %v1529, %v1557
    %v1562 = vmul.f32 %v1530, %v1558
    %v1563 = vld [vmem:[#allocation19] sm:$0xf]
    %v1564 = vld [vmem:[#allocation19 + $0x4] sm:$0xf]
    %v1565 = vld [vmem:[#allocation19 + $0x8] sm:$0xf]
    %v1566 = vld [vmem:[#allocation19 + $0xc] sm:$0xf]
    %v1567 = vld [vmem:[#allocation19 + $0x10] sm:$0xf]
    %v1568 = vld [vmem:[#allocation19 + $0x14] sm:$0xf]
    %v1569 = vld [vmem:[#allocation19 + $0x18] sm:$0xf]
    %v1570 = vld [vmem:[#allocation19 + $0x1c] sm:$0xf]
    %v1571 = vld [vmem:[#allocation19 + $0x20] sm:$0xf]
    %v1572 = vld [vmem:[#allocation19 + $0x24] sm:$0xf]
    %v1573 = vld [vmem:[#allocation19 + $0x28] sm:$0xf]
    %v1574 = vld [vmem:[#allocation19 + $0x2c] sm:$0xf]
    %v1575 = vld [vmem:[#allocation19 + $0x30] sm:$0xf]
    %v1576 = vld [vmem:[#allocation19 + $0x34] sm:$0xf]
    %v1577 = vld [vmem:[#allocation19 + $0x38] sm:$0xf]
    %v1578 = vld [vmem:[#allocation19 + $0x3c] sm:$0xf]
    %v1579 = vld [vmem:[#allocation19 + $0x40] sm:$0xf]
    %v1580 = vld [vmem:[#allocation19 + $0x44] sm:$0xf]
    %v1581 = vld [vmem:[#allocation19 + $0x48] sm:$0xf]
    %v1582 = vld [vmem:[#allocation19 + $0x4c] sm:$0xf]
    %v1583 = vld [vmem:[#allocation19 + $0x50] sm:$0xf]
    %v1584 = vld [vmem:[#allocation19 + $0x54] sm:$0xf]
    %v1585 = vld [vmem:[#allocation19 + $0x58] sm:$0xf]
    %v1586 = vld [vmem:[#allocation19 + $0x5c] sm:$0xf]
    %v1587 = vld [vmem:[#allocation19 + $0x60] sm:$0xf]
    %v1588 = vld [vmem:[#allocation19 + $0x64] sm:$0xf]
    %v1589 = vld [vmem:[#allocation19 + $0x68] sm:$0xf]
    %v1590 = vld [vmem:[#allocation19 + $0x6c] sm:$0xf]
    %v1591 = vld [vmem:[#allocation19 + $0x70] sm:$0xf]
    %v1592 = vld [vmem:[#allocation19 + $0x74] sm:$0xf]
    %v1593 = vld [vmem:[#allocation19 + $0x78] sm:$0xf]
    %v1594 = vld [vmem:[#allocation19 + $0x7c] sm:$0xf]
    %v1595 = vld [vmem:[#allocation20] sm:$0x1]
    %v1596 = vpack.c.bf16 %v1561, %v1559
    %v1597 = vpack.c.bf16 %v1562, %v1560
    %v1599 = vlaneseq
    %v1600 = vshrl.u32 %v1599, 7
    %v1601 = vsub.s32 0, %v1600
    %v1602 = vrot.slane %v1595, %v1601
    %v1636 = vunpack.c.l.b16 %v1563
    %v1637 = vunpack.c.l.b16 %v1564
    %v1638 = vunpack.c.l.b16 %v1565
    %v1639 = vunpack.c.l.b16 %v1566
    %v1640 = vunpack.c.l.b16 %v1567
    %v1641 = vunpack.c.l.b16 %v1568
    %v1642 = vunpack.c.l.b16 %v1569
    %v1643 = vunpack.c.l.b16 %v1570
    %v1644 = vunpack.c.l.b16 %v1571
    %v1645 = vunpack.c.l.b16 %v1572
    %v1646 = vunpack.c.l.b16 %v1573
    %v1647 = vunpack.c.l.b16 %v1574
    %v1648 = vunpack.c.l.b16 %v1575
    %v1649 = vunpack.c.l.b16 %v1576
    %v1650 = vunpack.c.l.b16 %v1577
    %v1651 = vunpack.c.l.b16 %v1578
    %v1652 = vunpack.c.l.b16 %v1579
    %v1653 = vunpack.c.l.b16 %v1580
    %v1654 = vunpack.c.l.b16 %v1581
    %v1655 = vunpack.c.l.b16 %v1582
    %v1656 = vunpack.c.l.b16 %v1583
    %v1657 = vunpack.c.l.b16 %v1584
    %v1658 = vunpack.c.l.b16 %v1585
    %v1659 = vunpack.c.l.b16 %v1586
    %v1660 = vunpack.c.l.b16 %v1587
    %v1661 = vunpack.c.l.b16 %v1588
    %v1662 = vunpack.c.l.b16 %v1589
    %v1663 = vunpack.c.l.b16 %v1590
    %v1664 = vunpack.c.l.b16 %v1591
    %v1665 = vunpack.c.l.b16 %v1592
    %v1666 = vunpack.c.l.b16 %v1593
    %v1667 = vunpack.c.l.b16 %v1594
    %v1668 = vpack.c.b16 %v1637, %v1636
    %v1669 = vpack.c.b16 %v1639, %v1638
    %v1670 = vpack.c.b16 %v1641, %v1640
    %v1671 = vpack.c.b16 %v1643, %v1642
    %v1672 = vpack.c.b16 %v1645, %v1644
    %v1673 = vpack.c.b16 %v1647, %v1646
    %v1674 = vpack.c.b16 %v1649, %v1648
    %v1675 = vpack.c.b16 %v1651, %v1650
    %v1676 = vpack.c.b16 %v1653, %v1652
    %v1677 = vpack.c.b16 %v1655, %v1654
    %v1678 = vpack.c.b16 %v1657, %v1656
    %v1679 = vpack.c.b16 %v1659, %v1658
    %v1680 = vpack.c.b16 %v1661, %v1660
    %v1681 = vpack.c.b16 %v1663, %v1662
    %v1682 = vpack.c.b16 %v1665, %v1664
    %v1683 = vpack.c.b16 %v1667, %v1666
    %1700 = vmatprep.subr.bf16.mxu0 0
    %1701 = vmatpush1.bf16.msra.mxu0 %v1668
    %1702 = vmatprep.subr.bf16.mxu0 0
    %1703 = vmatpush1.bf16.msra.mxu0 %v1669
    %1704 = vmatprep.subr.bf16.mxu0 0
    %1705 = vmatpush1.bf16.msra.mxu0 %v1670
    %1706 = vmatprep.subr.bf16.mxu0 0
    %1707 = vmatpush1.bf16.msra.mxu0 %v1671
    %1708 = vmatprep.subr.bf16.mxu0 0
    %1709 = vmatpush1.bf16.msra.mxu0 %v1672
    %1710 = vmatprep.subr.bf16.mxu0 0
    %1711 = vmatpush1.bf16.msra.mxu0 %v1673
    %1712 = vmatprep.subr.bf16.mxu0 0
    %1713 = vmatpush1.bf16.msra.mxu0 %v1674
    %1714 = vmatprep.subr.bf16.mxu0 0
    %1715 = vmatpush1.bf16.msra.mxu0 %v1675
    %1716 = vmatprep.subr.bf16.mxu0 0
    %1717 = vmatpush1.bf16.msra.mxu0 %v1676
    %1718 = vmatprep.subr.bf16.mxu0 0
    %1719 = vmatpush1.bf16.msra.mxu0 %v1677
    %1720 = vmatprep.subr.bf16.mxu0 0
    %1721 = vmatpush1.bf16.msra.mxu0 %v1678
    %1722 = vmatprep.subr.bf16.mxu0 0
    %1723 = vmatpush1.bf16.msra.mxu0 %v1679
    %1724 = vmatprep.subr.bf16.mxu0 0
    %1725 = vmatpush1.bf16.msra.mxu0 %v1680
    %1726 = vmatprep.subr.bf16.mxu0 0
    %1727 = vmatpush1.bf16.msra.mxu0 %v1681
    %1728 = vmatprep.subr.bf16.mxu0 0
    %1729 = vmatpush1.bf16.msra.mxu0 %v1682
    %1730 = vmatprep.subr.bf16.mxu0 0
    %1731 = vmatpush1.bf16.msra.mxu0 %v1683
    %1732 = vmatprep.mubr.bf16.mxu0 %v1597
    %1733 = vmatmul.mubr.bf16.gmra.mrb[0].mxu0 %v1596
    %v1734 = vpop.f32.mrb[0].mxu0
    %v1735 = vadd.f32 %v1602, %v1734
    %v1736 = vpop.f32.mrb[0].mxu0
    %v1737 = vpop.f32.mrb[0].mxu0
    %v1738 = vadd.f32 %v1602, %v1737
    %v1739 = vpop.f32.mrb[0].mxu0
    %1740 = vdwg.mxu0
    %v1741 = vadd.f32 %v1735, %v1373
    %v1742 = vadd.f32 %v1738, %v1374
    %v1743 = vld [vmem:[#allocation22] sm:$0x1]
    %v1744 = vld [vmem:[#allocation23] sm:$0x1]
    %1745 = vadd.xlane.f32.xlu0 %v1741
    %v1746 = vpop.xlane.xlu0 %1745
    %1747 = vadd.xlane.f32.xlu0 %v1742
    %v1748 = vpop.xlane.xlu0 %1747
    %v1749 = vmul.f32 %v1746, %v384
    %v1750 = vmul.f32 %v1748, %v384
    %v1751 = vsub.f32 %v1741, %v1749
    %v1752 = vsub.f32 %v1742, %v1750
    %v1753 = vmul.f32 %v1751, %v1751
    %v1754 = vmul.f32 %v1752, %v1752
    %1755 = vadd.xlane.f32.xlu0 %v1753
    %v1756 = vpop.xlane.xlu0 %1755
    %1757 = vadd.xlane.f32.xlu0 %v1754
    %v1758 = vpop.xlane.xlu0 %1757
    %v1759 = vmul.f32 %v1756, %v384
    %v1760 = vmul.f32 %v1758, %v384
    %v1761 = vadd.f32 %v1759, 1e-12
    %v1762 = vadd.f32 %v1760, 1e-12
    %v1763 = vrsqrt.pop %v1761
    %v1764 = vrsqrt.pop %v1762
    %v1765 = vmul.f32 %v1751, %v1763
    %v1766 = vmul.f32 %v1752, %v1764
    %v1768 = vlaneseq
    %v1769 = vshrl.u32 %v1768, 7
    %v1770 = vsub.s32 0, %v1769
    %v1771 = vrot.slane %v1743, %v1770
    %v1773 = vmul.f32 %v1765, %v1771
    %v1774 = vmul.f32 %v1766, %v1771
    %v1776 = vlaneseq
    %v1777 = vshrl.u32 %v1776, 7
    %v1778 = vsub.s32 0, %v1777
    %v1779 = vrot.slane %v1744, %v1778
    %v1781 = vadd.f32 %v1773, %v1779
    %v1782 = vadd.f32 %v1774, %v1779
    %s1783 = scalar_lea.vmem [#allocation10], 192
    %v1784 = vld [vmem:[%s1783] sm:$0xff]
    %v1785 = vld [vmem:[%s1783 + $0x8] sm:$0xf]
    %v1786 = vld [vmem:[%s1783 + $0xc] sm:$0xff]
    %v1787 = vld [vmem:[%s1783 + $0x14] sm:$0xf]
    %v1788 = vld [vmem:[%s1783 + $0x18] sm:$0xff]
    %v1789 = vld [vmem:[%s1783 + $0x20] sm:$0xf]
    %v1790 = vld [vmem:[%s1783 + $0x24] sm:$0xff]
    %v1791 = vld [vmem:[%s1783 + $0x2c] sm:$0xf]
    %v1792 = vld [vmem:[%s1783 + $0x30] sm:$0xff]
    %v1793 = vld [vmem:[%s1783 + $0x38] sm:$0xf]
    %v1794 = vld [vmem:[%s1783 + $0x3c] sm:$0xff]
    %v1795 = vld [vmem:[%s1783 + $0x44] sm:$0xf]
    %v1796 = vld [vmem:[%s1783 + $0x48] sm:$0xff]
    %v1797 = vld [vmem:[%s1783 + $0x50] sm:$0xf]
    %v1798 = vld [vmem:[%s1783 + $0x54] sm:$0xff]
    %v1799 = vld [vmem:[%s1783 + $0x5c] sm:$0xf]
    %v1800 = vld [vmem:[%s1783 + $0x60] sm:$0xff]
    %v1801 = vld [vmem:[%s1783 + $0x68] sm:$0xf]
    %v1802 = vld [vmem:[%s1783 + $0x6c] sm:$0xff]
    %v1803 = vld [vmem:[%s1783 + $0x74] sm:$0xf]
    %v1804 = vld [vmem:[%s1783 + $0x78] sm:$0xff]
    %v1805 = vld [vmem:[%s1783 + $0x80] sm:$0xf]
    %v1806 = vld [vmem:[%s1783 + $0x84] sm:$0xff]
    %v1807 = vld [vmem:[%s1783 + $0x8c] sm:$0xf]
    %v1808 = vld [vmem:[%s1783 + $0x90] sm:$0xff]
    %v1809 = vld [vmem:[%s1783 + $0x98] sm:$0xf]
    %v1810 = vld [vmem:[%s1783 + $0x9c] sm:$0xff]
    %v1811 = vld [vmem:[%s1783 + $0xa4] sm:$0xf]
    %v1812 = vld [vmem:[%s1783 + $0xa8] sm:$0xff]
    %v1813 = vld [vmem:[%s1783 + $0xb0] sm:$0xf]
    %v1814 = vld [vmem:[%s1783 + $0xb4] sm:$0xff]
    %v1815 = vld [vmem:[%s1783 + $0xbc] sm:$0xf]
    %s1816 = scalar_lea.vmem %s8, 3
    %v1817 = vld [vmem:[%s1816] sm:$0x7]
    %v1818 = vpack.c.bf16 %v1782, %v1781
    %v1820 = vlaneseq
    %v1821 = vshrl.u32 %v1820, 7
    %v1822 = vsub.s32 0, %v1821
    %v1823 = vrot.slane %v1817, %v1822
    %v1824 = vlaneseq
    %v1825 = vshrl.u32 %v1824, 7
    %v1826 = vsub.s32 1, %v1825
    %v1827 = vrot.slane %v1817, %v1826
    %v1828 = vlaneseq
    %v1829 = vshrl.u32 %v1828, 7
    %v1830 = vsub.s32 2, %v1829
    %v1831 = vrot.slane %v1817, %v1830
    %v1867 = vunpack.c.l.b16 %v1784
    %v1868 = vunpack.c.h.b16 %v1784
    %v1869 = vunpack.c.l.b16 %v1785
    %v1870 = vunpack.c.l.b16 %v1786
    %v1871 = vunpack.c.h.b16 %v1786
    %v1872 = vunpack.c.l.b16 %v1787
    %v1873 = vunpack.c.l.b16 %v1788
    %v1874 = vunpack.c.h.b16 %v1788
    %v1875 = vunpack.c.l.b16 %v1789
    %v1876 = vunpack.c.l.b16 %v1790
    %v1877 = vunpack.c.h.b16 %v1790
    %v1878 = vunpack.c.l.b16 %v1791
    %v1879 = vunpack.c.l.b16 %v1792
    %v1880 = vunpack.c.h.b16 %v1792
    %v1881 = vunpack.c.l.b16 %v1793
    %v1882 = vunpack.c.l.b16 %v1794
    %v1883 = vunpack.c.h.b16 %v1794
    %v1884 = vunpack.c.l.b16 %v1795
    %v1885 = vunpack.c.l.b16 %v1796
    %v1886 = vunpack.c.h.b16 %v1796
    %v1887 = vunpack.c.l.b16 %v1797
    %v1888 = vunpack.c.l.b16 %v1798
    %v1889 = vunpack.c.h.b16 %v1798
    %v1890 = vunpack.c.l.b16 %v1799
    %v1891 = vunpack.c.l.b16 %v1800
    %v1892 = vunpack.c.h.b16 %v1800
    %v1893 = vunpack.c.l.b16 %v1801
    %v1894 = vunpack.c.l.b16 %v1802
    %v1895 = vunpack.c.h.b16 %v1802
    %v1896 = vunpack.c.l.b16 %v1803
    %v1897 = vunpack.c.l.b16 %v1804
    %v1898 = vunpack.c.h.b16 %v1804
    %v1899 = vunpack.c.l.b16 %v1805
    %v1900 = vunpack.c.l.b16 %v1806
    %v1901 = vunpack.c.h.b16 %v1806
    %v1902 = vunpack.c.l.b16 %v1807
    %v1903 = vunpack.c.l.b16 %v1808
    %v1904 = vunpack.c.h.b16 %v1808
    %v1905 = vunpack.c.l.b16 %v1809
    %v1906 = vunpack.c.l.b16 %v1810
    %v1907 = vunpack.c.h.b16 %v1810
    %v1908 = vunpack.c.l.b16 %v1811
    %v1909 = vunpack.c.l.b16 %v1812
    %v1910 = vunpack.c.h.b16 %v1812
    %v1911 = vunpack.c.l.b16 %v1813
    %v1912 = vunpack.c.l.b16 %v1814
    %v1913 = vunpack.c.h.b16 %v1814
    %v1914 = vunpack.c.l.b16 %v1815
    %v1915 = vpack.c.b16 %v1870, %v1867
    %v1916 = vpack.c.b16 %v1871, %v1868
    %v1917 = vpack.c.b16 %v1872, %v1869
    %v1918 = vpack.c.b16 %v1876, %v1873
    %v1919 = vpack.c.b16 %v1877, %v1874
    %v1920 = vpack.c.b16 %v1878, %v1875
    %v1921 = vpack.c.b16 %v1882, %v1879
    %v1922 = vpack.c.b16 %v1883, %v1880
    %v1923 = vpack.c.b16 %v1884, %v1881
    %v1924 = vpack.c.b16 %v1888, %v1885
    %v1925 = vpack.c.b16 %v1889, %v1886
    %v1926 = vpack.c.b16 %v1890, %v1887
    %v1927 = vpack.c.b16 %v1894, %v1891
    %v1928 = vpack.c.b16 %v1895, %v1892
    %v1929 = vpack.c.b16 %v1896, %v1893
    %v1930 = vpack.c.b16 %v1900, %v1897
    %v1931 = vpack.c.b16 %v1901, %v1898
    %v1932 = vpack.c.b16 %v1902, %v1899
    %v1933 = vpack.c.b16 %v1906, %v1903
    %v1934 = vpack.c.b16 %v1907, %v1904
    %v1935 = vpack.c.b16 %v1908, %v1905
    %v1936 = vpack.c.b16 %v1912, %v1909
    %v1937 = vpack.c.b16 %v1913, %v1910
    %v1938 = vpack.c.b16 %v1914, %v1911
    %1963 = vmatprep.subr.bf16.mxu0 %v1916
    %1964 = vmatpush1.bf16.msra.mxu0 %v1915
    %1965 = vmatprep.subr.bf16.mxu0 %v1919
    %1966 = vmatpush1.bf16.msra.mxu0 %v1918
    %1967 = vmatprep.subr.bf16.mxu0 %v1922
    %1968 = vmatpush1.bf16.msra.mxu0 %v1921
    %1969 = vmatprep.subr.bf16.mxu0 %v1925
    %1970 = vmatpush1.bf16.msra.mxu0 %v1924
    %1971 = vmatprep.subr.bf16.mxu0 %v1928
    %1972 = vmatpush1.bf16.msra.mxu0 %v1927
    %1973 = vmatprep.subr.bf16.mxu0 %v1931
    %1974 = vmatpush1.bf16.msra.mxu0 %v1930
    %1975 = vmatprep.subr.bf16.mxu0 %v1934
    %1976 = vmatpush1.bf16.msra.mxu0 %v1933
    %1977 = vmatprep.subr.bf16.mxu0 %v1937
    %1978 = vmatpush1.bf16.msra.mxu0 %v1936
    %1979 = vmatprep.subr.bf16.mxu0 0
    %1980 = vmatpush1.bf16.msra.mxu0 0
    %1981 = vmatprep.subr.bf16.mxu0 0
    %1982 = vmatpush1.bf16.msra.mxu0 0
    %1983 = vmatprep.subr.bf16.mxu0 0
    %1984 = vmatpush1.bf16.msra.mxu0 0
    %1985 = vmatprep.subr.bf16.mxu0 0
    %1986 = vmatpush1.bf16.msra.mxu0 0
    %1987 = vmatprep.subr.bf16.mxu0 0
    %1988 = vmatpush1.bf16.msra.mxu0 0
    %1989 = vmatprep.subr.bf16.mxu0 0
    %1990 = vmatpush1.bf16.msra.mxu0 0
    %1991 = vmatprep.subr.bf16.mxu0 0
    %1992 = vmatpush1.bf16.msra.mxu0 0
    %1993 = vmatprep.subr.bf16.mxu0 0
    %1994 = vmatpush1.bf16.msra.mxu0 0
    %1995 = vmatprep.mubr.bf16.mxu0 0
    %1996 = vmatmul.mubr.bf16.gmra.mrb[0].mxu0 %v1818
    %v1997 = vpop.f32.mrb[0].mxu0
    %v1998 = vadd.f32 %v1823, %v1997
    %v1999 = vpop.f32.mrb[0].mxu0
    %v2000 = vadd.f32 %v1827, %v1999
    %v2001 = vpop.f32.mrb[0].mxu0
    %v2002 = vadd.f32 %v1823, %v2001
    %v2003 = vpop.f32.mrb[0].mxu0
    %v2004 = vadd.f32 %v1827, %v2003
    %2005 = vdwg.mxu0
    %2006 = vmatprep.subr.bf16.mxu0 0
    %2007 = vmatpush1.bf16.msra.mxu0 %v1917
    %2008 = vmatprep.subr.bf16.mxu0 0
    %2009 = vmatpush1.bf16.msra.mxu0 %v1920
    %2010 = vmatprep.subr.bf16.mxu0 0
    %2011 = vmatpush1.bf16.msra.mxu0 %v1923
    %2012 = vmatprep.subr.bf16.mxu0 0
    %2013 = vmatpush1.bf16.msra.mxu0 %v1926
    %2014 = vmatprep.subr.bf16.mxu0 0
    %2015 = vmatpush1.bf16.msra.mxu0 %v1929
    %2016 = vmatprep.subr.bf16.mxu0 0
    %2017 = vmatpush1.bf16.msra.mxu0 %v1932
    %2018 = vmatprep.subr.bf16.mxu0 0
    %2019 = vmatpush1.bf16.msra.mxu0 %v1935
    %2020 = vmatprep.subr.bf16.mxu0 0
    %2021 = vmatpush1.bf16.msra.mxu0 %v1938
    %2022 = vmatprep.subr.bf16.mxu0 0
    %2023 = vmatpush1.bf16.msra.mxu0 0
    %2024 = vmatprep.subr.bf16.mxu0 0
    %2025 = vmatpush1.bf16.msra.mxu0 0
    %2026 = vmatprep.subr.bf16.mxu0 0
    %2027 = vmatpush1.bf16.msra.mxu0 0
    %2028 = vmatprep.subr.bf16.mxu0 0
    %2029 = vmatpush1.bf16.msra.mxu0 0
    %2030 = vmatprep.subr.bf16.mxu0 0
    %2031 = vmatpush1.bf16.msra.mxu0 0
    %2032 = vmatprep.subr.bf16.mxu0 0
    %2033 = vmatpush1.bf16.msra.mxu0 0
    %2034 = vmatprep.subr.bf16.mxu0 0
    %2035 = vmatpush1.bf16.msra.mxu0 0
    %2036 = vmatprep.subr.bf16.mxu0 0
    %2037 = vmatpush1.bf16.msra.mxu0 0
    %2038 = vmatprep.mubr.bf16.mxu0 0
    %2039 = vmatmul.mubr.bf16.gmra.mrb[0].mxu0 %v1818
    %v2040 = vpop.f32.mrb[0].mxu0
    %v2041 = vadd.f32 %v1831, %v2040
    %v2042 = vpop.f32.mrb[0].mxu0
    %v2043 = vpop.f32.mrb[0].mxu0
    %v2044 = vadd.f32 %v1831, %v2043
    %v2045 = vpop.f32.mrb[0].mxu0
    %2046 = vdwg.mxu0
    %s2047 = scalar_lea.vmem [#allocation13], 1
    %v2048 = vld [vmem:[%s2047] sm:$0x1]
    %v2049 = vpack.c.bf16 %v1998, %v1998
    %v2050 = vpack.c.bf16 %v2002, %v2002
    %v2051 = vpack.c.bf16 %v2000, %v2000
    %v2052 = vpack.c.bf16 %v2004, %v2004
    %v2054 = vsel %vm287, %v2049, 0
    %v2057 = vsel %vm287, %v2051, 0
    %2059 = vmatprep.subr.bf16.mxu0 0
    %2060 = vmatpush1.bf16.xpose.msra.mxu0 %v2057
    %2061 = vmatprep.subr.bf16.mxu0 0
    %2062 = vmatpush1.bf16.xpose.msra.mxu0 0
    %2063 = vmatprep.subr.bf16.mxu0 0
    %2064 = vmatpush1.bf16.xpose.msra.mxu0 0
    %2065 = vmatprep.subr.bf16.mxu0 0
    %2066 = vmatpush1.bf16.xpose.msra.mxu0 0
    %2067 = vmatprep.subr.bf16.mxu0 0
    %2068 = vmatpush1.bf16.xpose.msra.mxu0 0
    %2069 = vmatprep.subr.bf16.mxu0 0
    %2070 = vmatpush1.bf16.xpose.msra.mxu0 0
    %2071 = vmatprep.subr.bf16.mxu0 0
    %2072 = vmatpush1.bf16.xpose.msra.mxu0 0
    %2073 = vmatprep.subr.bf16.mxu0 0
    %2074 = vmatpush1.bf16.xpose.msra.mxu0 0
    %2075 = vmatprep.subr.bf16.mxu0 0
    %2076 = vmatpush1.bf16.xpose.msra.mxu0 0
    %2077 = vmatprep.subr.bf16.mxu0 0
    %2078 = vmatpush1.bf16.xpose.msra.mxu0 0
    %2079 = vmatprep.subr.bf16.mxu0 0
    %2080 = vmatpush1.bf16.xpose.msra.mxu0 0
    %2081 = vmatprep.subr.bf16.mxu0 0
    %2082 = vmatpush1.bf16.xpose.msra.mxu0 0
    %2083 = vmatprep.subr.bf16.mxu0 0
    %2084 = vmatpush1.bf16.xpose.msra.mxu0 0
    %2085 = vmatprep.subr.bf16.mxu0 0
    %2086 = vmatpush1.bf16.xpose.msra.mxu0 0
    %2087 = vmatprep.subr.bf16.mxu0 0
    %2088 = vmatpush1.bf16.xpose.msra.mxu0 0
    %2089 = vmatprep.subr.bf16.mxu0 0
    %2090 = vmatpush1.bf16.xpose.msra.mxu0 0
    %2091 = vmatprep.mubr.bf16.mxu0 0
    %2092 = vmatmul.mubr.bf16.gmra.mrb[0].mxu0 %v2054
    %v2093 = vpop.f32.mrb[0].mxu0
    %v2094 = vadd.f32 0.0, %v2093
    %v2095 = vpop.f32.mrb[0].mxu0
    %v2096 = vpop.f32.mrb[0].mxu0
    %v2097 = vpop.f32.mrb[0].mxu0
    %2098 = vdwg.mxu0
    %v2100 = vsel %vm287, %v2050, 0
    %v2103 = vsel %vm287, %v2052, 0
    %2105 = vmatprep.subr.bf16.mxu0 0
    %2106 = vmatpush1.bf16.xpose.msra.mxu0 %v2103
    %2107 = vmatprep.subr.bf16.mxu0 0
    %2108 = vmatpush1.bf16.xpose.msra.mxu0 0
    %2109 = vmatprep.subr.bf16.mxu0 0
    %2110 = vmatpush1.bf16.xpose.msra.mxu0 0
    %2111 = vmatprep.subr.bf16.mxu0 0
    %2112 = vmatpush1.bf16.xpose.msra.mxu0 0
    %2113 = vmatprep.subr.bf16.mxu0 0
    %2114 = vmatpush1.bf16.xpose.msra.mxu0 0
    %2115 = vmatprep.subr.bf16.mxu0 0
    %2116 = vmatpush1.bf16.xpose.msra.mxu0 0
    %2117 = vmatprep.subr.bf16.mxu0 0
    %2118 = vmatpush1.bf16.xpose.msra.mxu0 0
    %2119 = vmatprep.subr.bf16.mxu0 0
    %2120 = vmatpush1.bf16.xpose.msra.mxu0 0
    %2121 = vmatprep.subr.bf16.mxu0 0
    %2122 = vmatpush1.bf16.xpose.msra.mxu0 0
    %2123 = vmatprep.subr.bf16.mxu0 0
    %2124 = vmatpush1.bf16.xpose.msra.mxu0 0
    %2125 = vmatprep.subr.bf16.mxu0 0
    %2126 = vmatpush1.bf16.xpose.msra.mxu0 0
    %2127 = vmatprep.subr.bf16.mxu0 0
    %2128 = vmatpush1.bf16.xpose.msra.mxu0 0
    %2129 = vmatprep.subr.bf16.mxu0 0
    %2130 = vmatpush1.bf16.xpose.msra.mxu0 0
    %2131 = vmatprep.subr.bf16.mxu0 0
    %2132 = vmatpush1.bf16.xpose.msra.mxu0 0
    %2133 = vmatprep.subr.bf16.mxu0 0
    %2134 = vmatpush1.bf16.xpose.msra.mxu0 0
    %2135 = vmatprep.subr.bf16.mxu0 0
    %2136 = vmatpush1.bf16.xpose.msra.mxu0 0
    %2137 = vmatprep.mubr.bf16.mxu0 0
    %2138 = vmatmul.mubr.bf16.gmra.mrb[0].mxu0 %v2100
    %v2139 = vpop.f32.mrb[0].mxu0
    %v2140 = vadd.f32 0.0, %v2139
    %v2141 = vpop.f32.mrb[0].mxu0
    %v2142 = vpop.f32.mrb[0].mxu0
    %v2143 = vpop.f32.mrb[0].mxu0
    %2144 = vdwg.mxu0
    %v2145 = vmul.f32 %v2094, 0.125
    %v2146 = vmul.f32 %v2140, 0.125
    %v2147 = vadd.f32 %v2145, %v809
    %v2148 = vadd.f32 %v2146, %v813
    %v2149 = vsel %vm818, %v2147, -inf
    %2150 = vmax.xlane.f32.xlu0 %v2149
    %v2151 = vpop.xlane.xlu0 %2150
    %v2152 = vsel %vm818, %v2148, -inf
    %2153 = vmax.xlane.f32.xlu0 %v2152
    %v2154 = vpop.xlane.xlu0 %2153
    %v2155 = vsub.f32 %v2147, %v2151
    %v2156 = vsub.f32 %v2148, %v2154
    %v2157 = vmul.f32 %v2155, 1.442695
    %v2158 = vpow.pop %v2157
    %v2159 = vmul.f32 %v2156, 1.442695
    %v2160 = vpow.pop %v2159
    %v2161 = vsel %vm818, %v2158, 0.0
    %2162 = vadd.xlane.f32.xlu0 %v2161
    %v2163 = vpop.xlane.xlu0 %2162
    %v2164 = vsel %vm818, %v2160, 0.0
    %2165 = vadd.xlane.f32.xlu0 %v2164
    %v2166 = vpop.xlane.xlu0 %2165
    %v2167 = vrcp.pop %v2163
    %v2168 = vrcp.pop %v2166
    %v2169 = vmul.f32 %v2158, %v2167
    %v2170 = vmul.f32 %v2160, %v2168
    %v2171 = vpack.c.bf16 %v2169, %v2169
    %v2172 = vpack.c.bf16 %v2170, %v2170
    %v2173 = vpack.c.bf16 %v2041, %v2041
    %v2174 = vpack.c.bf16 %v2044, %v2044
    %v2176 = vsel %vm818, %v2171, 0
    %v2179 = vsel %vm848, %v2173, 0
    %2181 = vmatprep.subr.bf16.mxu0 0
    %2182 = vmatpush1.bf16.msra.mxu0 %v2179
    %2183 = vmatprep.subr.bf16.mxu0 0
    %2184 = vmatpush1.bf16.msra.mxu0 0
    %2185 = vmatprep.subr.bf16.mxu0 0
    %2186 = vmatpush1.bf16.msra.mxu0 0
    %2187 = vmatprep.subr.bf16.mxu0 0
    %2188 = vmatpush1.bf16.msra.mxu0 0
    %2189 = vmatprep.subr.bf16.mxu0 0
    %2190 = vmatpush1.bf16.msra.mxu0 0
    %2191 = vmatprep.subr.bf16.mxu0 0
    %2192 = vmatpush1.bf16.msra.mxu0 0
    %2193 = vmatprep.subr.bf16.mxu0 0
    %2194 = vmatpush1.bf16.msra.mxu0 0
    %2195 = vmatprep.subr.bf16.mxu0 0
    %2196 = vmatpush1.bf16.msra.mxu0 0
    %2197 = vmatprep.subr.bf16.mxu0 0
    %2198 = vmatpush1.bf16.msra.mxu0 0
    %2199 = vmatprep.subr.bf16.mxu0 0
    %2200 = vmatpush1.bf16.msra.mxu0 0
    %2201 = vmatprep.subr.bf16.mxu0 0
    %2202 = vmatpush1.bf16.msra.mxu0 0
    %2203 = vmatprep.subr.bf16.mxu0 0
    %2204 = vmatpush1.bf16.msra.mxu0 0
    %2205 = vmatprep.subr.bf16.mxu0 0
    %2206 = vmatpush1.bf16.msra.mxu0 0
    %2207 = vmatprep.subr.bf16.mxu0 0
    %2208 = vmatpush1.bf16.msra.mxu0 0
    %2209 = vmatprep.subr.bf16.mxu0 0
    %2210 = vmatpush1.bf16.msra.mxu0 0
    %2211 = vmatprep.subr.bf16.mxu0 0
    %2212 = vmatpush1.bf16.msra.mxu0 0
    %2213 = vmatprep.mubr.bf16.mxu0 0
    %2214 = vmatmul.mubr.bf16.gmra.mrb[0].mxu0 %v2176
    %v2215 = vpop.f32.mrb[0].mxu0
    %v2216 = vadd.f32 0.0, %v2215
    %v2217 = vpop.f32.mrb[0].mxu0
    %v2218 = vpop.f32.mrb[0].mxu0
    %v2219 = vpop.f32.mrb[0].mxu0
    %2220 = vdwg.mxu0
    %v2222 = vsel %vm818, %v2172, 0
    %v2225 = vsel %vm848, %v2174, 0
    %2227 = vmatprep.subr.bf16.mxu0 0
    %2228 = vmatpush1.bf16.msra.mxu0 %v2225
    %2229 = vmatprep.subr.bf16.mxu0 0
    %2230 = vmatpush1.bf16.msra.mxu0 0
    %2231 = vmatprep.subr.bf16.mxu0 0
    %2232 = vmatpush1.bf16.msra.mxu0 0
    %2233 = vmatprep.subr.bf16.mxu0 0
    %2234 = vmatpush1.bf16.msra.mxu0 0
    %2235 = vmatprep.subr.bf16.mxu0 0
    %2236 = vmatpush1.bf16.msra.mxu0 0
    %2237 = vmatprep.subr.bf16.mxu0 0
    %2238 = vmatpush1.bf16.msra.mxu0 0
    %2239 = vmatprep.subr.bf16.mxu0 0
    %2240 = vmatpush1.bf16.msra.mxu0 0
    %2241 = vmatprep.subr.bf16.mxu0 0
    %2242 = vmatpush1.bf16.msra.mxu0 0
    %2243 = vmatprep.subr.bf16.mxu0 0
    %2244 = vmatpush1.bf16.msra.mxu0 0
    %2245 = vmatprep.subr.bf16.mxu0 0
    %2246 = vmatpush1.bf16.msra.mxu0 0
    %2247 = vmatprep.subr.bf16.mxu0 0
    %2248 = vmatpush1.bf16.msra.mxu0 0
    %2249 = vmatprep.subr.bf16.mxu0 0
    %2250 = vmatpush1.bf16.msra.mxu0 0
    %2251 = vmatprep.subr.bf16.mxu0 0
    %2252 = vmatpush1.bf16.msra.mxu0 0
    %2253 = vmatprep.subr.bf16.mxu0 0
    %2254 = vmatpush1.bf16.msra.mxu0 0
    %2255 = vmatprep.subr.bf16.mxu0 0
    %2256 = vmatpush1.bf16.msra.mxu0 0
    %2257 = vmatprep.subr.bf16.mxu0 0
    %2258 = vmatpush1.bf16.msra.mxu0 0
    %2259 = vmatprep.mubr.bf16.mxu0 0
    %2260 = vmatmul.mubr.bf16.gmra.mrb[0].mxu0 %v2222
    %v2261 = vpop.f32.mrb[0].mxu0
    %v2262 = vadd.f32 0.0, %v2261
    %v2263 = vpop.f32.mrb[0].mxu0
    %v2264 = vpop.f32.mrb[0].mxu0
    %v2265 = vpop.f32.mrb[0].mxu0
    %2266 = vdwg.mxu0
    %v2267 = vpack.c.bf16 %v2262, %v2216
    %s2268 = scalar_lea.vmem [#allocation11], 64
    %v2269 = vld [vmem:[%s2268] sm:$0xf]
    %v2270 = vld [vmem:[%s2268 + $0x4] sm:$0xf]
    %v2271 = vld [vmem:[%s2268 + $0x8] sm:$0xf]
    %v2272 = vld [vmem:[%s2268 + $0xc] sm:$0xf]
    %v2273 = vld [vmem:[%s2268 + $0x10] sm:$0xf]
    %v2274 = vld [vmem:[%s2268 + $0x14] sm:$0xf]
    %v2275 = vld [vmem:[%s2268 + $0x18] sm:$0xf]
    %v2276 = vld [vmem:[%s2268 + $0x1c] sm:$0xf]
    %v2285 = vunpack.c.l.b16 %v2269
    %v2286 = vunpack.c.l.b16 %v2270
    %v2287 = vunpack.c.l.b16 %v2271
    %v2288 = vunpack.c.l.b16 %v2272
    %v2289 = vunpack.c.l.b16 %v2273
    %v2290 = vunpack.c.l.b16 %v2274
    %v2291 = vunpack.c.l.b16 %v2275
    %v2292 = vunpack.c.l.b16 %v2276
    %v2293 = vpack.c.b16 %v2286, %v2285
    %v2294 = vpack.c.b16 %v2288, %v2287
    %v2295 = vpack.c.b16 %v2290, %v2289
    %v2296 = vpack.c.b16 %v2292, %v2291
    %v2302 = vsel %vm287, %v2267, 0
    %2304 = vmatprep.subr.bf16.mxu0 0
    %2305 = vmatpush1.bf16.msra.mxu0 %v2293
    %2306 = vmatprep.subr.bf16.mxu0 0
    %2307 = vmatpush1.bf16.msra.mxu0 %v2294
    %2308 = vmatprep.subr.bf16.mxu0 0
    %2309 = vmatpush1.bf16.msra.mxu0 %v2295
    %2310 = vmatprep.subr.bf16.mxu0 0
    %2311 = vmatpush1.bf16.msra.mxu0 %v2296
    %2312 = vmatprep.subr.bf16.mxu0 0
    %2313 = vmatpush1.bf16.msra.mxu0 0
    %2314 = vmatprep.subr.bf16.mxu0 0
    %2315 = vmatpush1.bf16.msra.mxu0 0
    %2316 = vmatprep.subr.bf16.mxu0 0
    %2317 = vmatpush1.bf16.msra.mxu0 0
    %2318 = vmatprep.subr.bf16.mxu0 0
    %2319 = vmatpush1.bf16.msra.mxu0 0
    %2320 = vmatprep.subr.bf16.mxu0 0
    %2321 = vmatpush1.bf16.msra.mxu0 0
    %2322 = vmatprep.subr.bf16.mxu0 0
    %2323 = vmatpush1.bf16.msra.mxu0 0
    %2324 = vmatprep.subr.bf16.mxu0 0
    %2325 = vmatpush1.bf16.msra.mxu0 0
    %2326 = vmatprep.subr.bf16.mxu0 0
    %2327 = vmatpush1.bf16.msra.mxu0 0
    %2328 = vmatprep.subr.bf16.mxu0 0
    %2329 = vmatpush1.bf16.msra.mxu0 0
    %2330 = vmatprep.subr.bf16.mxu0 0
    %2331 = vmatpush1.bf16.msra.mxu0 0
    %2332 = vmatprep.subr.bf16.mxu0 0
    %2333 = vmatpush1.bf16.msra.mxu0 0
    %2334 = vmatprep.subr.bf16.mxu0 0
    %2335 = vmatpush1.bf16.msra.mxu0 0
    %2336 = vmatprep.mubr.bf16.mxu0 0
    %2337 = vmatmul.mubr.bf16.gmra.mrb[0].mxu0 %v2302
    %v2338 = vpop.f32.mrb[0].mxu0
    %v2339 = vadd.f32 0.0, %v2338
    %v2340 = vpop.f32.mrb[0].mxu0
    %v2341 = vpop.f32.mrb[0].mxu0
    %v2342 = vadd.f32 0.0, %v2341
    %v2343 = vpop.f32.mrb[0].mxu0
    %2344 = vdwg.mxu0
    %v2346 = vlaneseq
    %v2347 = vshrl.u32 %v2346, 7
    %v2348 = vsub.s32 0, %v2347
    %v2349 = vrot.slane %v2048, %v2348
    %v2351 = vadd.f32 %v2349, %v2339
    %v2352 = vadd.f32 %v2349, %v2342
    %2354 = vrot.lane.b32.xlu0 %v2049, 64
    %v2355 = vpop.permute.xlu0 %2354
    %2357 = vrot.lane.b32.xlu0 %v2051, 64
    %v2358 = vpop.permute.xlu0 %2357
    %v2360 = vsel %vm287, %v2355, 0
    %v2363 = vsel %vm287, %v2358, 0
    %2365 = vmatprep.subr.bf16.mxu0 0
    %2366 = vmatpush1.bf16.xpose.msra.mxu0 %v2363
    %2367 = vmatprep.subr.bf16.mxu0 0
    %2368 = vmatpush1.bf16.xpose.msra.mxu0 0
    %2369 = vmatprep.subr.bf16.mxu0 0
    %2370 = vmatpush1.bf16.xpose.msra.mxu0 0
    %2371 = vmatprep.subr.bf16.mxu0 0
    %2372 = vmatpush1.bf16.xpose.msra.mxu0 0
    %2373 = vmatprep.subr.bf16.mxu0 0
    %2374 = vmatpush1.bf16.xpose.msra.mxu0 0
    %2375 = vmatprep.subr.bf16.mxu0 0
    %2376 = vmatpush1.bf16.xpose.msra.mxu0 0
    %2377 = vmatprep.subr.bf16.mxu0 0
    %2378 = vmatpush1.bf16.xpose.msra.mxu0 0
    %2379 = vmatprep.subr.bf16.mxu0 0
    %2380 = vmatpush1.bf16.xpose.msra.mxu0 0
    %2381 = vmatprep.subr.bf16.mxu0 0
    %2382 = vmatpush1.bf16.xpose.msra.mxu0 0
    %2383 = vmatprep.subr.bf16.mxu0 0
    %2384 = vmatpush1.bf16.xpose.msra.mxu0 0
    %2385 = vmatprep.subr.bf16.mxu0 0
    %2386 = vmatpush1.bf16.xpose.msra.mxu0 0
    %2387 = vmatprep.subr.bf16.mxu0 0
    %2388 = vmatpush1.bf16.xpose.msra.mxu0 0
    %2389 = vmatprep.subr.bf16.mxu0 0
    %2390 = vmatpush1.bf16.xpose.msra.mxu0 0
    %2391 = vmatprep.subr.bf16.mxu0 0
    %2392 = vmatpush1.bf16.xpose.msra.mxu0 0
    %2393 = vmatprep.subr.bf16.mxu0 0
    %2394 = vmatpush1.bf16.xpose.msra.mxu0 0
    %2395 = vmatprep.subr.bf16.mxu0 0
    %2396 = vmatpush1.bf16.xpose.msra.mxu0 0
    %2397 = vmatprep.mubr.bf16.mxu0 0
    %2398 = vmatmul.mubr.bf16.gmra.mrb[0].mxu0 %v2360
    %v2399 = vpop.f32.mrb[0].mxu0
    %v2400 = vadd.f32 0.0, %v2399
    %v2401 = vpop.f32.mrb[0].mxu0
    %v2402 = vpop.f32.mrb[0].mxu0
    %v2403 = vpop.f32.mrb[0].mxu0
    %2404 = vdwg.mxu0
    %2406 = vrot.lane.b32.xlu0 %v2050, 64
    %v2407 = vpop.permute.xlu0 %2406
    %2409 = vrot.lane.b32.xlu0 %v2052, 64
    %v2410 = vpop.permute.xlu0 %2409
    %v2412 = vsel %vm287, %v2407, 0
    %v2415 = vsel %vm287, %v2410, 0
    %2417 = vmatprep.subr.bf16.mxu0 0
    %2418 = vmatpush1.bf16.xpose.msra.mxu0 %v2415
    %2419 = vmatprep.subr.bf16.mxu0 0
    %2420 = vmatpush1.bf16.xpose.msra.mxu0 0
    %2421 = vmatprep.subr.bf16.mxu0 0
    %2422 = vmatpush1.bf16.xpose.msra.mxu0 0
    %2423 = vmatprep.subr.bf16.mxu0 0
    %2424 = vmatpush1.bf16.xpose.msra.mxu0 0
    %2425 = vmatprep.subr.bf16.mxu0 0
    %2426 = vmatpush1.bf16.xpose.msra.mxu0 0
    %2427 = vmatprep.subr.bf16.mxu0 0
    %2428 = vmatpush1.bf16.xpose.msra.mxu0 0
    %2429 = vmatprep.subr.bf16.mxu0 0
    %2430 = vmatpush1.bf16.xpose.msra.mxu0 0
    %2431 = vmatprep.subr.bf16.mxu0 0
    %2432 = vmatpush1.bf16.xpose.msra.mxu0 0
    %2433 = vmatprep.subr.bf16.mxu0 0
    %2434 = vmatpush1.bf16.xpose.msra.mxu0 0
    %2435 = vmatprep.subr.bf16.mxu0 0
    %2436 = vmatpush1.bf16.xpose.msra.mxu0 0
    %2437 = vmatprep.subr.bf16.mxu0 0
    %2438 = vmatpush1.bf16.xpose.msra.mxu0 0
    %2439 = vmatprep.subr.bf16.mxu0 0
    %2440 = vmatpush1.bf16.xpose.msra.mxu0 0
    %2441 = vmatprep.subr.bf16.mxu0 0
    %2442 = vmatpush1.bf16.xpose.msra.mxu0 0
    %2443 = vmatprep.subr.bf16.mxu0 0
    %2444 = vmatpush1.bf16.xpose.msra.mxu0 0
    %2445 = vmatprep.subr.bf16.mxu0 0
    %2446 = vmatpush1.bf16.xpose.msra.mxu0 0
    %2447 = vmatprep.subr.bf16.mxu0 0
    %2448 = vmatpush1.bf16.xpose.msra.mxu0 0
    %2449 = vmatprep.mubr.bf16.mxu0 0
    %2450 = vmatmul.mubr.bf16.gmra.mrb[0].mxu0 %v2412
    %v2451 = vpop.f32.mrb[0].mxu0
    %v2452 = vadd.f32 0.0, %v2451
    %v2453 = vpop.f32.mrb[0].mxu0
    %v2454 = vpop.f32.mrb[0].mxu0
    %v2455 = vpop.f32.mrb[0].mxu0
    %2456 = vdwg.mxu0
    %v2457 = vmul.f32 %v2400, 0.125
    %v2458 = vmul.f32 %v2452, 0.125
    %v2459 = vadd.f32 %v2457, %v809
    %v2460 = vadd.f32 %v2458, %v813
    %v2461 = vsel %vm818, %v2459, -inf
    %2462 = vmax.xlane.f32.xlu0 %v2461
    %v2463 = vpop.xlane.xlu0 %2462
    %v2464 = vsel %vm818, %v2460, -inf
    %2465 = vmax.xlane.f32.xlu0 %v2464
    %v2466 = vpop.xlane.xlu0 %2465
    %v2467 = vsub.f32 %v2459, %v2463
    %v2468 = vsub.f32 %v2460, %v2466
    %v2469 = vmul.f32 %v2467, 1.442695
    %v2470 = vpow.pop %v2469
    %v2471 = vmul.f32 %v2468, 1.442695
    %v2472 = vpow.pop %v2471
    %v2473 = vsel %vm818, %v2470, 0.0
    %2474 = vadd.xlane.f32.xlu0 %v2473
    %v2475 = vpop.xlane.xlu0 %2474
    %v2476 = vsel %vm818, %v2472, 0.0
    %2477 = vadd.xlane.f32.xlu0 %v2476
    %v2478 = vpop.xlane.xlu0 %2477
    %v2479 = vrcp.pop %v2475
    %v2480 = vrcp.pop %v2478
    %v2481 = vmul.f32 %v2470, %v2479
    %v2482 = vmul.f32 %v2472, %v2480
    %v2483 = vpack.c.bf16 %v2481, %v2481
    %v2484 = vpack.c.bf16 %v2482, %v2482
    %2486 = vrot.lane.b32.xlu0 %v2173, 64
    %v2487 = vpop.permute.xlu0 %2486
    %v2489 = vsel %vm818, %v2483, 0
    %v2492 = vsel %vm848, %v2487, 0
    %2494 = vmatprep.subr.bf16.mxu0 0
    %2495 = vmatpush1.bf16.msra.mxu0 %v2492
    %2496 = vmatprep.subr.bf16.mxu0 0
    %2497 = vmatpush1.bf16.msra.mxu0 0
    %2498 = vmatprep.subr.bf16.mxu0 0
    %2499 = vmatpush1.bf16.msra.mxu0 0
    %2500 = vmatprep.subr.bf16.mxu0 0
    %2501 = vmatpush1.bf16.msra.mxu0 0
    %2502 = vmatprep.subr.bf16.mxu0 0
    %2503 = vmatpush1.bf16.msra.mxu0 0
    %2504 = vmatprep.subr.bf16.mxu0 0
    %2505 = vmatpush1.bf16.msra.mxu0 0
    %2506 = vmatprep.subr.bf16.mxu0 0
    %2507 = vmatpush1.bf16.msra.mxu0 0
    %2508 = vmatprep.subr.bf16.mxu0 0
    %2509 = vmatpush1.bf16.msra.mxu0 0
    %2510 = vmatprep.subr.bf16.mxu0 0
    %2511 = vmatpush1.bf16.msra.mxu0 0
    %2512 = vmatprep.subr.bf16.mxu0 0
    %2513 = vmatpush1.bf16.msra.mxu0 0
    %2514 = vmatprep.subr.bf16.mxu0 0
    %2515 = vmatpush1.bf16.msra.mxu0 0
    %2516 = vmatprep.subr.bf16.mxu0 0
    %2517 = vmatpush1.bf16.msra.mxu0 0
    %2518 = vmatprep.subr.bf16.mxu0 0
    %2519 = vmatpush1.bf16.msra.mxu0 0
    %2520 = vmatprep.subr.bf16.mxu0 0
    %2521 = vmatpush1.bf16.msra.mxu0 0
    %2522 = vmatprep.subr.bf16.mxu0 0
    %2523 = vmatpush1.bf16.msra.mxu0 0
    %2524 = vmatprep.subr.bf16.mxu0 0
    %2525 = vmatpush1.bf16.msra.mxu0 0
    %2526 = vmatprep.mubr.bf16.mxu0 0
    %2527 = vmatmul.mubr.bf16.gmra.mrb[0].mxu0 %v2489
    %v2528 = vpop.f32.mrb[0].mxu0
    %v2529 = vadd.f32 0.0, %v2528
    %v2530 = vpop.f32.mrb[0].mxu0
    %v2531 = vpop.f32.mrb[0].mxu0
    %v2532 = vpop.f32.mrb[0].mxu0
    %2533 = vdwg.mxu0
    %2535 = vrot.lane.b32.xlu0 %v2174, 64
    %v2536 = vpop.permute.xlu0 %2535
    %v2538 = vsel %vm818, %v2484, 0
    %v2541 = vsel %vm848, %v2536, 0
    %2543 = vmatprep.subr.bf16.mxu0 0
    %2544 = vmatpush1.bf16.msra.mxu0 %v2541
    %2545 = vmatprep.subr.bf16.mxu0 0
    %2546 = vmatpush1.bf16.msra.mxu0 0
    %2547 = vmatprep.subr.bf16.mxu0 0
    %2548 = vmatpush1.bf16.msra.mxu0 0
    %2549 = vmatprep.subr.bf16.mxu0 0
    %2550 = vmatpush1.bf16.msra.mxu0 0
    %2551 = vmatprep.subr.bf16.mxu0 0
    %2552 = vmatpush1.bf16.msra.mxu0 0
    %2553 = vmatprep.subr.bf16.mxu0 0
    %2554 = vmatpush1.bf16.msra.mxu0 0
    %2555 = vmatprep.subr.bf16.mxu0 0
    %2556 = vmatpush1.bf16.msra.mxu0 0
    %2557 = vmatprep.subr.bf16.mxu0 0
    %2558 = vmatpush1.bf16.msra.mxu0 0
    %2559 = vmatprep.subr.bf16.mxu0 0
    %2560 = vmatpush1.bf16.msra.mxu0 0
    %2561 = vmatprep.subr.bf16.mxu0 0
    %2562 = vmatpush1.bf16.msra.mxu0 0
    %2563 = vmatprep.subr.bf16.mxu0 0
    %2564 = vmatpush1.bf16.msra.mxu0 0
    %2565 = vmatprep.subr.bf16.mxu0 0
    %2566 = vmatpush1.bf16.msra.mxu0 0
    %2567 = vmatprep.subr.bf16.mxu0 0
    %2568 = vmatpush1.bf16.msra.mxu0 0
    %2569 = vmatprep.subr.bf16.mxu0 0
    %2570 = vmatpush1.bf16.msra.mxu0 0
    %2571 = vmatprep.subr.bf16.mxu0 0
    %2572 = vmatpush1.bf16.msra.mxu0 0
    %2573 = vmatprep.subr.bf16.mxu0 0
    %2574 = vmatpush1.bf16.msra.mxu0 0
    %2575 = vmatprep.mubr.bf16.mxu0 0
    %2576 = vmatmul.mubr.bf16.gmra.mrb[0].mxu0 %v2538
    %v2577 = vpop.f32.mrb[0].mxu0
    %v2578 = vadd.f32 0.0, %v2577
    %v2579 = vpop.f32.mrb[0].mxu0
    %v2580 = vpop.f32.mrb[0].mxu0
    %v2581 = vpop.f32.mrb[0].mxu0
    %2582 = vdwg.mxu0
    %v2583 = vpack.c.bf16 %v2578, %v2529
    %s2584 = scalar_lea.vmem [#allocation11], 96
    %v2585 = vld [vmem:[%s2584] sm:$0xf]
    %v2586 = vld [vmem:[%s2584 + $0x4] sm:$0xf]
    %v2587 = vld [vmem:[%s2584 + $0x8] sm:$0xf]
    %v2588 = vld [vmem:[%s2584 + $0xc] sm:$0xf]
    %v2589 = vld [vmem:[%s2584 + $0x10] sm:$0xf]
    %v2590 = vld [vmem:[%s2584 + $0x14] sm:$0xf]
    %v2591 = vld [vmem:[%s2584 + $0x18] sm:$0xf]
    %v2592 = vld [vmem:[%s2584 + $0x1c] sm:$0xf]
    %v2601 = vunpack.c.l.b16 %v2585
    %v2602 = vunpack.c.l.b16 %v2586
    %v2603 = vunpack.c.l.b16 %v2587
    %v2604 = vunpack.c.l.b16 %v2588
    %v2605 = vunpack.c.l.b16 %v2589
    %v2606 = vunpack.c.l.b16 %v2590
    %v2607 = vunpack.c.l.b16 %v2591
    %v2608 = vunpack.c.l.b16 %v2592
    %v2609 = vpack.c.b16 %v2602, %v2601
    %v2610 = vpack.c.b16 %v2604, %v2603
    %v2611 = vpack.c.b16 %v2606, %v2605
    %v2612 = vpack.c.b16 %v2608, %v2607
    %v2618 = vsel %vm287, %v2583, 0
    %2620 = vmatprep.subr.bf16.mxu0 0
    %2621 = vmatpush1.bf16.msra.mxu0 %v2609
    %2622 = vmatprep.subr.bf16.mxu0 0
    %2623 = vmatpush1.bf16.msra.mxu0 %v2610
    %2624 = vmatprep.subr.bf16.mxu0 0
    %2625 = vmatpush1.bf16.msra.mxu0 %v2611
    %2626 = vmatprep.subr.bf16.mxu0 0
    %2627 = vmatpush1.bf16.msra.mxu0 %v2612
    %2628 = vmatprep.subr.bf16.mxu0 0
    %2629 = vmatpush1.bf16.msra.mxu0 0
    %2630 = vmatprep.subr.bf16.mxu0 0
    %2631 = vmatpush1.bf16.msra.mxu0 0
    %2632 = vmatprep.subr.bf16.mxu0 0
    %2633 = vmatpush1.bf16.msra.mxu0 0
    %2634 = vmatprep.subr.bf16.mxu0 0
    %2635 = vmatpush1.bf16.msra.mxu0 0
    %2636 = vmatprep.subr.bf16.mxu0 0
    %2637 = vmatpush1.bf16.msra.mxu0 0
    %2638 = vmatprep.subr.bf16.mxu0 0
    %2639 = vmatpush1.bf16.msra.mxu0 0
    %2640 = vmatprep.subr.bf16.mxu0 0
    %2641 = vmatpush1.bf16.msra.mxu0 0
    %2642 = vmatprep.subr.bf16.mxu0 0
    %2643 = vmatpush1.bf16.msra.mxu0 0
    %2644 = vmatprep.subr.bf16.mxu0 0
    %2645 = vmatpush1.bf16.msra.mxu0 0
    %2646 = vmatprep.subr.bf16.mxu0 0
    %2647 = vmatpush1.bf16.msra.mxu0 0
    %2648 = vmatprep.subr.bf16.mxu0 0
    %2649 = vmatpush1.bf16.msra.mxu0 0
    %2650 = vmatprep.subr.bf16.mxu0 0
    %2651 = vmatpush1.bf16.msra.mxu0 0
    %2652 = vmatprep.mubr.bf16.mxu0 0
    %2653 = vmatmul.mubr.bf16.gmra.mrb[0].mxu0 %v2618
    %v2654 = vpop.f32.mrb[0].mxu0
    %v2655 = vadd.f32 0.0, %v2654
    %v2656 = vpop.f32.mrb[0].mxu0
    %v2657 = vpop.f32.mrb[0].mxu0
    %v2658 = vadd.f32 0.0, %v2657
    %v2659 = vpop.f32.mrb[0].mxu0
    %2660 = vdwg.mxu0
    %v2661 = vadd.f32 %v2351, %v2655
    %v2662 = vadd.f32 %v2352, %v2658
    %v2663 = vadd.f32 %v2661, %v1781
    %v2664 = vadd.f32 %v2662, %v1782
    %s2665 = scalar_lea.vmem [#allocation14], 1
    %v2666 = vld [vmem:[%s2665] sm:$0x1]
    %s2667 = scalar_lea.vmem [#allocation16], 1
    %v2668 = vld [vmem:[%s2667] sm:$0x1]
    %2669 = vadd.xlane.f32.xlu0 %v2663
    %v2670 = vpop.xlane.xlu0 %2669
    %2671 = vadd.xlane.f32.xlu0 %v2664
    %v2672 = vpop.xlane.xlu0 %2671
    %v2673 = vmul.f32 %v2670, %v384
    %v2674 = vmul.f32 %v2672, %v384
    %v2675 = vsub.f32 %v2663, %v2673
    %v2676 = vsub.f32 %v2664, %v2674
    %v2677 = vmul.f32 %v2675, %v2675
    %v2678 = vmul.f32 %v2676, %v2676
    %2679 = vadd.xlane.f32.xlu0 %v2677
    %v2680 = vpop.xlane.xlu0 %2679
    %2681 = vadd.xlane.f32.xlu0 %v2678
    %v2682 = vpop.xlane.xlu0 %2681
    %v2683 = vmul.f32 %v2680, %v384
    %v2684 = vmul.f32 %v2682, %v384
    %v2685 = vadd.f32 %v2683, 1e-12
    %v2686 = vadd.f32 %v2684, 1e-12
    %v2687 = vrsqrt.pop %v2685
    %v2688 = vrsqrt.pop %v2686
    %v2689 = vmul.f32 %v2675, %v2687
    %v2690 = vmul.f32 %v2676, %v2688
    %v2692 = vlaneseq
    %v2693 = vshrl.u32 %v2692, 7
    %v2694 = vsub.s32 0, %v2693
    %v2695 = vrot.slane %v2666, %v2694
    %v2697 = vmul.f32 %v2689, %v2695
    %v2698 = vmul.f32 %v2690, %v2695
    %v2700 = vlaneseq
    %v2701 = vshrl.u32 %v2700, 7
    %v2702 = vsub.s32 0, %v2701
    %v2703 = vrot.slane %v2668, %v2702
    %v2705 = vadd.f32 %v2697, %v2703
    %v2706 = vadd.f32 %v2698, %v2703
    %s2707 = scalar_lea.vmem [#allocation17], 128
    %v2708 = vld [vmem:[%s2707] sm:$0xff]
    %v2709 = vld [vmem:[%s2707 + $0x8] sm:$0xff]
    %v2710 = vld [vmem:[%s2707 + $0x10] sm:$0xff]
    %v2711 = vld [vmem:[%s2707 + $0x18] sm:$0xff]
    %v2712 = vld [vmem:[%s2707 + $0x20] sm:$0xff]
    %v2713 = vld [vmem:[%s2707 + $0x28] sm:$0xff]
    %v2714 = vld [vmem:[%s2707 + $0x30] sm:$0xff]
    %v2715 = vld [vmem:[%s2707 + $0x38] sm:$0xff]
    %v2716 = vld [vmem:[%s2707 + $0x40] sm:$0xff]
    %v2717 = vld [vmem:[%s2707 + $0x48] sm:$0xff]
    %v2718 = vld [vmem:[%s2707 + $0x50] sm:$0xff]
    %v2719 = vld [vmem:[%s2707 + $0x58] sm:$0xff]
    %v2720 = vld [vmem:[%s2707 + $0x60] sm:$0xff]
    %v2721 = vld [vmem:[%s2707 + $0x68] sm:$0xff]
    %v2722 = vld [vmem:[%s2707 + $0x70] sm:$0xff]
    %v2723 = vld [vmem:[%s2707 + $0x78] sm:$0xff]
    %s2724 = scalar_lea.vmem %s14, 2
    %v2725 = vld [vmem:[%s2724] sm:$0x3]
    %v2726 = vpack.c.bf16 %v2706, %v2705
    %v2728 = vlaneseq
    %v2729 = vshrl.u32 %v2728, 7
    %v2730 = vsub.s32 0, %v2729
    %v2731 = vrot.slane %v2725, %v2730
    %v2732 = vlaneseq
    %v2733 = vshrl.u32 %v2732, 7
    %v2734 = vsub.s32 1, %v2733
    %v2735 = vrot.slane %v2725, %v2734
    %v2754 = vunpack.c.l.b16 %v2708
    %v2755 = vunpack.c.h.b16 %v2708
    %v2756 = vunpack.c.l.b16 %v2709
    %v2757 = vunpack.c.h.b16 %v2709
    %v2758 = vunpack.c.l.b16 %v2710
    %v2759 = vunpack.c.h.b16 %v2710
    %v2760 = vunpack.c.l.b16 %v2711
    %v2761 = vunpack.c.h.b16 %v2711
    %v2762 = vunpack.c.l.b16 %v2712
    %v2763 = vunpack.c.h.b16 %v2712
    %v2764 = vunpack.c.l.b16 %v2713
    %v2765 = vunpack.c.h.b16 %v2713
    %v2766 = vunpack.c.l.b16 %v2714
    %v2767 = vunpack.c.h.b16 %v2714
    %v2768 = vunpack.c.l.b16 %v2715
    %v2769 = vunpack.c.h.b16 %v2715
    %v2770 = vunpack.c.l.b16 %v2716
    %v2771 = vunpack.c.h.b16 %v2716
    %v2772 = vunpack.c.l.b16 %v2717
    %v2773 = vunpack.c.h.b16 %v2717
    %v2774 = vunpack.c.l.b16 %v2718
    %v2775 = vunpack.c.h.b16 %v2718
    %v2776 = vunpack.c.l.b16 %v2719
    %v2777 = vunpack.c.h.b16 %v2719
    %v2778 = vunpack.c.l.b16 %v2720
    %v2779 = vunpack.c.h.b16 %v2720
    %v2780 = vunpack.c.l.b16 %v2721
    %v2781 = vunpack.c.h.b16 %v2721
    %v2782 = vunpack.c.l.b16 %v2722
    %v2783 = vunpack.c.h.b16 %v2722
    %v2784 = vunpack.c.l.b16 %v2723
    %v2785 = vunpack.c.h.b16 %v2723
    %v2786 = vpack.c.b16 %v2756, %v2754
    %v2787 = vpack.c.b16 %v2757, %v2755
    %v2788 = vpack.c.b16 %v2760, %v2758
    %v2789 = vpack.c.b16 %v2761, %v2759
    %v2790 = vpack.c.b16 %v2764, %v2762
    %v2791 = vpack.c.b16 %v2765, %v2763
    %v2792 = vpack.c.b16 %v2768, %v2766
    %v2793 = vpack.c.b16 %v2769, %v2767
    %v2794 = vpack.c.b16 %v2772, %v2770
    %v2795 = vpack.c.b16 %v2773, %v2771
    %v2796 = vpack.c.b16 %v2776, %v2774
    %v2797 = vpack.c.b16 %v2777, %v2775
    %v2798 = vpack.c.b16 %v2780, %v2778
    %v2799 = vpack.c.b16 %v2781, %v2779
    %v2800 = vpack.c.b16 %v2784, %v2782
    %v2801 = vpack.c.b16 %v2785, %v2783
    %2818 = vmatprep.subr.bf16.mxu0 %v2787
    %2819 = vmatpush1.bf16.msra.mxu0 %v2786
    %2820 = vmatprep.subr.bf16.mxu0 %v2789
    %2821 = vmatpush1.bf16.msra.mxu0 %v2788
    %2822 = vmatprep.subr.bf16.mxu0 %v2791
    %2823 = vmatpush1.bf16.msra.mxu0 %v2790
    %2824 = vmatprep.subr.bf16.mxu0 %v2793
    %2825 = vmatpush1.bf16.msra.mxu0 %v2792
    %2826 = vmatprep.subr.bf16.mxu0 %v2795
    %2827 = vmatpush1.bf16.msra.mxu0 %v2794
    %2828 = vmatprep.subr.bf16.mxu0 %v2797
    %2829 = vmatpush1.bf16.msra.mxu0 %v2796
    %2830 = vmatprep.subr.bf16.mxu0 %v2799
    %2831 = vmatpush1.bf16.msra.mxu0 %v2798
    %2832 = vmatprep.subr.bf16.mxu0 %v2801
    %2833 = vmatpush1.bf16.msra.mxu0 %v2800
    %2834 = vmatprep.subr.bf16.mxu0 0
    %2835 = vmatpush1.bf16.msra.mxu0 0
    %2836 = vmatprep.subr.bf16.mxu0 0
    %2837 = vmatpush1.bf16.msra.mxu0 0
    %2838 = vmatprep.subr.bf16.mxu0 0
    %2839 = vmatpush1.bf16.msra.mxu0 0
    %2840 = vmatprep.subr.bf16.mxu0 0
    %2841 = vmatpush1.bf16.msra.mxu0 0
    %2842 = vmatprep.subr.bf16.mxu0 0
    %2843 = vmatpush1.bf16.msra.mxu0 0
    %2844 = vmatprep.subr.bf16.mxu0 0
    %2845 = vmatpush1.bf16.msra.mxu0 0
    %2846 = vmatprep.subr.bf16.mxu0 0
    %2847 = vmatpush1.bf16.msra.mxu0 0
    %2848 = vmatprep.subr.bf16.mxu0 0
    %2849 = vmatpush1.bf16.msra.mxu0 0
    %2850 = vmatprep.mubr.bf16.mxu0 0
    %2851 = vmatmul.mubr.bf16.gmra.mrb[0].mxu0 %v2726
    %v2852 = vpop.f32.mrb[0].mxu0
    %v2853 = vadd.f32 %v2731, %v2852
    %v2854 = vpop.f32.mrb[0].mxu0
    %v2855 = vadd.f32 %v2735, %v2854
    %v2856 = vpop.f32.mrb[0].mxu0
    %v2857 = vadd.f32 %v2731, %v2856
    %v2858 = vpop.f32.mrb[0].mxu0
    %v2859 = vadd.f32 %v2735, %v2858
    %2860 = vdwg.mxu0
    %v2861 = vmul.f32 %v2853, 0.5
    %v2862 = vmul.f32 %v2855, 0.5
    %v2863 = vmul.f32 %v2857, 0.5
    %v2864 = vmul.f32 %v2859, 0.5
    %v2865 = vmul.f32 %v2853, 0.044715
    %v2866 = vmul.f32 %v2855, 0.044715
    %v2867 = vmul.f32 %v2857, 0.044715
    %v2868 = vmul.f32 %v2859, 0.044715
    %v2869 = vmul.f32 %v2865, %v2853
    %v2870 = vmul.f32 %v2866, %v2855
    %v2871 = vmul.f32 %v2867, %v2857
    %v2872 = vmul.f32 %v2868, %v2859
    %v2873 = vmul.f32 %v2869, %v2853
    %v2874 = vmul.f32 %v2870, %v2855
    %v2875 = vmul.f32 %v2871, %v2857
    %v2876 = vmul.f32 %v2872, %v2859
    %v2877 = vadd.f32 %v2853, %v2873
    %v2878 = vadd.f32 %v2855, %v2874
    %v2879 = vadd.f32 %v2857, %v2875
    %v2880 = vadd.f32 %v2859, %v2876
    %v2881 = vmul.f32 %v2877, 0.7978846
    %v2882 = vmul.f32 %v2878, 0.7978846
    %v2883 = vmul.f32 %v2879, 0.7978846
    %v2884 = vmul.f32 %v2880, 0.7978846
    %v2885 = vtanh.pop %v2881
    %v2886 = vtanh.pop %v2882
    %v2887 = vtanh.pop %v2883
    %v2888 = vtanh.pop %v2884
    %v2889 = vadd.f32 %v2885, 1.0
    %v2890 = vadd.f32 %v2886, 1.0
    %v2891 = vadd.f32 %v2887, 1.0
    %v2892 = vadd.f32 %v2888, 1.0
    %v2893 = vmul.f32 %v2861, %v2889
    %v2894 = vmul.f32 %v2862, %v2890
    %v2895 = vmul.f32 %v2863, %v2891
    %v2896 = vmul.f32 %v2864, %v2892
    %s2897 = scalar_lea.vmem [#allocation19], 128
    %v2898 = vld [vmem:[%s2897] sm:$0xf]
    %v2899 = vld [vmem:[%s2897 + $0x4] sm:$0xf]
    %v2900 = vld [vmem:[%s2897 + $0x8] sm:$0xf]
    %v2901 = vld [vmem:[%s2897 + $0xc] sm:$0xf]
    %v2902 = vld [vmem:[%s2897 + $0x10] sm:$0xf]
    %v2903 = vld [vmem:[%s2897 + $0x14] sm:$0xf]
    %v2904 = vld [vmem:[%s2897 + $0x18] sm:$0xf]
    %v2905 = vld [vmem:[%s2897 + $0x1c] sm:$0xf]
    %v2906 = vld [vmem:[%s2897 + $0x20] sm:$0xf]
    %v2907 = vld [vmem:[%s2897 + $0x24] sm:$0xf]
    %v2908 = vld [vmem:[%s2897 + $0x28] sm:$0xf]
    %v2909 = vld [vmem:[%s2897 + $0x2c] sm:$0xf]
    %v2910 = vld [vmem:[%s2897 + $0x30] sm:$0xf]
    %v2911 = vld [vmem:[%s2897 + $0x34] sm:$0xf]
    %v2912 = vld [vmem:[%s2897 + $0x38] sm:$0xf]
    %v2913 = vld [vmem:[%s2897 + $0x3c] sm:$0xf]
    %v2914 = vld [vmem:[%s2897 + $0x40] sm:$0xf]
    %v2915 = vld [vmem:[%s2897 + $0x44] sm:$0xf]
    %v2916 = vld [vmem:[%s2897 + $0x48] sm:$0xf]
    %v2917 = vld [vmem:[%s2897 + $0x4c] sm:$0xf]
    %v2918 = vld [vmem:[%s2897 + $0x50] sm:$0xf]
    %v2919 = vld [vmem:[%s2897 + $0x54] sm:$0xf]
    %v2920 = vld [vmem:[%s2897 + $0x58] sm:$0xf]
    %v2921 = vld [vmem:[%s2897 + $0x5c] sm:$0xf]
    %v2922 = vld [vmem:[%s2897 + $0x60] sm:$0xf]
    %v2923 = vld [vmem:[%s2897 + $0x64] sm:$0xf]
    %v2924 = vld [vmem:[%s2897 + $0x68] sm:$0xf]
    %v2925 = vld [vmem:[%s2897 + $0x6c] sm:$0xf]
    %v2926 = vld [vmem:[%s2897 + $0x70] sm:$0xf]
    %v2927 = vld [vmem:[%s2897 + $0x74] sm:$0xf]
    %v2928 = vld [vmem:[%s2897 + $0x78] sm:$0xf]
    %v2929 = vld [vmem:[%s2897 + $0x7c] sm:$0xf]
    %s2930 = scalar_lea.vmem [#allocation20], 1
    %v2931 = vld [vmem:[%s2930] sm:$0x1]
    %v2932 = vpack.c.bf16 %v2895, %v2893
    %v2933 = vpack.c.bf16 %v2896, %v2894
    %v2935 = vlaneseq
    %v2936 = vshrl.u32 %v2935, 7
    %v2937 = vsub.s32 0, %v2936
    %v2938 = vrot.slane %v2931, %v2937
    %v2972 = vunpack.c.l.b16 %v2898
    %v2973 = vunpack.c.l.b16 %v2899
    %v2974 = vunpack.c.l.b16 %v2900
    %v2975 = vunpack.c.l.b16 %v2901
    %v2976 = vunpack.c.l.b16 %v2902
    %v2977 = vunpack.c.l.b16 %v2903
    %v2978 = vunpack.c.l.b16 %v2904
    %v2979 = vunpack.c.l.b16 %v2905
    %v2980 = vunpack.c.l.b16 %v2906
    %v2981 = vunpack.c.l.b16 %v2907
    %v2982 = vunpack.c.l.b16 %v2908
    %v2983 = vunpack.c.l.b16 %v2909
    %v2984 = vunpack.c.l.b16 %v2910
    %v2985 = vunpack.c.l.b16 %v2911
    %v2986 = vunpack.c.l.b16 %v2912
    %v2987 = vunpack.c.l.b16 %v2913
    %v2988 = vunpack.c.l.b16 %v2914
    %v2989 = vunpack.c.l.b16 %v2915
    %v2990 = vunpack.c.l.b16 %v2916
    %v2991 = vunpack.c.l.b16 %v2917
    %v2992 = vunpack.c.l.b16 %v2918
    %v2993 = vunpack.c.l.b16 %v2919
    %v2994 = vunpack.c.l.b16 %v2920
    %v2995 = vunpack.c.l.b16 %v2921
    %v2996 = vunpack.c.l.b16 %v2922
    %v2997 = vunpack.c.l.b16 %v2923
    %v2998 = vunpack.c.l.b16 %v2924
    %v2999 = vunpack.c.l.b16 %v2925
    %v3000 = vunpack.c.l.b16 %v2926
    %v3001 = vunpack.c.l.b16 %v2927
    %v3002 = vunpack.c.l.b16 %v2928
    %v3003 = vunpack.c.l.b16 %v2929
    %v3004 = vpack.c.b16 %v2973, %v2972
    %v3005 = vpack.c.b16 %v2975, %v2974
    %v3006 = vpack.c.b16 %v2977, %v2976
    %v3007 = vpack.c.b16 %v2979, %v2978
    %v3008 = vpack.c.b16 %v2981, %v2980
    %v3009 = vpack.c.b16 %v2983, %v2982
    %v3010 = vpack.c.b16 %v2985, %v2984
    %v3011 = vpack.c.b16 %v2987, %v2986
    %v3012 = vpack.c.b16 %v2989, %v2988
    %v3013 = vpack.c.b16 %v2991, %v2990
    %v3014 = vpack.c.b16 %v2993, %v2992
    %v3015 = vpack.c.b16 %v2995, %v2994
    %v3016 = vpack.c.b16 %v2997, %v2996
    %v3017 = vpack.c.b16 %v2999, %v2998
    %v3018 = vpack.c.b16 %v3001, %v3000
    %v3019 = vpack.c.b16 %v3003, %v3002
    %3036 = vmatprep.subr.bf16.mxu0 0
    %3037 = vmatpush1.bf16.msra.mxu0 %v3004
    %3038 = vmatprep.subr.bf16.mxu0 0
    %3039 = vmatpush1.bf16.msra.mxu0 %v3005
    %3040 = vmatprep.subr.bf16.mxu0 0
    %3041 = vmatpush1.bf16.msra.mxu0 %v3006
    %3042 = vmatprep.subr.bf16.mxu0 0
    %3043 = vmatpush1.bf16.msra.mxu0 %v3007
    %3044 = vmatprep.subr.bf16.mxu0 0
    %3045 = vmatpush1.bf16.msra.mxu0 %v3008
    %3046 = vmatprep.subr.bf16.mxu0 0
    %3047 = vmatpush1.bf16.msra.mxu0 %v3009
    %3048 = vmatprep.subr.bf16.mxu0 0
    %3049 = vmatpush1.bf16.msra.mxu0 %v3010
    %3050 = vmatprep.subr.bf16.mxu0 0
    %3051 = vmatpush1.bf16.msra.mxu0 %v3011
    %3052 = vmatprep.subr.bf16.mxu0 0
    %3053 = vmatpush1.bf16.msra.mxu0 %v3012
    %3054 = vmatprep.subr.bf16.mxu0 0
    %3055 = vmatpush1.bf16.msra.mxu0 %v3013
    %3056 = vmatprep.subr.bf16.mxu0 0
    %3057 = vmatpush1.bf16.msra.mxu0 %v3014
    %3058 = vmatprep.subr.bf16.mxu0 0
    %3059 = vmatpush1.bf16.msra.mxu0 %v3015
    %3060 = vmatprep.subr.bf16.mxu0 0
    %3061 = vmatpush1.bf16.msra.mxu0 %v3016
    %3062 = vmatprep.subr.bf16.mxu0 0
    %3063 = vmatpush1.bf16.msra.mxu0 %v3017
    %3064 = vmatprep.subr.bf16.mxu0 0
    %3065 = vmatpush1.bf16.msra.mxu0 %v3018
    %3066 = vmatprep.subr.bf16.mxu0 0
    %3067 = vmatpush1.bf16.msra.mxu0 %v3019
    %3068 = vmatprep.mubr.bf16.mxu0 %v2933
    %3069 = vmatmul.mubr.bf16.gmra.mrb[0].mxu0 %v2932
    %v3070 = vpop.f32.mrb[0].mxu0
    %v3071 = vadd.f32 %v2938, %v3070
    %v3072 = vpop.f32.mrb[0].mxu0
    %v3073 = vpop.f32.mrb[0].mxu0
    %v3074 = vadd.f32 %v2938, %v3073
    %v3075 = vpop.f32.mrb[0].mxu0
    %3076 = vdwg.mxu0
    %v3077 = vadd.f32 %v3071, %v2705
    %v3078 = vadd.f32 %v3074, %v2706
    %s3079 = scalar_lea.vmem [#allocation22], 1
    %v3080 = vld [vmem:[%s3079] sm:$0x1]
    %s3081 = scalar_lea.vmem [#allocation23], 1
    %v3082 = vld [vmem:[%s3081] sm:$0x1]
    %3083 = vadd.xlane.f32.xlu0 %v3077
    %v3084 = vpop.xlane.xlu0 %3083
    %3085 = vadd.xlane.f32.xlu0 %v3078
    %v3086 = vpop.xlane.xlu0 %3085
    %v3087 = vmul.f32 %v3084, %v384
    %v3088 = vmul.f32 %v3086, %v384
    %v3089 = vsub.f32 %v3077, %v3087
    %v3090 = vsub.f32 %v3078, %v3088
    %v3091 = vmul.f32 %v3089, %v3089
    %v3092 = vmul.f32 %v3090, %v3090
    %3093 = vadd.xlane.f32.xlu0 %v3091
    %v3094 = vpop.xlane.xlu0 %3093
    %3095 = vadd.xlane.f32.xlu0 %v3092
    %v3096 = vpop.xlane.xlu0 %3095
    %v3097 = vmul.f32 %v3094, %v384
    %v3098 = vmul.f32 %v3096, %v384
    %v3099 = vadd.f32 %v3097, 1e-12
    %v3100 = vadd.f32 %v3098, 1e-12
    %v3101 = vrsqrt.pop %v3099
    %v3102 = vrsqrt.pop %v3100
    %v3103 = vmul.f32 %v3089, %v3101
    %v3104 = vmul.f32 %v3090, %v3102
    %v3106 = vlaneseq
    %v3107 = vshrl.u32 %v3106, 7
    %v3108 = vsub.s32 0, %v3107
    %v3109 = vrot.slane %v3080, %v3108
    %v3111 = vmul.f32 %v3103, %v3109
    %v3112 = vmul.f32 %v3104, %v3109
    %v3114 = vlaneseq
    %v3115 = vshrl.u32 %v3114, 7
    %v3116 = vsub.s32 0, %v3115
    %v3117 = vrot.slane %v3082, %v3116
    %v3119 = vadd.f32 %v3111, %v3117
    %v3120 = vadd.f32 %v3112, %v3117
    %v3121 = vld [vmem:[%s19] sm:$0xf]
    %v3122 = vld [vmem:[%s19 + $0x4] sm:$0xf]
    %v3123 = vld [vmem:[%s19 + $0x8] sm:$0xf]
    %v3124 = vld [vmem:[%s19 + $0xc] sm:$0xf]
    %v3125 = vld [vmem:[%s19 + $0x10] sm:$0xf]
    %v3126 = vld [vmem:[%s19 + $0x14] sm:$0xf]
    %v3127 = vld [vmem:[%s19 + $0x18] sm:$0xf]
    %v3128 = vld [vmem:[%s19 + $0x1c] sm:$0xf]
    %v3129 = vld [vmem:[%s19 + $0x20] sm:$0xf]
    %v3130 = vld [vmem:[%s19 + $0x24] sm:$0xf]
    %v3131 = vld [vmem:[%s19 + $0x28] sm:$0xf]
    %v3132 = vld [vmem:[%s19 + $0x2c] sm:$0xf]
    %v3133 = vld [vmem:[%s19 + $0x30] sm:$0xf]
    %v3134 = vld [vmem:[%s19 + $0x34] sm:$0xf]
    %v3135 = vld [vmem:[%s19 + $0x38] sm:$0xf]
    %v3136 = vld [vmem:[%s19 + $0x3c] sm:$0xf]
    %v3137 = vld [vmem:[%s20] sm:$0x1]
    %v3138 = vpack.c.bf16 %v3119, %v3119
    %v3139 = vpack.c.bf16 %v3120, %v3120
    %v3141 = vlaneseq
    %v3142 = vshrl.u32 %v3141, 7
    %v3143 = vsub.s32 0, %v3142
    %v3144 = vrot.slane %v3137, %v3143
    %v3148 = vunpack.c.l.b16 %v3138
    %v3149 = vunpack.c.l.b16 %v3139
    %v3150 = vrot.slane %v3149, 7
    %vm3151 = vcmask 1041409
    %v3152 = vsel %vm3151, %v3150, %v3148
    %v3153 = vpack.c.b16 %v3152, %v3152
    %v3171 = vunpack.c.l.b16 %v3121
    %v3172 = vunpack.c.l.b16 %v3122
    %v3173 = vunpack.c.l.b16 %v3123
    %v3174 = vunpack.c.l.b16 %v3124
    %v3175 = vunpack.c.l.b16 %v3125
    %v3176 = vunpack.c.l.b16 %v3126
    %v3177 = vunpack.c.l.b16 %v3127
    %v3178 = vunpack.c.l.b16 %v3128
    %v3179 = vunpack.c.l.b16 %v3129
    %v3180 = vunpack.c.l.b16 %v3130
    %v3181 = vunpack.c.l.b16 %v3131
    %v3182 = vunpack.c.l.b16 %v3132
    %v3183 = vunpack.c.l.b16 %v3133
    %v3184 = vunpack.c.l.b16 %v3134
    %v3185 = vunpack.c.l.b16 %v3135
    %v3186 = vunpack.c.l.b16 %v3136
    %v3187 = vpack.c.b16 %v3172, %v3171
    %v3188 = vpack.c.b16 %v3174, %v3173
    %v3189 = vpack.c.b16 %v3176, %v3175
    %v3190 = vpack.c.b16 %v3178, %v3177
    %v3191 = vpack.c.b16 %v3180, %v3179
    %v3192 = vpack.c.b16 %v3182, %v3181
    %v3193 = vpack.c.b16 %v3184, %v3183
    %v3194 = vpack.c.b16 %v3186, %v3185
    %3203 = vmatprep.subr.bf16.mxu0 0
    %3204 = vmatpush1.bf16.msra.mxu0 %v3187
    %3205 = vmatprep.subr.bf16.mxu0 0
    %3206 = vmatpush1.bf16.msra.mxu0 %v3188
    %3207 = vmatprep.subr.bf16.mxu0 0
    %3208 = vmatpush1.bf16.msra.mxu0 %v3189
    %3209 = vmatprep.subr.bf16.mxu0 0
    %3210 = vmatpush1.bf16.msra.mxu0 %v3190
    %3211 = vmatprep.subr.bf16.mxu0 0
    %3212 = vmatpush1.bf16.msra.mxu0 %v3191
    %3213 = vmatprep.subr.bf16.mxu0 0
    %3214 = vmatpush1.bf16.msra.mxu0 %v3192
    %3215 = vmatprep.subr.bf16.mxu0 0
    %3216 = vmatpush1.bf16.msra.mxu0 %v3193
    %3217 = vmatprep.subr.bf16.mxu0 0
    %3218 = vmatpush1.bf16.msra.mxu0 %v3194
    %3219 = vmatprep.subr.bf16.mxu0 0
    %3220 = vmatpush1.bf16.msra.mxu0 0
    %3221 = vmatprep.subr.bf16.mxu0 0
    %3222 = vmatpush1.bf16.msra.mxu0 0
    %3223 = vmatprep.subr.bf16.mxu0 0
    %3224 = vmatpush1.bf16.msra.mxu0 0
    %3225 = vmatprep.subr.bf16.mxu0 0
    %3226 = vmatpush1.bf16.msra.mxu0 0
    %3227 = vmatprep.subr.bf16.mxu0 0
    %3228 = vmatpush1.bf16.msra.mxu0 0
    %3229 = vmatprep.subr.bf16.mxu0 0
    %3230 = vmatpush1.bf16.msra.mxu0 0
    %3231 = vmatprep.subr.bf16.mxu0 0
    %3232 = vmatpush1.bf16.msra.mxu0 0
    %3233 = vmatprep.subr.bf16.mxu0 0
    %3234 = vmatpush1.bf16.msra.mxu0 0
    %3235 = vmatprep.mubr.bf16.mxu0 0
    %3236 = vmatmul.mubr.bf16.gmra.mrb[0].mxu0 %v3153
    %v3237 = vpop.f32.mrb[0].mxu0
    %v3238 = vadd.f32 %v3144, %v3237
    %v3239 = vpop.f32.mrb[0].mxu0
    %v3240 = vpop.f32.mrb[0].mxu0
    %v3241 = vpop.f32.mrb[0].mxu0
    %3242 = vdwg.mxu0
    %v3243 = vtanh.pop %v3238
    %v3244 = vld [vmem:[%s21] sm:$0x1]
    %v3246 = vlaneseq
    %v3247 = vshrl.u32 %v3246, 7
    %v3248 = vsub.s32 0, %v3247
    %v3249 = vrot.slane %v3244, %v3248
    %v3251 = vmul.f32 %v3243, %v3249
    %vm3252 = vcmask 1041408
    %v3253 = vsel %vm3252, %v3251, 0.0
    %3254 = vadd.xlane.f32.xlu0 %v3253
    %v3255 = vpop.xlane.xlu0 %3254
    %v3256 = vld [vmem:[#allocation2] sm:$0x1]
    %v3258 = vlaneseq
    %v3259 = vshrl.u32 %v3258, 7
    %v3260 = vsub.s32 0, %v3259
    %v3261 = vrot.slane %v3256, %v3260
    %v3263 = vadd.f32 %v3255, %v3261
    %vm3264 = vcmask 1024
    %3265 = vst.msk [vmem:[%s23] sm:$0x3] %vm3264, %v3263
    // Predicated region
    $region150: #{tpu_custom_call.1} parent=1 // pred_check
      _
    $region151: #{tpu_custom_call.1} parent=1 // pred_check_branch
      %3267 = sbr.rel (0) target = $region153
    $region152: #{tpu_custom_call.1} parent=1 // pred_region
      _
    $region153: #{tpu_custom_call.1} parent=1 // pred_fallthru
      _
    // Predicated region
    $region154: #{tpu_custom_call.1} parent=1 // pred_check
      _
    $region155: #{tpu_custom_call.1} parent=1 // pred_check_branch
      %3269 = sbr.rel (0) target = $region157
    $region156: #{tpu_custom_call.1} parent=1 // pred_region
      _
    $region157: #{tpu_custom_call.1} parent=1 // pred_fallthru
      _
    %3270 = vsyncpa [#allocation4], 1
    %3271 = vsyncpa [#allocation6], 1
    %3272 = vsyncpa [#allocation9], 1
    %3273 = vsyncpa [#allocation12], 1
    %3274 = vsyncpa [#allocation15], 1
    %3275 = vsyncpa [#allocation18], 1
    %3276 = vsyncpa [#allocation21], 1
    %3277 = vsyncpa [#allocation24], 1

</llo_original>
